<compile_context>
chip_gen: v7x
topology: tpu7x:2x2x1
jax: 0.10.0
libtpu: 0.0.40
codegen_flags: <defaults>
</compile_context>

<pallas_src>
import jax
import jax.numpy as jnp
from jax.experimental import pallas as pl
from jax.experimental.pallas import tpu as pltpu

EPS = 1e-6


# ----------------------------- kernel helpers ------------------------------ #

def _scalenorm(x, scale):
    ms = jnp.mean(jnp.square(x), axis=-1, keepdims=True)
    return scale * x * jax.lax.rsqrt(ms + EPS)


def _silu(a):
    return a * jax.nn.sigmoid(a)


def _make_gau_kernel(seq_len, apply_final_norm):
    """One FLASH / GAU layer, tiled over (batch, q-tile, kv-tile)."""
    inv_t = 1.0 / float(seq_len)   # true sequence length, not the tile extent

    def kernel(xq_ref, xk_ref, wuz_ref, buz_ref, wvz_ref, bvz_ref,
               hw_ref, hb_ref, gb_ref, bias_ref, scale_ref, *rest):
        if apply_final_norm:
            y_ref, yn_ref, u_sc, q_sc, acc_sc = rest
        else:
            y_ref, u_sc, q_sc, acc_sc = rest

        ki = pl.program_id(2)
        nk = pl.num_programs(2)
        H = u_sc.shape[1]

        # ---- query-tile projection: once per (b, qi), kept in scratch ----
        @pl.when(ki == 0)
        def _init():
            xq = xq_ref[0].astype(jnp.float32)                       # (tq, D)
            xn = _scalenorm(xq, scale_ref[0]).astype(jnp.bfloat16)
            uz = _silu(jnp.dot(xn, wuz_ref[...],
                               preferred_element_type=jnp.float32)
                       + buz_ref[...])                               # (tq, H+Z)
            u_sc[...] = uz[:, :H]
            zq = uz[:, H:]
            q_sc[...] = (zq * gb_ref[0:1, :] + gb_ref[2:3, :]).astype(jnp.bfloat16)
            acc_sc[...] = jnp.zeros_like(acc_sc)

        # ---- kv-tile projection (streamed) ----
        xk = xk_ref[0].astype(jnp.float32)                           # (tk, D)
        xnk = _scalenorm(xk, scale_ref[0]).astype(jnp.bfloat16)
        vz = _silu(jnp.dot(xnk, wvz_ref[...],
                           preferred_element_type=jnp.float32)
                   + bvz_ref[...])                                   # (tk, H+Z)
        v = vz[:, :H].astype(jnp.bfloat16)
        zk = vz[:, H:]
        k = (zk * gb_ref[1:2, :] + gb_ref[3:4, :]).astype(jnp.bfloat16)

        # ---- relu^2 attention on this (q-tile, kv-tile) block ----
        qk = jax.lax.dot_general(q_sc[...], k, (((1,), (1,)), ((), ())),
                                 preferred_element_type=jnp.float32)  # (tq, tk)
        qk = qk * inv_t + bias_ref[...]
        attn = jnp.square(jnp.maximum(qk, 0.0)).astype(jnp.bfloat16)
        acc_sc[...] += jnp.dot(attn, v, preferred_element_type=jnp.float32)

        # ---- finalize: gated output projection + residual (+ fused final norm)
        @pl.when(ki == nk - 1)
        def _finalize():
            gated = (acc_sc[...] * u_sc[...]).astype(jnp.bfloat16)
            out = jnp.dot(gated, hw_ref[...],
                          preferred_element_type=jnp.float32) + hb_ref[...]
            out = out + xq_ref[0].astype(jnp.float32)                # residual
            y_ref[0] = out.astype(y_ref.dtype)
            if apply_final_norm:
                yn_ref[0] = _scalenorm(out, scale_ref[1]).astype(yn_ref.dtype)

    return kernel


# ----------------------------- pallas_call glue ----------------------------- #

def _pick_tile(T):
    # Tile when T is a clean multiple of 128, otherwise fall back to one block.
    return 128 if (T >= 128 and T % 128 == 0) else T


def gau_layer(x, p, rel_bias, scales, *, apply_final_norm=False):
    B, T, D = x.shape
    H = p["hw"].shape[0]
    Z = p["gb"].shape[1]
    tq = tk = _pick_tile(T)
    nq, nk = T // tq, T // tk

    def full_spec(a):
        return pl.BlockSpec(a.shape, lambda b, qi, ki, _n=a.ndim: (0,) * _n)

    xq_spec = pl.BlockSpec((1, tq, D), lambda b, qi, ki: (b, qi, 0))
    xk_spec = pl.BlockSpec((1, tk, D), lambda b, qi, ki: (b, ki, 0))
    bias_spec = pl.BlockSpec((tq, tk), lambda b, qi, ki: (qi, ki))
    smem_spec = pl.BlockSpec(memory_space=pltpu.MemorySpace.SMEM)
    y_spec = pl.BlockSpec((1, tq, D), lambda b, qi, ki: (b, qi, 0))

    in_specs = [xq_spec, xk_spec,
                full_spec(p["wuz"]), full_spec(p["buz"]),
                full_spec(p["wvz"]), full_spec(p["bvz"]),
                full_spec(p["hw"]), full_spec(p["hb"]), full_spec(p["gb"]),
                bias_spec, smem_spec]

    if apply_final_norm:
        out_shape = (jax.ShapeDtypeStruct((B, T, D), x.dtype),
                     jax.ShapeDtypeStruct((B, T, D), jnp.float32))
        out_specs = (y_spec,
                     pl.BlockSpec((1, tq, D), lambda b, qi, ki: (b, qi, 0)))
    else:
        out_shape = jax.ShapeDtypeStruct((B, T, D), x.dtype)
        out_specs = y_spec

    kernel = _make_gau_kernel(T, apply_final_norm)

    return pl.pallas_call(
        kernel,
        out_shape=out_shape,
        grid=(B, nq, nk),
        in_specs=in_specs,
        out_specs=out_specs,
        scratch_shapes=[pltpu.VMEM((tq, H), jnp.float32),    # u  (query tile)
                        pltpu.VMEM((tq, Z), jnp.bfloat16),   # q  (query tile)
                        pltpu.VMEM((tq, H), jnp.float32)],   # h accumulator
        compiler_params=pltpu.CompilerParams(
            dimension_semantics=("parallel", "parallel", "arbitrary"),
            vmem_limit_bytes=48 * 1024 * 1024),   # sized for v7x's 64 MiB VMEM
    )(x, x, p["wuz"], p["buz"], p["wvz"], p["bvz"], p["hw"], p["hb"], p["gb"],
      rel_bias, scales)


# ----------------------------- parameters ----------------------------------- #

def init_params(key, vocab_size, padding_idx, num_layers, D, H, Z, max_seq_len):
    keys = jax.random.split(key, 1 + num_layers)
    # nn.Embedding with std = embedding_dim ** -0.5, padding row zeroed.
    embed = jax.random.normal(keys[0], (vocab_size, D), jnp.float32) * (D ** -0.5)
    embed = embed.at[padding_idx].set(0.0)

    layers = []
    std = 0.02
    for i in range(num_layers):
        k = jax.random.split(keys[1 + i], 6)
        wu = jax.random.normal(k[0], (D, H), jnp.float32) * std
        wv = jax.random.normal(k[1], (D, H), jnp.float32) * std
        wz = jax.random.normal(k[2], (D, Z), jnp.float32) * std
        hw = jax.random.normal(k[3], (H, D), jnp.float32) * std
        gamma = jax.random.normal(k[4], (2, Z), jnp.float32) * std
        beta = jnp.zeros((2, Z), jnp.float32)
        layers.append(dict(
            # packed, lane-dense bf16 weights for the MXU
            wuz=jnp.concatenate([wu, wz], axis=1).astype(jnp.bfloat16),  # (D, H+Z)
            wvz=jnp.concatenate([wv, wz], axis=1).astype(jnp.bfloat16),  # (D, H+Z)
            buz=jnp.zeros((1, H + Z), jnp.float32),
            bvz=jnp.zeros((1, H + Z), jnp.float32),
            hw=hw.astype(jnp.bfloat16),                                  # (H, D)
            hb=jnp.zeros((1, D), jnp.float32),
            gb=jnp.concatenate([gamma, beta], axis=0),                   # (4, Z)
            rel_pos=jax.random.normal(k[5], (2 * max_seq_len - 1,),
                                      jnp.float32) * std,
            scale=jnp.float32(1.0),          # per-layer ScaleNorm scalar
        ))
    return dict(embed=embed, layers=layers, final_scale=jnp.float32(1.0))


# ----------------------------- forward -------------------------------------- #

def flash_lra_encoder_forward(tokens, src_lengths, params, *, max_seq_len,
                              sen_rep_type="cls", last_state_only=False):
    B, T = tokens.shape
    num_layers = len(params["layers"])
    assert num_layers >= 1

    # sparse embedding lookup (glue); matmul path runs in bf16
    x = params["embed"][tokens].astype(jnp.bfloat16)         # (B, T, D)
    # dropout p=0.0 -> identity
    # Reference fast path: no padding tokens present -> padding_mask = None.

    states = []                                              # batch-major
    if not last_state_only:
        states.append(x)

    r = jnp.arange(T)
    idx = (max_seq_len - 1) + (r[None, :] - r[:, None])      # Toeplitz offsets

    x_norm = None
    for li, layer in enumerate(params["layers"]):
        rel_bias = layer["rel_pos"][idx].astype(jnp.float32)  # (T, T) in HBM
        scales = jnp.stack([layer["scale"], params["final_scale"]]).astype(jnp.float32)
        is_last = li == num_layers - 1
        out = gau_layer(x, layer, rel_bias, scales, apply_final_norm=is_last)
        if is_last:
            x, x_norm = out        # pre-norm output (for states) + final-normed
        else:
            x = out
        if not last_state_only:
            states.append(x)

    xf = x_norm                                               # (B, T, D) f32
    if sen_rep_type == "mp":
        sentence_rep = jnp.sum(xf, axis=1) / src_lengths[:, None]
    else:  # 'cls'
        sentence_rep = xf[:, 0, :]                            # B x C

    if last_state_only:
        inner_states = [jnp.transpose(xf, (1, 0, 2))]
    else:
        # transpose to the reference T x B x C layout only at the very end
        inner_states = [jnp.transpose(s, (1, 0, 2)) for s in states]
    return inner_states, sentence_rep


# ----------------------------- main ----------------------------------------- #

if __name__ == "__main__":
    key = jax.random.PRNGKey(0)
    B, T = 2, 256
    vocab_size, padding_idx = 20, 0
    D, H, Z = 128, 256, 128        # embedding_dim, hidden_dim, z_dim (lane-dense)
    num_layers = 2
    max_seq_len = 256

    pkey, tkey = jax.random.split(key)
    params = init_params(pkey, vocab_size, padding_idx, num_layers, D, H, Z,
                         max_seq_len)
    # tokens in [1, vocab) -> no padding tokens (padding_mask=None branch)
    tokens = jax.random.randint(tkey, (B, T), 1, vocab_size, dtype=jnp.int32)
    src_lengths = jnp.full((B,), T, jnp.float32)

    inner_states, sentence_rep = flash_lra_encoder_forward(
        tokens, src_lengths, params, max_seq_len=max_seq_len)

    sentence_rep = jax.block_until_ready(sentence_rep)
    inner_states = [jax.block_until_ready(s) for s in inner_states]

    assert sentence_rep.shape == (B, D)
    assert bool(jnp.all(jnp.isfinite(sentence_rep)))
    assert len(inner_states) == num_layers + 1
    assert all(s.shape == (T, B, D) for s in inner_states)
    assert all(bool(jnp.all(jnp.isfinite(s.astype(jnp.float32)))) for s in inner_states)
    print("KERNEL_OK")
</pallas_src>

<mosaic_0001>
module attributes {stable_mosaic.version = 11 : i64} {
  func.func @kernel(%arg0: i32, %arg1: i32, %arg2: i32, %arg3: memref<1x128x128xbf16, #tpu.memory_space<vmem>>, %arg4: memref<1x128x128xbf16, #tpu.memory_space<vmem>>, %arg5: memref<128x384xbf16, #tpu.memory_space<vmem>>, %arg6: memref<1x384xf32, #tpu.memory_space<vmem>>, %arg7: memref<128x384xbf16, #tpu.memory_space<vmem>>, %arg8: memref<1x384xf32, #tpu.memory_space<vmem>>, %arg9: memref<256x128xbf16, #tpu.memory_space<vmem>>, %arg10: memref<1x128xf32, #tpu.memory_space<vmem>>, %arg11: memref<4x128xf32, #tpu.memory_space<vmem>>, %arg12: memref<128x128xf32, #tpu.memory_space<vmem>>, %arg13: memref<2xf32, #tpu.memory_space<smem>>, %arg14: memref<1x128x128xbf16, #tpu.memory_space<vmem>>, %arg15: memref<128x256xf32, #tpu.memory_space<vmem>>, %arg16: memref<128x128xbf16, #tpu.memory_space<vmem>>, %arg17: memref<128x256xf32, #tpu.memory_space<vmem>>) attributes {dimension_semantics = [#tpu.dimension_semantics<parallel>, #tpu.dimension_semantics<parallel>, #tpu.dimension_semantics<arbitrary>], iteration_bounds = array<i64: 2, 2, 2>, scalar_prefetch = 0 : i64, scratch_operands = 3 : i64, tpu.core_type = #tpu.core_type<tc>, window_params = [{transform_indices = @transform_0, window_bounds = array<i64: 1, 128, 128>}, {transform_indices = @transform_1, window_bounds = array<i64: 1, 128, 128>}, {pipeline_mode = #tpu.pipeline_mode<synchronous>, transform_indices = @transform_2, window_bounds = array<i64: 128, 384>}, {pipeline_mode = #tpu.pipeline_mode<synchronous>, transform_indices = @transform_3, window_bounds = array<i64: 1, 384>}, {pipeline_mode = #tpu.pipeline_mode<synchronous>, transform_indices = @transform_4, window_bounds = array<i64: 128, 384>}, {pipeline_mode = #tpu.pipeline_mode<synchronous>, transform_indices = @transform_5, window_bounds = array<i64: 1, 384>}, {pipeline_mode = #tpu.pipeline_mode<synchronous>, transform_indices = @transform_6, window_bounds = array<i64: 256, 128>}, {pipeline_mode = #tpu.pipeline_mode<synchronous>, transform_indices = @transform_7, window_bounds = array<i64: 1, 128>}, {pipeline_mode = #tpu.pipeline_mode<synchronous>, transform_indices = @transform_8, window_bounds = array<i64: 4, 128>}, {transform_indices = @transform_9, window_bounds = array<i64: 128, 128>}, {transform_indices = @transform_10, window_bounds = array<i64: 2>}, {transform_indices = @transform_11, window_bounds = array<i64: 1, 128, 128>}]} {
    %c0_i32 = arith.constant 0 : i32
    %0 = arith.cmpi eq, %arg2, %c0_i32 : i32
    %1 = arith.extui %0 : i1 to i32
    %c0_i32_0 = arith.constant 0 : i32
    %2 = arith.cmpi ne, %1, %c0_i32_0 : i32
    scf.if %2 {
      %c0_27 = arith.constant 0 : index
      %c0_28 = arith.constant 0 : index
      %c0_29 = arith.constant 0 : index
      %58 = vector.load %arg3[%c0_27, %c0_28, %c0_29] : memref<1x128x128xbf16, #tpu.memory_space<vmem>>, vector<1x128x128xbf16>
      %59 = vector.shape_cast %58 : vector<1x128x128xbf16> to vector<128x128xbf16>
      %60 = arith.extf %59 : vector<128x128xbf16> to vector<128x128xf32>
      %c0_30 = arith.constant 0 : index
      %61 = memref.load %arg13[%c0_30] : memref<2xf32, #tpu.memory_space<smem>>
      %62 = arith.mulf %60, %60 : vector<128x128xf32>
      %cst_31 = arith.constant dense<0.000000e+00> : vector<128xf32>
      %63 = vector.multi_reduction <add>, %62, %cst_31 [1] : vector<128x128xf32> to vector<128xf32>
      %64 = vector.shape_cast %63 : vector<128xf32> to vector<128x1xf32>
      %cst_32 = arith.constant 1.280000e+02 : f32
      %65 = vector.broadcast %cst_32 : f32 to vector<128x1xf32>
      %66 = arith.divf %64, %65 : vector<128x1xf32>
      %67 = vector.broadcast %61 : f32 to vector<128x128xf32>
      %68 = arith.mulf %67, %60 : vector<128x128xf32>
      %cst_33 = arith.constant 9.99999997E-7 : f32
      %69 = vector.broadcast %cst_33 : f32 to vector<128x1xf32>
      %70 = arith.addf %66, %69 : vector<128x1xf32>
      %71 = math.rsqrt %70 : vector<128x1xf32>
      %72 = vector.broadcast %71 : vector<128x1xf32> to vector<128x128xf32>
      %73 = arith.mulf %68, %72 : vector<128x128xf32>
      %74 = arith.truncf %73 : vector<128x128xf32> to vector<128x128xbf16>
      %c0_34 = arith.constant 0 : index
      %c0_35 = arith.constant 0 : index
      %75 = vector.load %arg5[%c0_34, %c0_35] : memref<128x384xbf16, #tpu.memory_space<vmem>>, vector<128x384xbf16>
      %cst_36 = arith.constant dense<0.000000e+00> : vector<128x384xf32>
      %76 = tpu.matmul %74, %75, %cst_36 {dimension_numbers = #tpu.dot_dimension_numbers<[1], [0], [0], [1], [0, 0, 1, 1], [], []>} : vector<128x128xbf16>, vector<128x384xbf16>, vector<128x384xf32> -> vector<128x384xf32>
      %c0_37 = arith.constant 0 : index
      %c0_38 = arith.constant 0 : index
      %77 = vector.load %arg6[%c0_37, %c0_38] : memref<1x384xf32, #tpu.memory_space<vmem>>, vector<1x384xf32>
      %78 = vector.broadcast %77 : vector<1x384xf32> to vector<128x384xf32>
      %79 = arith.addf %76, %78 : vector<128x384xf32>
      %80 = arith.negf %79 : vector<128x384xf32>
      %81 = math.exp %80 : vector<128x384xf32>
      %cst_39 = arith.constant 1.000000e+00 : f32
      %82 = vector.broadcast %cst_39 : f32 to vector<128x384xf32>
      %83 = arith.addf %82, %81 : vector<128x384xf32>
      %84 = arith.divf %82, %83 : vector<128x384xf32>
      %85 = arith.mulf %79, %84 : vector<128x384xf32>
      %86 = vector.extract_strided_slice %85 {offsets = [0, 0], sizes = [128, 256], strides = [1, 1]} : vector<128x384xf32> to vector<128x256xf32>
      %c0_40 = arith.constant 0 : index
      %c0_41 = arith.constant 0 : index
      %87 = vector.load %arg15[%c0_40, %c0_41] : memref<128x256xf32, #tpu.memory_space<vmem>>, vector<128x256xf32>
      tpu.vector_store %arg15[%c0_40, %c0_41], %86 {strides = array<i32>} : memref<128x256xf32, #tpu.memory_space<vmem>>, vector<128x256xf32>,
      %88 = vector.extract_strided_slice %85 {offsets = [0, 256], sizes = [128, 128], strides = [1, 1]} : vector<128x384xf32> to vector<128x128xf32>
      %c0_42 = arith.constant 0 : index
      %c0_43 = arith.constant 0 : index
      %89 = vector.load %arg11[%c0_42, %c0_43] : memref<4x128xf32, #tpu.memory_space<vmem>>, vector<1x128xf32>
      %90 = vector.broadcast %89 : vector<1x128xf32> to vector<128x128xf32>
      %91 = arith.mulf %88, %90 : vector<128x128xf32>
      %c2 = arith.constant 2 : index
      %c0_44 = arith.constant 0 : index
      %92 = vector.load %arg11[%c2, %c0_44] : memref<4x128xf32, #tpu.memory_space<vmem>>, vector<1x128xf32>
      %93 = vector.broadcast %92 : vector<1x128xf32> to vector<128x128xf32>
      %94 = arith.addf %91, %93 : vector<128x128xf32>
      %95 = arith.truncf %94 : vector<128x128xf32> to vector<128x128xbf16>
      %c0_45 = arith.constant 0 : index
      %c0_46 = arith.constant 0 : index
      %96 = vector.load %arg16[%c0_45, %c0_46] : memref<128x128xbf16, #tpu.memory_space<vmem>>, vector<128x128xbf16>
      tpu.vector_store %arg16[%c0_45, %c0_46], %95 {strides = array<i32>} : memref<128x128xbf16, #tpu.memory_space<vmem>>, vector<128x128xbf16>,
      %cst_47 = arith.constant 0.000000e+00 : f32
      %97 = vector.broadcast %cst_47 : f32 to vector<128x256xf32>
      %c0_48 = arith.constant 0 : index
      %c0_49 = arith.constant 0 : index
      %98 = vector.load %arg17[%c0_48, %c0_49] : memref<128x256xf32, #tpu.memory_space<vmem>>, vector<128x256xf32>
      tpu.vector_store %arg17[%c0_48, %c0_49], %97 {strides = array<i32>} : memref<128x256xf32, #tpu.memory_space<vmem>>, vector<128x256xf32>,
    } else {
    }
    %c0 = arith.constant 0 : index
    %c0_1 = arith.constant 0 : index
    %c0_2 = arith.constant 0 : index
    %3 = vector.load %arg4[%c0, %c0_1, %c0_2] : memref<1x128x128xbf16, #tpu.memory_space<vmem>>, vector<1x128x128xbf16>
    %4 = vector.shape_cast %3 : vector<1x128x128xbf16> to vector<128x128xbf16>
    %5 = arith.extf %4 : vector<128x128xbf16> to vector<128x128xf32>
    %c0_3 = arith.constant 0 : index
    %6 = memref.load %arg13[%c0_3] : memref<2xf32, #tpu.memory_space<smem>>
    %7 = arith.mulf %5, %5 : vector<128x128xf32>
    %cst = arith.constant dense<0.000000e+00> : vector<128xf32>
    %8 = vector.multi_reduction <add>, %7, %cst [1] : vector<128x128xf32> to vector<128xf32>
    %9 = vector.shape_cast %8 : vector<128xf32> to vector<128x1xf32>
    %cst_4 = arith.constant 1.280000e+02 : f32
    %10 = vector.broadcast %cst_4 : f32 to vector<128x1xf32>
    %11 = arith.divf %9, %10 : vector<128x1xf32>
    %12 = vector.broadcast %6 : f32 to vector<128x128xf32>
    %13 = arith.mulf %12, %5 : vector<128x128xf32>
    %cst_5 = arith.constant 9.99999997E-7 : f32
    %14 = vector.broadcast %cst_5 : f32 to vector<128x1xf32>
    %15 = arith.addf %11, %14 : vector<128x1xf32>
    %16 = math.rsqrt %15 : vector<128x1xf32>
    %17 = vector.broadcast %16 : vector<128x1xf32> to vector<128x128xf32>
    %18 = arith.mulf %13, %17 : vector<128x128xf32>
    %19 = arith.truncf %18 : vector<128x128xf32> to vector<128x128xbf16>
    %c0_6 = arith.constant 0 : index
    %c0_7 = arith.constant 0 : index
    %20 = vector.load %arg7[%c0_6, %c0_7] : memref<128x384xbf16, #tpu.memory_space<vmem>>, vector<128x384xbf16>
    %cst_8 = arith.constant dense<0.000000e+00> : vector<128x384xf32>
    %21 = tpu.matmul %19, %20, %cst_8 {dimension_numbers = #tpu.dot_dimension_numbers<[1], [0], [0], [1], [0, 0, 1, 1], [], []>} : vector<128x128xbf16>, vector<128x384xbf16>, vector<128x384xf32> -> vector<128x384xf32>
    %c0_9 = arith.constant 0 : index
    %c0_10 = arith.constant 0 : index
    %22 = vector.load %arg8[%c0_9, %c0_10] : memref<1x384xf32, #tpu.memory_space<vmem>>, vector<1x384xf32>
    %23 = vector.broadcast %22 : vector<1x384xf32> to vector<128x384xf32>
    %24 = arith.addf %21, %23 : vector<128x384xf32>
    %25 = arith.negf %24 : vector<128x384xf32>
    %26 = math.exp %25 : vector<128x384xf32>
    %cst_11 = arith.constant 1.000000e+00 : f32
    %27 = vector.broadcast %cst_11 : f32 to vector<128x384xf32>
    %28 = arith.addf %27, %26 : vector<128x384xf32>
    %29 = arith.divf %27, %28 : vector<128x384xf32>
    %30 = arith.mulf %24, %29 : vector<128x384xf32>
    %31 = vector.extract_strided_slice %30 {offsets = [0, 0], sizes = [128, 256], strides = [1, 1]} : vector<128x384xf32> to vector<128x256xf32>
    %32 = arith.truncf %31 : vector<128x256xf32> to vector<128x256xbf16>
    %33 = vector.extract_strided_slice %30 {offsets = [0, 256], sizes = [128, 128], strides = [1, 1]} : vector<128x384xf32> to vector<128x128xf32>
    %c1 = arith.constant 1 : index
    %c0_12 = arith.constant 0 : index
    %34 = vector.load %arg11[%c1, %c0_12] : memref<4x128xf32, #tpu.memory_space<vmem>>, vector<1x128xf32>
    %35 = vector.broadcast %34 : vector<1x128xf32> to vector<128x128xf32>
    %36 = arith.mulf %33, %35 : vector<128x128xf32>
    %c3 = arith.constant 3 : index
    %c0_13 = arith.constant 0 : index
    %37 = vector.load %arg11[%c3, %c0_13] : memref<4x128xf32, #tpu.memory_space<vmem>>, vector<1x128xf32>
    %38 = vector.broadcast %37 : vector<1x128xf32> to vector<128x128xf32>
    %39 = arith.addf %36, %38 : vector<128x128xf32>
    %40 = arith.truncf %39 : vector<128x128xf32> to vector<128x128xbf16>
    %c0_14 = arith.constant 0 : index
    %c0_15 = arith.constant 0 : index
    %41 = vector.load %arg16[%c0_14, %c0_15] : memref<128x128xbf16, #tpu.memory_space<vmem>>, vector<128x128xbf16>
    %cst_16 = arith.constant dense<0.000000e+00> : vector<128x128xf32>
    %42 = tpu.matmul %41, %40, %cst_16 {dimension_numbers = #tpu.dot_dimension_numbers<[1], [1], [0], [0], [0, 0, 1, 0], [], []>} : vector<128x128xbf16>, vector<128x128xbf16>, vector<128x128xf32> -> vector<128x128xf32>
    %cst_17 = arith.constant 3.906250e-03 : f32
    %43 = vector.broadcast %cst_17 : f32 to vector<128x128xf32>
    %44 = arith.mulf %42, %43 : vector<128x128xf32>
    %c0_18 = arith.constant 0 : index
    %c0_19 = arith.constant 0 : index
    %45 = vector.load %arg12[%c0_18, %c0_19] : memref<128x128xf32, #tpu.memory_space<vmem>>, vector<128x128xf32>
    %46 = arith.addf %44, %45 : vector<128x128xf32>
    %cst_20 = arith.constant 0.000000e+00 : f32
    %47 = vector.broadcast %cst_20 : f32 to vector<128x128xf32>
    %48 = arith.maximumf %46, %47 : vector<128x128xf32>
    %49 = arith.mulf %48, %48 : vector<128x128xf32>
    %50 = arith.truncf %49 : vector<128x128xf32> to vector<128x128xbf16>
    %c0_21 = arith.constant 0 : index
    %c0_22 = arith.constant 0 : index
    %51 = vector.load %arg17[%c0_21, %c0_22] : memref<128x256xf32, #tpu.memory_space<vmem>>, vector<128x256xf32>
    %cst_23 = arith.constant dense<0.000000e+00> : vector<128x256xf32>
    %52 = tpu.matmul %50, %32, %cst_23 {dimension_numbers = #tpu.dot_dimension_numbers<[1], [0], [0], [1], [0, 0, 1, 1], [], []>} : vector<128x128xbf16>, vector<128x256xbf16>, vector<128x256xf32> -> vector<128x256xf32>
    %53 = arith.addf %51, %52 : vector<128x256xf32>
    %c0_24 = arith.constant 0 : index
    %c0_25 = arith.constant 0 : index
    %54 = vector.load %arg17[%c0_24, %c0_25] : memref<128x256xf32, #tpu.memory_space<vmem>>, vector<128x256xf32>
    tpu.vector_store %arg17[%c0_24, %c0_25], %53 {strides = array<i32>} : memref<128x256xf32, #tpu.memory_space<vmem>>, vector<128x256xf32>,
    %c1_i32 = arith.constant 1 : i32
    %55 = arith.cmpi eq, %arg2, %c1_i32 : i32
    %56 = arith.extui %55 : i1 to i32
    %c0_i32_26 = arith.constant 0 : i32
    %57 = arith.cmpi ne, %56, %c0_i32_26 : i32
    scf.if %57 {
      %c0_27 = arith.constant 0 : index
      %c0_28 = arith.constant 0 : index
      %58 = vector.load %arg17[%c0_27, %c0_28] : memref<128x256xf32, #tpu.memory_space<vmem>>, vector<128x256xf32>
      %c0_29 = arith.constant 0 : index
      %c0_30 = arith.constant 0 : index
      %59 = vector.load %arg15[%c0_29, %c0_30] : memref<128x256xf32, #tpu.memory_space<vmem>>, vector<128x256xf32>
      %60 = arith.mulf %58, %59 : vector<128x256xf32>
      %61 = arith.truncf %60 : vector<128x256xf32> to vector<128x256xbf16>
      %c0_31 = arith.constant 0 : index
      %c0_32 = arith.constant 0 : index
      %62 = vector.load %arg9[%c0_31, %c0_32] : memref<256x128xbf16, #tpu.memory_space<vmem>>, vector<256x128xbf16>
      %cst_33 = arith.constant dense<0.000000e+00> : vector<128x128xf32>
      %63 = tpu.matmul %61, %62, %cst_33 {dimension_numbers = #tpu.dot_dimension_numbers<[1], [0], [0], [1], [0, 0, 1, 1], [], []>} : vector<128x256xbf16>, vector<256x128xbf16>, vector<128x128xf32> -> vector<128x128xf32>
      %c0_34 = arith.constant 0 : index
      %c0_35 = arith.constant 0 : index
      %64 = vector.load %arg10[%c0_34, %c0_35] : memref<1x128xf32, #tpu.memory_space<vmem>>, vector<1x128xf32>
      %65 = vector.broadcast %64 : vector<1x128xf32> to vector<128x128xf32>
      %66 = arith.addf %63, %65 : vector<128x128xf32>
      %c0_36 = arith.constant 0 : index
      %c0_37 = arith.constant 0 : index
      %c0_38 = arith.constant 0 : index
      %67 = vector.load %arg3[%c0_36, %c0_37, %c0_38] : memref<1x128x128xbf16, #tpu.memory_space<vmem>>, vector<1x128x128xbf16>
      %68 = vector.shape_cast %67 : vector<1x128x128xbf16> to vector<128x128xbf16>
      %69 = arith.extf %68 : vector<128x128xbf16> to vector<128x128xf32>
      %70 = arith.addf %66, %69 : vector<128x128xf32>
      %71 = arith.truncf %70 : vector<128x128xf32> to vector<128x128xbf16>
      %c0_39 = arith.constant 0 : index
      %c0_40 = arith.constant 0 : index
      %c0_41 = arith.constant 0 : index
      %72 = vector.load %arg14[%c0_39, %c0_40, %c0_41] : memref<1x128x128xbf16, #tpu.memory_space<vmem>>, vector<1x128x128xbf16>
      %73 = vector.shape_cast %72 : vector<1x128x128xbf16> to vector<128x128xbf16>
      %74 = vector.shape_cast %71 : vector<128x128xbf16> to vector<1x128x128xbf16>
      tpu.vector_store %arg14[%c0_39, %c0_40, %c0_41], %74 {strides = array<i32>} : memref<1x128x128xbf16, #tpu.memory_space<vmem>>, vector<1x128x128xbf16>,
    } else {
    }
    return
  }
  func.func @transform_0(%arg0: i32, %arg1: i32, %arg2: i32) -> (i32, i32, i32) {
    %c0_i32 = arith.constant 0 : i32
    %c0_i32_0 = arith.constant 0 : i32
    return %arg0, %arg1, %c0_i32 : i32, i32, i32
  }
  func.func @transform_1(%arg0: i32, %arg1: i32, %arg2: i32) -> (i32, i32, i32) {
    %c0_i32 = arith.constant 0 : i32
    %c0_i32_0 = arith.constant 0 : i32
    return %arg0, %arg2, %c0_i32 : i32, i32, i32
  }
  func.func @transform_2(%arg0: i32, %arg1: i32, %arg2: i32) -> (i32, i32) {
    %c0_i32 = arith.constant 0 : i32
    %c0_i32_0 = arith.constant 0 : i32
    %c0_i32_1 = arith.constant 0 : i32
    return %c0_i32, %c0_i32_0 : i32, i32
  }
  func.func @transform_3(%arg0: i32, %arg1: i32, %arg2: i32) -> (i32, i32) {
    %c0_i32 = arith.constant 0 : i32
    %c0_i32_0 = arith.constant 0 : i32
    %c0_i32_1 = arith.constant 0 : i32
    return %c0_i32, %c0_i32_0 : i32, i32
  }
  func.func @transform_4(%arg0: i32, %arg1: i32, %arg2: i32) -> (i32, i32) {
    %c0_i32 = arith.constant 0 : i32
    %c0_i32_0 = arith.constant 0 : i32
    %c0_i32_1 = arith.constant 0 : i32
    return %c0_i32, %c0_i32_0 : i32, i32
  }
  func.func @transform_5(%arg0: i32, %arg1: i32, %arg2: i32) -> (i32, i32) {
    %c0_i32 = arith.constant 0 : i32
    %c0_i32_0 = arith.constant 0 : i32
    %c0_i32_1 = arith.constant 0 : i32
    return %c0_i32, %c0_i32_0 : i32, i32
  }
  func.func @transform_6(%arg0: i32, %arg1: i32, %arg2: i32) -> (i32, i32) {
    %c0_i32 = arith.constant 0 : i32
    %c0_i32_0 = arith.constant 0 : i32
    %c0_i32_1 = arith.constant 0 : i32
    return %c0_i32, %c0_i32_0 : i32, i32
  }
  func.func @transform_7(%arg0: i32, %arg1: i32, %arg2: i32) -> (i32, i32) {
    %c0_i32 = arith.constant 0 : i32
    %c0_i32_0 = arith.constant 0 : i32
    %c0_i32_1 = arith.constant 0 : i32
    return %c0_i32, %c0_i32_0 : i32, i32
  }
  func.func @transform_8(%arg0: i32, %arg1: i32, %arg2: i32) -> (i32, i32) {
    %c0_i32 = arith.constant 0 : i32
    %c0_i32_0 = arith.constant 0 : i32
    %c0_i32_1 = arith.constant 0 : i32
    return %c0_i32, %c0_i32_0 : i32, i32
  }
  func.func @transform_9(%arg0: i32, %arg1: i32, %arg2: i32) -> (i32, i32) {
    %c0_i32 = arith.constant 0 : i32
    return %arg1, %arg2 : i32, i32
  }
  func.func @transform_10(%arg0: i32, %arg1: i32, %arg2: i32) -> i32 {
    %c0_i32 = arith.constant 0 : i32
    %c0_i32_0 = arith.constant 0 : i32
    return %c0_i32 : i32
  }
  func.func @transform_11(%arg0: i32, %arg1: i32, %arg2: i32) -> (i32, i32, i32) {
    %c0_i32 = arith.constant 0 : i32
    %c0_i32_0 = arith.constant 0 : i32
    return %arg0, %arg1, %c0_i32 : i32, i32, i32
  }
}

</mosaic_0001>

<llo_original>
// kernel: tpu_custom_call.1
$region0: #{tpu_custom_call.1}
  #allocation0 [shape = 'u32[]', space=smem, size = 0x4, offset = 0x4, fixed_abs, tag = 'smem constant byte address 0x4 - core index']
  #allocation1 [shape = 'u32[144,128]{1,0:T(1,128)}', space=vmem, size = 0x12000, scoped, tag = 'internal scratch']
  #allocation2 [shape = 'f32[128,256]{1,0:T(8,128)}', space=vmem, size = 0x20000, scoped, tag = 'scratch operand']
  #allocation3 [shape = 'bf16[128,128]{1,0:T(16,128)(2,1)}', space=vmem, size = 0x8000, scoped, tag = 'scratch operand']
  #allocation4 [shape = 'f32[128,256]{1,0:T(8,128)}', space=vmem, size = 0x20000, scoped, tag = 'scratch operand']
  %s0 = inlined_call_operand.hbm [shape: bf16[2,256,128], index: 0, kind: input, shape index: {}]
  %s1 = inlined_call_operand.hbm [shape: bf16[2,256,128], index: 1, kind: input, shape index: {}]
  %s2 = inlined_call_operand.hbm [shape: bf16[128,384], index: 2, kind: input, shape index: {}]
  %s3 = inlined_call_operand.vmem [shape: f32[1,384], index: 3, kind: input, shape index: {}]
  %s4 = inlined_call_operand.hbm [shape: bf16[128,384], index: 4, kind: input, shape index: {}]
  %s5 = inlined_call_operand.vmem [shape: f32[1,384], index: 5, kind: input, shape index: {}]
  %s6 = inlined_call_operand.hbm [shape: bf16[256,128], index: 6, kind: input, shape index: {}]
  %s7 = inlined_call_operand.vmem [shape: f32[1,128], index: 7, kind: input, shape index: {}]
  %s8 = inlined_call_operand.vmem [shape: f32[4,128], index: 8, kind: input, shape index: {}]
  %s9 = inlined_call_operand.hbm [shape: f32[256,256], index: 9, kind: input, shape index: {}]
  %s10 = inlined_call_operand.vmem [shape: f32[2], index: 10, kind: input, shape index: {}]
  %s11 = inlined_call_operand.hbm [shape: bf16[2,256,128], index: 11, kind: output, shape index: {}]
  %s12 = sld [smem:[#allocation0]]
  $region113: #{tpu_custom_call.1} parent=0
    _
  %s14 = ssub.s32 1, %s12
  %s15 = scalar_select 0, %s14, %s12
  $region1: #{tpu_custom_call.1} parent=0
    #allocation5 [shape = 'u8[65536]{0}', space=vmem, size = 0x10000, scoped, tag = 'input window, operand 0']
    #allocation6 [shape = 's32[2]{0}', space=sflag, size = 0x8, scoped, tag = 'scoped memory for tpu_custom_call.1']
    #allocation7 [shape = 's32[2]{0}', space=sflag, size = 0x8, scoped, tag = 'scoped memory for tpu_custom_call.1']
    #allocation8 [shape = 's32[2]{0}', space=sflag, size = 0x8, scoped, tag = 'scoped memory for tpu_custom_call.1']
    #allocation9 [shape = 'u8[65536]{0}', space=vmem, size = 0x10000, scoped, tag = 'input window, operand 1']
    #allocation10 [shape = 's32[2]{0}', space=sflag, size = 0x8, scoped, tag = 'scoped memory for tpu_custom_call.1']
    #allocation11 [shape = 'u8[98304]{0}', space=vmem, size = 0x18000, scoped, tag = 'input window, operand 2, single buffered']
    #allocation12 [shape = 'u8[98304]{0}', space=vmem, size = 0x18000, scoped, tag = 'input window, operand 4, single buffered']
    #allocation13 [shape = 's32[1]{0}', space=sflag, size = 0x4, scoped, tag = 'scoped memory for tpu_custom_call.1']
    #allocation14 [shape = 'u8[65536]{0}', space=vmem, size = 0x10000, scoped, tag = 'input window, operand 6, single buffered']
    #allocation15 [shape = 'u8[131072]{0}', space=vmem, size = 0x20000, scoped, tag = 'input window, operand 9']
    #allocation16 [shape = 's32[2]{0}', space=sflag, size = 0x8, scoped, tag = 'scoped memory for tpu_custom_call.1']
    #allocation17 [shape = 'u8[512]{0}', space=smem, size = 0x200, scoped, tag = 'input window, operand 10, single buffered']
    #allocation18 [shape = 'u8[65536]{0}', space=vmem, size = 0x10000, scoped, tag = 'output window, operand 0']
    %16 = vsyncpa [#allocation6], 0
    %s17 = scalar_lea.sflag [#allocation6], 1
    %18 = vsyncpa %s17, 0
    %19 = vsyncpa [#allocation10], 0
    %s20 = scalar_lea.sflag [#allocation10], 1
    %21 = vsyncpa %s20, 0
    %22 = vsyncpa [#allocation13], 0
    %23 = vsyncpa [#allocation16], 0
    %s24 = scalar_lea.sflag [#allocation16], 1
    %25 = vsyncpa %s24, 0
    %26 = vsyncpa [#allocation8], 0
    %27 = vsyncpa [#allocation7], 0
    %s28 = scalar_lea.sflag [#allocation7], 1
    %29 = vsyncpa %s28, 0
    loop: start=0, step=1, limit=10
    $region2: #{tpu_custom_call.1} parent=1 // loop_pre_header
      _
    $region3: #{tpu_custom_call.1} parent=1 // loop_header
      %s31 = sphi 0, %s35
      %p32 = scmp.ge.s32.totalorder %s31, 10
      %s38 = sphi 0, %s57
      %s39 = sphi 0, %s53
      %s40 = sphi 0, %s49
      %s41 = sphi 0, %s38
      %s42 = sphi 0, %s39
      %s43 = sphi 0, %s40
      %s44 = sphi 0, %s41
      %s45 = sphi 0, %s42
      %s46 = sphi 0, %s43
      %s62 = sphi 0, %s64
      %s65 = sphi 0, %s62
      %s66 = sphi 0, %s65
      %s82 = sphi 0, %s66
      %s90 = sphi 0, %s92
      %s93 = sphi 0, %s90
      %s94 = sphi 0, %s93
      %s110 = sphi 0, %s94
      %s114 = sphi 0, %s114
      %s116 = sphi 0, %s114
      %s117 = sphi 0, %s116
      %s131 = sphi 0, %s117
      %s135 = sphi 0, %s135
      %s137 = sphi 0, %s135
      %s138 = sphi 0, %s137
      %s152 = sphi 0, %s138
      %s156 = sphi 0, %s156
      %s158 = sphi 0, %s156
      %s159 = sphi 0, %s158
      %s173 = sphi 0, %s159
      %s177 = sphi 0, %s177
      %s179 = sphi 0, %s177
      %s180 = sphi 0, %s179
      %s194 = sphi 0, %s180
      %s198 = sphi 0, %s198
      %s200 = sphi 0, %s198
      %s201 = sphi 0, %s200
      %s215 = sphi 0, %s201
      %s219 = sphi 0, %s219
      %s221 = sphi 0, %s219
      %s222 = sphi 0, %s221
      %s236 = sphi 0, %s222
      %s240 = sphi 0, %s240
      %s242 = sphi 0, %s240
      %s243 = sphi 0, %s242
      %s257 = sphi 0, %s243
      %s265 = sphi 0, %s267
      %s268 = sphi 0, %s265
      %s269 = sphi 0, %s268
      %s285 = sphi 0, %s269
      %s289 = sphi 0, %s289
      %s291 = sphi 0, %s289
      %s292 = sphi 0, %s291
      %s306 = sphi 0, %s292
      %s314 = sphi 0, %s316
      %s317 = sphi 0, %s314
      %s318 = sphi 0, %s317
      %s334 = sphi 0, %s318
    $region4: #{tpu_custom_call.1} parent=1 // loop_header_branch
      %34 = sbr.rel (%p32) target = $region8
    $region5: #{tpu_custom_call.1} parent=1 // loop_body
      %s36 = ssub.s32 %s31, 1
      %s37 = ssub.s32 %s31, 2
      %s47 = sadd.s32 1, %s40
      %p48 = scmp.ge.s32.totalorder %s47, 2
      %s49 = scalar_select %p48, 0, %s47
      %s50 = sadd.s32 1, %s39
      %s51 = scalar_select %p48, %s50, %s39
      %p52 = scmp.ge.s32.totalorder %s51, 2
      %s53 = scalar_select %p52, 0, %s51
      %s54 = sadd.s32 1, %s38
      %s55 = scalar_select %p52, %s54, %s38
      %p56 = scmp.ge.s32.totalorder %s55, 2
      %s57 = scalar_select %p56, 0, %s55
      %s58 = ssub.s32 %s38, %s57
      %s59 = ssub.s32 %s39, %s53
      %s60 = sor.u32 %s58, %s59
      %p61 = scmp.eq.s32.totalorder %s60, 0
      %s63 = sadd.s32 %s62, 1
      %s64 = scalar_select %p61, %s62, %s63
      %p67 = pneg %p61
      %p68 = scmp.eq.s32.totalorder %s31, 7
      %p69 = por %p67, %p68
      %p70 = scmp.ne.s32.totalorder %s62, %s65
      %p71 = scmp.eq.s32.totalorder %s31, 0
      %p72 = por %p70, %p71
      %p73 = scmp.ne.s32.totalorder %s62, %s65
      %p74 = scmp.eq.s32.totalorder %s36, 7
      %p75 = por %p73, %p74
      %p76 = scmp.ne.s32.totalorder %s65, %s66
      %p77 = scmp.eq.s32.totalorder %s36, 0
      %p78 = por %p76, %p77
      %p79 = scmp.ne.s32.totalorder %s65, %s66
      %p80 = scmp.eq.s32.totalorder %s37, 7
      %p81 = por %p79, %p80
      %p83 = scmp.ne.s32.totalorder %s66, %s82
      %p84 = scmp.eq.s32.totalorder %s37, 0
      %p85 = por %p83, %p84
      %s86 = ssub.s32 %s38, %s57
      %s87 = ssub.s32 %s40, %s49
      %s88 = sor.u32 %s86, %s87
      %p89 = scmp.eq.s32.totalorder %s88, 0
      %s91 = sadd.s32 %s90, 1
      %s92 = scalar_select %p89, %s90, %s91
      %p95 = pneg %p89
      %p96 = scmp.eq.s32.totalorder %s31, 7
      %p97 = por %p95, %p96
      %p98 = scmp.ne.s32.totalorder %s90, %s93
      %p99 = scmp.eq.s32.totalorder %s31, 0
      %p100 = por %p98, %p99
      %p101 = scmp.ne.s32.totalorder %s90, %s93
      %p102 = scmp.eq.s32.totalorder %s36, 7
      %p103 = por %p101, %p102
      %p104 = scmp.ne.s32.totalorder %s93, %s94
      %p105 = scmp.eq.s32.totalorder %s36, 0
      %p106 = por %p104, %p105
      %p107 = scmp.ne.s32.totalorder %s93, %s94
      %p108 = scmp.eq.s32.totalorder %s37, 7
      %p109 = por %p107, %p108
      %p111 = scmp.ne.s32.totalorder %s94, %s110
      %p112 = scmp.eq.s32.totalorder %s37, 0
      %p113 = por %p111, %p112
      %s115 = sadd.s32 %s114, 1
      %p118 = scmp.eq.s32.totalorder %s31, 7
      %p119 = scmp.ne.s32.totalorder %s114, %s116
      %p120 = scmp.eq.s32.totalorder %s31, 0
      %p121 = por %p119, %p120
      %p122 = scmp.ne.s32.totalorder %s114, %s116
      %p123 = scmp.eq.s32.totalorder %s36, 7
      %p124 = por %p122, %p123
      %p125 = scmp.ne.s32.totalorder %s116, %s117
      %p126 = scmp.eq.s32.totalorder %s36, 0
      %p127 = por %p125, %p126
      %p128 = scmp.ne.s32.totalorder %s116, %s117
      %p129 = scmp.eq.s32.totalorder %s37, 7
      %p130 = por %p128, %p129
      %p132 = scmp.ne.s32.totalorder %s117, %s131
      %p133 = scmp.eq.s32.totalorder %s37, 0
      %p134 = por %p132, %p133
      %s136 = sadd.s32 %s135, 1
      %p139 = scmp.eq.s32.totalorder %s31, 7
      %p140 = scmp.ne.s32.totalorder %s135, %s137
      %p141 = scmp.eq.s32.totalorder %s31, 0
      %p142 = por %p140, %p141
      %p143 = scmp.ne.s32.totalorder %s135, %s137
      %p144 = scmp.eq.s32.totalorder %s36, 7
      %p145 = por %p143, %p144
      %p146 = scmp.ne.s32.totalorder %s137, %s138
      %p147 = scmp.eq.s32.totalorder %s36, 0
      %p148 = por %p146, %p147
      %p149 = scmp.ne.s32.totalorder %s137, %s138
      %p150 = scmp.eq.s32.totalorder %s37, 7
      %p151 = por %p149, %p150
      %p153 = scmp.ne.s32.totalorder %s138, %s152
      %p154 = scmp.eq.s32.totalorder %s37, 0
      %p155 = por %p153, %p154
      %s157 = sadd.s32 %s156, 1
      %p160 = scmp.eq.s32.totalorder %s31, 7
      %p161 = scmp.ne.s32.totalorder %s156, %s158
      %p162 = scmp.eq.s32.totalorder %s31, 0
      %p163 = por %p161, %p162
      %p164 = scmp.ne.s32.totalorder %s156, %s158
      %p165 = scmp.eq.s32.totalorder %s36, 7
      %p166 = por %p164, %p165
      %p167 = scmp.ne.s32.totalorder %s158, %s159
      %p168 = scmp.eq.s32.totalorder %s36, 0
      %p169 = por %p167, %p168
      %p170 = scmp.ne.s32.totalorder %s158, %s159
      %p171 = scmp.eq.s32.totalorder %s37, 7
      %p172 = por %p170, %p171
      %p174 = scmp.ne.s32.totalorder %s159, %s173
      %p175 = scmp.eq.s32.totalorder %s37, 0
      %p176 = por %p174, %p175
      %s178 = sadd.s32 %s177, 1
      %p181 = scmp.eq.s32.totalorder %s31, 7
      %p182 = scmp.ne.s32.totalorder %s177, %s179
      %p183 = scmp.eq.s32.totalorder %s31, 0
      %p184 = por %p182, %p183
      %p185 = scmp.ne.s32.totalorder %s177, %s179
      %p186 = scmp.eq.s32.totalorder %s36, 7
      %p187 = por %p185, %p186
      %p188 = scmp.ne.s32.totalorder %s179, %s180
      %p189 = scmp.eq.s32.totalorder %s36, 0
      %p190 = por %p188, %p189
      %p191 = scmp.ne.s32.totalorder %s179, %s180
      %p192 = scmp.eq.s32.totalorder %s37, 7
      %p193 = por %p191, %p192
      %p195 = scmp.ne.s32.totalorder %s180, %s194
      %p196 = scmp.eq.s32.totalorder %s37, 0
      %p197 = por %p195, %p196
      %s199 = sadd.s32 %s198, 1
      %p202 = scmp.eq.s32.totalorder %s31, 7
      %p203 = scmp.ne.s32.totalorder %s198, %s200
      %p204 = scmp.eq.s32.totalorder %s31, 0
      %p205 = por %p203, %p204
      %p206 = scmp.ne.s32.totalorder %s198, %s200
      %p207 = scmp.eq.s32.totalorder %s36, 7
      %p208 = por %p206, %p207
      %p209 = scmp.ne.s32.totalorder %s200, %s201
      %p210 = scmp.eq.s32.totalorder %s36, 0
      %p211 = por %p209, %p210
      %p212 = scmp.ne.s32.totalorder %s200, %s201
      %p213 = scmp.eq.s32.totalorder %s37, 7
      %p214 = por %p212, %p213
      %p216 = scmp.ne.s32.totalorder %s201, %s215
      %p217 = scmp.eq.s32.totalorder %s37, 0
      %p218 = por %p216, %p217
      %s220 = sadd.s32 %s219, 1
      %p223 = scmp.eq.s32.totalorder %s31, 7
      %p224 = scmp.ne.s32.totalorder %s219, %s221
      %p225 = scmp.eq.s32.totalorder %s31, 0
      %p226 = por %p224, %p225
      %p227 = scmp.ne.s32.totalorder %s219, %s221
      %p228 = scmp.eq.s32.totalorder %s36, 7
      %p229 = por %p227, %p228
      %p230 = scmp.ne.s32.totalorder %s221, %s222
      %p231 = scmp.eq.s32.totalorder %s36, 0
      %p232 = por %p230, %p231
      %p233 = scmp.ne.s32.totalorder %s221, %s222
      %p234 = scmp.eq.s32.totalorder %s37, 7
      %p235 = por %p233, %p234
      %p237 = scmp.ne.s32.totalorder %s222, %s236
      %p238 = scmp.eq.s32.totalorder %s37, 0
      %p239 = por %p237, %p238
      %s241 = sadd.s32 %s240, 1
      %p244 = scmp.eq.s32.totalorder %s31, 7
      %p245 = scmp.ne.s32.totalorder %s240, %s242
      %p246 = scmp.eq.s32.totalorder %s31, 0
      %p247 = por %p245, %p246
      %p248 = scmp.ne.s32.totalorder %s240, %s242
      %p249 = scmp.eq.s32.totalorder %s36, 7
      %p250 = por %p248, %p249
      %p251 = scmp.ne.s32.totalorder %s242, %s243
      %p252 = scmp.eq.s32.totalorder %s36, 0
      %p253 = por %p251, %p252
      %p254 = scmp.ne.s32.totalorder %s242, %s243
      %p255 = scmp.eq.s32.totalorder %s37, 7
      %p256 = por %p254, %p255
      %p258 = scmp.ne.s32.totalorder %s243, %s257
      %p259 = scmp.eq.s32.totalorder %s37, 0
      %p260 = por %p258, %p259
      %s261 = ssub.s32 %s39, %s53
      %s262 = ssub.s32 %s40, %s49
      %s263 = sor.u32 %s261, %s262
      %p264 = scmp.eq.s32.totalorder %s263, 0
      %s266 = sadd.s32 %s265, 1
      %s267 = scalar_select %p264, %s265, %s266
      %p270 = pneg %p264
      %p271 = scmp.eq.s32.totalorder %s31, 7
      %p272 = por %p270, %p271
      %p273 = scmp.ne.s32.totalorder %s265, %s268
      %p274 = scmp.eq.s32.totalorder %s31, 0
      %p275 = por %p273, %p274
      %p276 = scmp.ne.s32.totalorder %s265, %s268
      %p277 = scmp.eq.s32.totalorder %s36, 7
      %p278 = por %p276, %p277
      %p279 = scmp.ne.s32.totalorder %s268, %s269
      %p280 = scmp.eq.s32.totalorder %s36, 0
      %p281 = por %p279, %p280
      %p282 = scmp.ne.s32.totalorder %s268, %s269
      %p283 = scmp.eq.s32.totalorder %s37, 7
      %p284 = por %p282, %p283
      %p286 = scmp.ne.s32.totalorder %s269, %s285
      %p287 = scmp.eq.s32.totalorder %s37, 0
      %p288 = por %p286, %p287
      %s290 = sadd.s32 %s289, 1
      %p293 = scmp.eq.s32.totalorder %s31, 7
      %p294 = scmp.ne.s32.totalorder %s289, %s291
      %p295 = scmp.eq.s32.totalorder %s31, 0
      %p296 = por %p294, %p295
      %p297 = scmp.ne.s32.totalorder %s289, %s291
      %p298 = scmp.eq.s32.totalorder %s36, 7
      %p299 = por %p297, %p298
      %p300 = scmp.ne.s32.totalorder %s291, %s292
      %p301 = scmp.eq.s32.totalorder %s36, 0
      %p302 = por %p300, %p301
      %p303 = scmp.ne.s32.totalorder %s291, %s292
      %p304 = scmp.eq.s32.totalorder %s37, 7
      %p305 = por %p303, %p304
      %p307 = scmp.ne.s32.totalorder %s292, %s306
      %p308 = scmp.eq.s32.totalorder %s37, 0
      %p309 = por %p307, %p308
      %s310 = ssub.s32 %s38, %s57
      %s311 = ssub.s32 %s39, %s53
      %s312 = sor.u32 %s310, %s311
      %p313 = scmp.eq.s32.totalorder %s312, 0
      %s315 = sadd.s32 %s314, 1
      %s316 = scalar_select %p313, %s314, %s315
      %p319 = pneg %p313
      %p320 = scmp.eq.s32.totalorder %s31, 7
      %p321 = por %p319, %p320
      %p322 = scmp.ne.s32.totalorder %s314, %s317
      %p323 = scmp.eq.s32.totalorder %s31, 0
      %p324 = por %p322, %p323
      %p325 = scmp.ne.s32.totalorder %s314, %s317
      %p326 = scmp.eq.s32.totalorder %s36, 7
      %p327 = por %p325, %p326
      %p328 = scmp.ne.s32.totalorder %s317, %s318
      %p329 = scmp.eq.s32.totalorder %s36, 0
      %p330 = por %p328, %p329
      %p331 = scmp.ne.s32.totalorder %s317, %s318
      %p332 = scmp.eq.s32.totalorder %s37, 7
      %p333 = por %p331, %p332
      %p335 = scmp.ne.s32.totalorder %s318, %s334
      %p336 = scmp.eq.s32.totalorder %s37, 0
      %p337 = por %p335, %p336
      %p338 = scmp.le.s32.totalorder 1, %s31
      %p339 = scmp.lt.s32.totalorder %s31, 9
      %p340 = pnand %p338, %p339
      %p341 = pneg %p340
      // Predicated region
      $region9: #{tpu_custom_call.1} parent=5 // pred_check
        _
      $region10: #{tpu_custom_call.1} parent=5 // pred_check_branch
        %343 = sbr.rel (%p340) target = $region12
      $region11: #{tpu_custom_call.1} parent=5 // pred_region
        %s344 = ssub.s32 %s31, 1
        // Predicated region
        $region13: #{tpu_custom_call.1} parent=11 // pred_check
          %p345 = pneg %p127
        $region14: #{tpu_custom_call.1} parent=11 // pred_check_branch
          %347 = sbr.rel (%p345) target = $region16
        $region15: #{tpu_custom_call.1} parent=11 // pred_region
          %s349 = ssub.s32 3072, 3072
          %350 = vsyncadd [#allocation10], %s349
          %s351 = sshll.u32 [#allocation11], 4
          %s352 = int_to_ptr.vmem [resolvable:$true] %s351
          %357 = dma.hbm_to_vmem [thread:$0]  %s2, 3072, %s352, [#allocation10], 192, 192, 12
        $region16: #{tpu_custom_call.1} parent=11 // pred_fallthru
          _
        // Predicated region
        $region17: #{tpu_custom_call.1} parent=11 // pred_check
          %p358 = pneg %p148
        $region18: #{tpu_custom_call.1} parent=11 // pred_check_branch
          %360 = sbr.rel (%p358) target = $region20
        $region19: #{tpu_custom_call.1} parent=11 // pred_region
          _
        $region20: #{tpu_custom_call.1} parent=11 // pred_fallthru
          _
        // Predicated region
        $region21: #{tpu_custom_call.1} parent=11 // pred_check
          %p361 = pneg %p169
        $region22: #{tpu_custom_call.1} parent=11 // pred_check_branch
          %363 = sbr.rel (%p361) target = $region24
        $region23: #{tpu_custom_call.1} parent=11 // pred_region
          %s365 = ssub.s32 3072, 3072
          %366 = vsyncadd [#allocation13], %s365
          %s367 = sshll.u32 [#allocation12], 4
          %s368 = int_to_ptr.vmem [resolvable:$true] %s367
          %373 = dma.hbm_to_vmem [thread:$0]  %s4, 3072, %s368, [#allocation13], 192, 192, 12
        $region24: #{tpu_custom_call.1} parent=11 // pred_fallthru
          _
        // Predicated region
        $region25: #{tpu_custom_call.1} parent=11 // pred_check
          %p374 = pneg %p190
        $region26: #{tpu_custom_call.1} parent=11 // pred_check_branch
          %376 = sbr.rel (%p374) target = $region28
        $region27: #{tpu_custom_call.1} parent=11 // pred_region
          _
        $region28: #{tpu_custom_call.1} parent=11 // pred_fallthru
          _
        // Predicated region
        $region29: #{tpu_custom_call.1} parent=11 // pred_check
          %p377 = pneg %p211
        $region30: #{tpu_custom_call.1} parent=11 // pred_check_branch
          %379 = sbr.rel (%p377) target = $region32
        $region31: #{tpu_custom_call.1} parent=11 // pred_region
          %s381 = ssub.s32 2048, 2048
          %382 = vsyncadd [#allocation13], %s381
          %s383 = sshll.u32 [#allocation14], 4
          %s384 = int_to_ptr.vmem [resolvable:$true] %s383
          %389 = dma.hbm_to_vmem [thread:$0]  %s6, 2048, %s384, [#allocation13], 64, 64, 4
        $region32: #{tpu_custom_call.1} parent=11 // pred_fallthru
          _
        // Predicated region
        $region33: #{tpu_custom_call.1} parent=11 // pred_check
          %p390 = pneg %p232
        $region34: #{tpu_custom_call.1} parent=11 // pred_check_branch
          %392 = sbr.rel (%p390) target = $region36
        $region35: #{tpu_custom_call.1} parent=11 // pred_region
          _
        $region36: #{tpu_custom_call.1} parent=11 // pred_fallthru
          _
        // Predicated region
        $region37: #{tpu_custom_call.1} parent=11 // pred_check
          %p393 = pneg %p253
        $region38: #{tpu_custom_call.1} parent=11 // pred_check_branch
          %395 = sbr.rel (%p393) target = $region40
        $region39: #{tpu_custom_call.1} parent=11 // pred_region
          _
        $region40: #{tpu_custom_call.1} parent=11 // pred_fallthru
          _
        // Predicated region
        $region41: #{tpu_custom_call.1} parent=11 // pred_check
          %p396 = pneg %p302
        $region42: #{tpu_custom_call.1} parent=11 // pred_check_branch
          %398 = sbr.rel (%p396) target = $region44
        $region43: #{tpu_custom_call.1} parent=11 // pred_region
          %s400 = ssub.s32 16, 16
          %401 = vsyncadd [#allocation8], %s400
          %s403 = sshll.u32 %s10, 4
          %s404 = int_to_ptr.vmem [resolvable:$true] %s403
          %406 = dma.vmem_to_smem %s404, 16, [#allocation17], [#allocation8]
        $region44: #{tpu_custom_call.1} parent=11 // pred_fallthru
          _
      $region12: #{tpu_custom_call.1} parent=5 // pred_fallthru
        _
      %p407 = scmp.lt.s32.totalorder %s31, 8
      // Predicated region
      $region45: #{tpu_custom_call.1} parent=5 // pred_check
        %p408 = pneg %p407
      $region46: #{tpu_custom_call.1} parent=5 // pred_check_branch
        %410 = sbr.rel (%p408) target = $region48
      $region47: #{tpu_custom_call.1} parent=5 // pred_region
        // Predicated region
        $region49: #{tpu_custom_call.1} parent=47 // pred_check
          %p411 = pneg %p72
        $region50: #{tpu_custom_call.1} parent=47 // pred_check_branch
          %413 = sbr.rel (%p411) target = $region52
        $region51: #{tpu_custom_call.1} parent=47 // pred_region
          %s414 = sand.u32 %s62, 1
          %s415 = scalar_lea.sflag [#allocation6], %s414
          %s416 = sand.u32 %s62, 1
          %s417 = smul.addr %s416, 64
          %s418 = scalar_lea.vmem [#allocation5], %s417
          %s419 = smul.u32 16, %s39
          %s421 = ssub.s32 1024, 1024
          %422 = vsyncadd %s415, %s421
          %s423 = smul.addr %s38, 32
          %s424 = sadd.s32 %s419, %s423
          %s425 = smul.addr %s424, 64
          %s426 = scalar_lea.hbm %s0, %s425
          %s427 = sshll.u32 %s418, 4
          %s428 = int_to_ptr.vmem [resolvable:$true] %s427
          %433 = dma.hbm_to_vmem [thread:$0]  %s426, 1024, %s428, %s415, 64, 64, 4
        $region52: #{tpu_custom_call.1} parent=47 // pred_fallthru
          _
        // Predicated region
        $region53: #{tpu_custom_call.1} parent=47 // pred_check
          %p434 = pneg %p100
        $region54: #{tpu_custom_call.1} parent=47 // pred_check_branch
          %436 = sbr.rel (%p434) target = $region56
        $region55: #{tpu_custom_call.1} parent=47 // pred_region
          %s437 = sand.u32 %s31, 1
          %s438 = scalar_lea.sflag [#allocation10], %s437
          %s439 = sand.u32 %s90, 1
          %s440 = smul.addr %s439, 64
          %s441 = scalar_lea.vmem [#allocation9], %s440
          %s442 = smul.u32 16, %s40
          %s444 = ssub.s32 1024, 1024
          %445 = vsyncadd %s438, %s444
          %s446 = smul.addr %s38, 32
          %s447 = sadd.s32 %s442, %s446
          %s448 = smul.addr %s447, 64
          %s449 = scalar_lea.hbm %s1, %s448
          %s450 = sshll.u32 %s441, 4
          %s451 = int_to_ptr.vmem [resolvable:$true] %s450
          %456 = dma.hbm_to_vmem [thread:$0]  %s449, 1024, %s451, %s438, 64, 64, 4
        $region56: #{tpu_custom_call.1} parent=47 // pred_fallthru
          _
        // Predicated region
        $region57: #{tpu_custom_call.1} parent=47 // pred_check
          %p457 = pneg %p275
        $region58: #{tpu_custom_call.1} parent=47 // pred_check_branch
          %459 = sbr.rel (%p457) target = $region60
        $region59: #{tpu_custom_call.1} parent=47 // pred_region
          %s460 = sand.u32 %s265, 1
          %s461 = scalar_lea.sflag [#allocation16], %s460
          %s462 = sand.u32 %s265, 1
          %s463 = smul.addr %s462, 128
          %s464 = scalar_lea.vmem [#allocation15], %s463
          %s465 = smul.u32 16, %s39
          %s467 = ssub.s32 2048, 2048
          %468 = vsyncadd %s461, %s467
          %s469 = smul.addr %s465, 2
          %s470 = sadd.s32 %s40, %s469
          %s471 = smul.addr %s470, 128
          %s472 = scalar_lea.hbm %s9, %s471
          %s473 = sshll.u32 %s464, 4
          %s474 = int_to_ptr.vmem [resolvable:$true] %s473
          %479 = dma.hbm_to_vmem [thread:$0]  %s472, 2048, %s474, %s461, 256, 128, 8
        $region60: #{tpu_custom_call.1} parent=47 // pred_fallthru
          _
      $region48: #{tpu_custom_call.1} parent=5 // pred_fallthru
        _
      %p480 = scmp.le.s32.totalorder 1, %s31
      %p481 = scmp.lt.s32.totalorder %s31, 9
      %p482 = pnand %p480, %p481
      %p483 = pneg %p482
      // Predicated region
      $region61: #{tpu_custom_call.1} parent=5 // pred_check
        _
      $region62: #{tpu_custom_call.1} parent=5 // pred_check_branch
        %485 = sbr.rel (%p482) target = $region64
      $region63: #{tpu_custom_call.1} parent=5 // pred_region
        %s486 = ssub.s32 %s31, 1
        %s487 = sand.u32 %s65, 1
        %s488 = scalar_lea.sflag [#allocation6], %s487
        %s489 = sand.u32 %s65, 1
        %s490 = smul.addr %s489, 64
        %s491 = scalar_lea.vmem [#allocation5], %s490
        // Predicated region
        $region65: #{tpu_custom_call.1} parent=63 // pred_check
          %p492 = pneg %p78
        $region66: #{tpu_custom_call.1} parent=63 // pred_check_branch
          %494 = sbr.rel (%p492) target = $region68
        $region67: #{tpu_custom_call.1} parent=63 // pred_region
          %495 = dma.done %s488, 1024
        $region68: #{tpu_custom_call.1} parent=63 // pred_fallthru
          _
        %s496 = sand.u32 %s36, 1
        %s497 = scalar_lea.sflag [#allocation10], %s496
        %s498 = sand.u32 %s93, 1
        %s499 = smul.addr %s498, 64
        %s500 = scalar_lea.vmem [#allocation9], %s499
        // Predicated region
        $region69: #{tpu_custom_call.1} parent=63 // pred_check
          %p501 = pneg %p106
        $region70: #{tpu_custom_call.1} parent=63 // pred_check_branch
          %503 = sbr.rel (%p501) target = $region72
        $region71: #{tpu_custom_call.1} parent=63 // pred_region
          %504 = dma.done %s497, 1024
        $region72: #{tpu_custom_call.1} parent=63 // pred_fallthru
          _
        // Predicated region
        $region73: #{tpu_custom_call.1} parent=63 // pred_check
          %p505 = pneg %p127
        $region74: #{tpu_custom_call.1} parent=63 // pred_check_branch
          %507 = sbr.rel (%p505) target = $region76
        $region75: #{tpu_custom_call.1} parent=63 // pred_region
          %508 = dma.done [#allocation10], 3072
        $region76: #{tpu_custom_call.1} parent=63 // pred_fallthru
          _
        // Predicated region
        $region77: #{tpu_custom_call.1} parent=63 // pred_check
          %p509 = pneg %p169
        $region78: #{tpu_custom_call.1} parent=63 // pred_check_branch
          %511 = sbr.rel (%p509) target = $region80
        $region79: #{tpu_custom_call.1} parent=63 // pred_region
          %512 = dma.done [#allocation13], 3072
        $region80: #{tpu_custom_call.1} parent=63 // pred_fallthru
          _
        // Predicated region
        $region81: #{tpu_custom_call.1} parent=63 // pred_check
          %p513 = pneg %p211
        $region82: #{tpu_custom_call.1} parent=63 // pred_check_branch
          %515 = sbr.rel (%p513) target = $region84
        $region83: #{tpu_custom_call.1} parent=63 // pred_region
          %516 = dma.done [#allocation13], 2048
        $region84: #{tpu_custom_call.1} parent=63 // pred_fallthru
          _
        %s517 = sand.u32 %s268, 1
        %s518 = scalar_lea.sflag [#allocation16], %s517
        %s519 = sand.u32 %s268, 1
        %s520 = smul.addr %s519, 128
        %s521 = scalar_lea.vmem [#allocation15], %s520
        // Predicated region
        $region85: #{tpu_custom_call.1} parent=63 // pred_check
          %p522 = pneg %p281
        $region86: #{tpu_custom_call.1} parent=63 // pred_check_branch
          %524 = sbr.rel (%p522) target = $region88
        $region87: #{tpu_custom_call.1} parent=63 // pred_region
          %525 = dma.done %s518, 2048
        $region88: #{tpu_custom_call.1} parent=63 // pred_fallthru
          _
        // Predicated region
        $region89: #{tpu_custom_call.1} parent=63 // pred_check
          %p526 = pneg %p302
        $region90: #{tpu_custom_call.1} parent=63 // pred_check_branch
          %528 = sbr.rel (%p526) target = $region92
        $region91: #{tpu_custom_call.1} parent=63 // pred_region
          %529 = dma.done [#allocation8], 16
        $region92: #{tpu_custom_call.1} parent=63 // pred_fallthru
          _
        %530 = sfence
        %s531 = sand.u32 %s65, 1
        %s532 = scalar_lea.sflag [#allocation6], %s531
        %s533 = sand.u32 %s65, 1
        %s534 = smul.addr %s533, 64
        %s535 = scalar_lea.vmem [#allocation5], %s534
        %p536 = pneg %p78
        %p537 = pneg %p75
        %s538 = sand.u32 %s36, 1
        %s539 = scalar_lea.sflag [#allocation10], %s538
        %s540 = sand.u32 %s93, 1
        %s541 = smul.addr %s540, 64
        %s542 = scalar_lea.vmem [#allocation9], %s541
        %p543 = pneg %p106
        %p544 = pneg %p103
        %p545 = pneg %p127
        %p546 = pneg %p124
        %p547 = pneg %p148
        %p548 = pneg %p145
        %p549 = pneg %p169
        %p550 = pneg %p166
        %p551 = pneg %p190
        %p552 = pneg %p187
        %p553 = pneg %p211
        %p554 = pneg %p208
        %p555 = pneg %p232
        %p556 = pneg %p229
        %p557 = pneg %p253
        %p558 = pneg %p250
        %s559 = sand.u32 %s268, 1
        %s560 = scalar_lea.sflag [#allocation16], %s559
        %s561 = sand.u32 %s268, 1
        %s562 = smul.addr %s561, 128
        %s563 = scalar_lea.vmem [#allocation15], %s562
        %p564 = pneg %p281
        %p565 = pneg %p278
        %p566 = pneg %p302
        %p567 = pneg %p299
        %p568 = pneg %p330
        %p569 = pneg %p327
        %s570 = sand.u32 %s317, 1
        %s571 = scalar_lea.sflag [#allocation7], %s570
        %s572 = sand.u32 %s317, 1
        %s573 = smul.addr %s572, 64
        %s574 = scalar_lea.vmem [#allocation18], %s573
        %s575 = smul.u32 16, %s42
        %s576 = smul.u32 16, %s43
        %s577 = smul.u32 16, %s42
        %s578 = smul.u32 16, %s42
        %p580 = scmp.eq.s32.totalorder %s43, 0
        // Predicated region
        $region93: #{tpu_custom_call.1} parent=63 // pred_check
          %p581 = pneg %p580
        $region94: #{tpu_custom_call.1} parent=63 // pred_check_branch
          %583 = sbr.rel (%p581) target = $region96
        $region95: #{tpu_custom_call.1} parent=63 // pred_region
          %v584 = vld [vmem:[%s491] sm:$0xf]
          %v585 = vld [vmem:[%s491 + $0x4] sm:$0xf]
          %v586 = vld [vmem:[%s491 + $0x8] sm:$0xf]
          %v587 = vld [vmem:[%s491 + $0xc] sm:$0xf]
          %v588 = vld [vmem:[%s491 + $0x10] sm:$0xf]
          %v589 = vld [vmem:[%s491 + $0x14] sm:$0xf]
          %v590 = vld [vmem:[%s491 + $0x18] sm:$0xf]
          %v591 = vld [vmem:[%s491 + $0x1c] sm:$0xf]
          %v592 = vld [vmem:[%s491 + $0x20] sm:$0xf]
          %v593 = vld [vmem:[%s491 + $0x24] sm:$0xf]
          %v594 = vld [vmem:[%s491 + $0x28] sm:$0xf]
          %v595 = vld [vmem:[%s491 + $0x2c] sm:$0xf]
          %v596 = vld [vmem:[%s491 + $0x30] sm:$0xf]
          %v597 = vld [vmem:[%s491 + $0x34] sm:$0xf]
          %v598 = vld [vmem:[%s491 + $0x38] sm:$0xf]
          %v599 = vld [vmem:[%s491 + $0x3c] sm:$0xf]
          %v600 = vunpack.c.l.bf16 %v584
          %v601 = vunpack.c.l.bf16 %v585
          %v602 = vunpack.c.l.bf16 %v586
          %v603 = vunpack.c.l.bf16 %v587
          %v604 = vunpack.c.l.bf16 %v588
          %v605 = vunpack.c.l.bf16 %v589
          %v606 = vunpack.c.l.bf16 %v590
          %v607 = vunpack.c.l.bf16 %v591
          %v608 = vunpack.c.l.bf16 %v592
          %v609 = vunpack.c.l.bf16 %v593
          %v610 = vunpack.c.l.bf16 %v594
          %v611 = vunpack.c.l.bf16 %v595
          %v612 = vunpack.c.l.bf16 %v596
          %v613 = vunpack.c.l.bf16 %v597
          %v614 = vunpack.c.l.bf16 %v598
          %v615 = vunpack.c.l.bf16 %v599
          %s616 = sld [smem:[#allocation17]]
          %v617 = vmul.f32 %v600, %v600
          %v618 = vmul.f32 %v601, %v601
          %v619 = vmul.f32 %v602, %v602
          %v620 = vmul.f32 %v603, %v603
          %v621 = vmul.f32 %v604, %v604
          %v622 = vmul.f32 %v605, %v605
          %v623 = vmul.f32 %v606, %v606
          %v624 = vmul.f32 %v607, %v607
          %v625 = vmul.f32 %v608, %v608
          %v626 = vmul.f32 %v609, %v609
          %v627 = vmul.f32 %v610, %v610
          %v628 = vmul.f32 %v611, %v611
          %v629 = vmul.f32 %v612, %v612
          %v630 = vmul.f32 %v613, %v613
          %v631 = vmul.f32 %v614, %v614
          %v632 = vmul.f32 %v615, %v615
          %633 = vadd.xlane.f32.xlu0 %v617
          %v634 = vpop.xlane.xlu0 %633
          %635 = vadd.xlane.f32.xlu0 %v618
          %v636 = vpop.xlane.xlu0 %635
          %637 = vadd.xlane.f32.xlu0 %v619
          %v638 = vpop.xlane.xlu0 %637
          %639 = vadd.xlane.f32.xlu0 %v620
          %v640 = vpop.xlane.xlu0 %639
          %641 = vadd.xlane.f32.xlu0 %v621
          %v642 = vpop.xlane.xlu0 %641
          %643 = vadd.xlane.f32.xlu0 %v622
          %v644 = vpop.xlane.xlu0 %643
          %645 = vadd.xlane.f32.xlu0 %v623
          %v646 = vpop.xlane.xlu0 %645
          %647 = vadd.xlane.f32.xlu0 %v624
          %v648 = vpop.xlane.xlu0 %647
          %649 = vadd.xlane.f32.xlu0 %v625
          %v650 = vpop.xlane.xlu0 %649
          %651 = vadd.xlane.f32.xlu0 %v626
          %v652 = vpop.xlane.xlu0 %651
          %653 = vadd.xlane.f32.xlu0 %v627
          %v654 = vpop.xlane.xlu0 %653
          %655 = vadd.xlane.f32.xlu0 %v628
          %v656 = vpop.xlane.xlu0 %655
          %657 = vadd.xlane.f32.xlu0 %v629
          %v658 = vpop.xlane.xlu0 %657
          %659 = vadd.xlane.f32.xlu0 %v630
          %v660 = vpop.xlane.xlu0 %659
          %661 = vadd.xlane.f32.xlu0 %v631
          %v662 = vpop.xlane.xlu0 %661
          %663 = vadd.xlane.f32.xlu0 %v632
          %v664 = vpop.xlane.xlu0 %663
          %v665 = vrcp.pop 128.0
          %v666 = vmul.f32 %v634, %v665
          %v667 = vmul.f32 %v636, %v665
          %v668 = vmul.f32 %v638, %v665
          %v669 = vmul.f32 %v640, %v665
          %v670 = vmul.f32 %v642, %v665
          %v671 = vmul.f32 %v644, %v665
          %v672 = vmul.f32 %v646, %v665
          %v673 = vmul.f32 %v648, %v665
          %v674 = vmul.f32 %v650, %v665
          %v675 = vmul.f32 %v652, %v665
          %v676 = vmul.f32 %v654, %v665
          %v677 = vmul.f32 %v656, %v665
          %v678 = vmul.f32 %v658, %v665
          %v679 = vmul.f32 %v660, %v665
          %v680 = vmul.f32 %v662, %v665
          %v681 = vmul.f32 %v664, %v665
          %v682 = vstv %s616
          %v683 = vmul.f32 %v682, %v600
          %v684 = vmul.f32 %v682, %v601
          %v685 = vmul.f32 %v682, %v602
          %v686 = vmul.f32 %v682, %v603
          %v687 = vmul.f32 %v682, %v604
          %v688 = vmul.f32 %v682, %v605
          %v689 = vmul.f32 %v682, %v606
          %v690 = vmul.f32 %v682, %v607
          %v691 = vmul.f32 %v682, %v608
          %v692 = vmul.f32 %v682, %v609
          %v693 = vmul.f32 %v682, %v610
          %v694 = vmul.f32 %v682, %v611
          %v695 = vmul.f32 %v682, %v612
          %v696 = vmul.f32 %v682, %v613
          %v697 = vmul.f32 %v682, %v614
          %v698 = vmul.f32 %v682, %v615
          %v699 = vadd.f32 %v666, 1e-06
          %v700 = vadd.f32 %v667, 1e-06
          %v701 = vadd.f32 %v668, 1e-06
          %v702 = vadd.f32 %v669, 1e-06
          %v703 = vadd.f32 %v670, 1e-06
          %v704 = vadd.f32 %v671, 1e-06
          %v705 = vadd.f32 %v672, 1e-06
          %v706 = vadd.f32 %v673, 1e-06
          %v707 = vadd.f32 %v674, 1e-06
          %v708 = vadd.f32 %v675, 1e-06
          %v709 = vadd.f32 %v676, 1e-06
          %v710 = vadd.f32 %v677, 1e-06
          %v711 = vadd.f32 %v678, 1e-06
          %v712 = vadd.f32 %v679, 1e-06
          %v713 = vadd.f32 %v680, 1e-06
          %v714 = vadd.f32 %v681, 1e-06
          %v715 = vrsqrt.pop %v699
          %v716 = vrsqrt.pop %v700
          %v717 = vrsqrt.pop %v701
          %v718 = vrsqrt.pop %v702
          %v719 = vrsqrt.pop %v703
          %v720 = vrsqrt.pop %v704
          %v721 = vrsqrt.pop %v705
          %v722 = vrsqrt.pop %v706
          %v723 = vrsqrt.pop %v707
          %v724 = vrsqrt.pop %v708
          %v725 = vrsqrt.pop %v709
          %v726 = vrsqrt.pop %v710
          %v727 = vrsqrt.pop %v711
          %v728 = vrsqrt.pop %v712
          %v729 = vrsqrt.pop %v713
          %v730 = vrsqrt.pop %v714
          %v731 = vmul.f32 %v683, %v715
          %v732 = vmul.f32 %v684, %v716
          %v733 = vmul.f32 %v685, %v717
          %v734 = vmul.f32 %v686, %v718
          %v735 = vmul.f32 %v687, %v719
          %v736 = vmul.f32 %v688, %v720
          %v737 = vmul.f32 %v689, %v721
          %v738 = vmul.f32 %v690, %v722
          %v739 = vmul.f32 %v691, %v723
          %v740 = vmul.f32 %v692, %v724
          %v741 = vmul.f32 %v693, %v725
          %v742 = vmul.f32 %v694, %v726
          %v743 = vmul.f32 %v695, %v727
          %v744 = vmul.f32 %v696, %v728
          %v745 = vmul.f32 %v697, %v729
          %v746 = vmul.f32 %v698, %v730
          %v747 = vpack.c.bf16 %v732, %v731
          %v748 = vpack.c.bf16 %v734, %v733
          %v749 = vpack.c.bf16 %v736, %v735
          %v750 = vpack.c.bf16 %v738, %v737
          %v751 = vpack.c.bf16 %v740, %v739
          %v752 = vpack.c.bf16 %v742, %v741
          %v753 = vpack.c.bf16 %v744, %v743
          %v754 = vpack.c.bf16 %v746, %v745
          %v755 = vld [vmem:[#allocation11] sm:$0xff]
          %v756 = vld [vmem:[#allocation11 + $0x8] sm:$0xf]
          %v757 = vld [vmem:[#allocation11 + $0xc] sm:$0xff]
          %v758 = vld [vmem:[#allocation11 + $0x14] sm:$0xf]
          %v759 = vld [vmem:[#allocation11 + $0x18] sm:$0xff]
          %v760 = vld [vmem:[#allocation11 + $0x20] sm:$0xf]
          %v761 = vld [vmem:[#allocation11 + $0x24] sm:$0xff]
          %v762 = vld [vmem:[#allocation11 + $0x2c] sm:$0xf]
          %v763 = vld [vmem:[#allocation11 + $0x30] sm:$0xff]
          %v764 = vld [vmem:[#allocation11 + $0x38] sm:$0xf]
          %v765 = vld [vmem:[#allocation11 + $0x3c] sm:$0xff]
          %v766 = vld [vmem:[#allocation11 + $0x44] sm:$0xf]
          %v767 = vld [vmem:[#allocation11 + $0x48] sm:$0xff]
          %v768 = vld [vmem:[#allocation11 + $0x50] sm:$0xf]
          %v769 = vld [vmem:[#allocation11 + $0x54] sm:$0xff]
          %v770 = vld [vmem:[#allocation11 + $0x5c] sm:$0xf]
          %v771 = vld [vmem:[#allocation11 + $0x60] sm:$0xff]
          %v772 = vld [vmem:[#allocation11 + $0x68] sm:$0xf]
          %v773 = vld [vmem:[#allocation11 + $0x6c] sm:$0xff]
          %v774 = vld [vmem:[#allocation11 + $0x74] sm:$0xf]
          %v775 = vld [vmem:[#allocation11 + $0x78] sm:$0xff]
          %v776 = vld [vmem:[#allocation11 + $0x80] sm:$0xf]
          %v777 = vld [vmem:[#allocation11 + $0x84] sm:$0xff]
          %v778 = vld [vmem:[#allocation11 + $0x8c] sm:$0xf]
          %v779 = vld [vmem:[#allocation11 + $0x90] sm:$0xff]
          %v780 = vld [vmem:[#allocation11 + $0x98] sm:$0xf]
          %v781 = vld [vmem:[#allocation11 + $0x9c] sm:$0xff]
          %v782 = vld [vmem:[#allocation11 + $0xa4] sm:$0xf]
          %v783 = vld [vmem:[#allocation11 + $0xa8] sm:$0xff]
          %v784 = vld [vmem:[#allocation11 + $0xb0] sm:$0xf]
          %v785 = vld [vmem:[#allocation11 + $0xb4] sm:$0xff]
          %v786 = vld [vmem:[#allocation11 + $0xbc] sm:$0xf]
          %v787 = vld [vmem:[%s3] sm:$0x7]
          %v789 = vlaneseq
          %v790 = vshrl.u32 %v789, 7
          %v791 = vsub.s32 0, %v790
          %v792 = vrot.slane %v787, %v791
          %v793 = vlaneseq
          %v794 = vshrl.u32 %v793, 7
          %v795 = vsub.s32 1, %v794
          %v796 = vrot.slane %v787, %v795
          %v797 = vlaneseq
          %v798 = vshrl.u32 %v797, 7
          %v799 = vsub.s32 2, %v798
          %v800 = vrot.slane %v787, %v799
          %v836 = vunpack.c.l.b16 %v755
          %v837 = vunpack.c.h.b16 %v755
          %v838 = vunpack.c.l.b16 %v756
          %v839 = vunpack.c.l.b16 %v757
          %v840 = vunpack.c.h.b16 %v757
          %v841 = vunpack.c.l.b16 %v758
          %v842 = vunpack.c.l.b16 %v759
          %v843 = vunpack.c.h.b16 %v759
          %v844 = vunpack.c.l.b16 %v760
          %v845 = vunpack.c.l.b16 %v761
          %v846 = vunpack.c.h.b16 %v761
          %v847 = vunpack.c.l.b16 %v762
          %v848 = vunpack.c.l.b16 %v763
          %v849 = vunpack.c.h.b16 %v763
          %v850 = vunpack.c.l.b16 %v764
          %v851 = vunpack.c.l.b16 %v765
          %v852 = vunpack.c.h.b16 %v765
          %v853 = vunpack.c.l.b16 %v766
          %v854 = vunpack.c.l.b16 %v767
          %v855 = vunpack.c.h.b16 %v767
          %v856 = vunpack.c.l.b16 %v768
          %v857 = vunpack.c.l.b16 %v769
          %v858 = vunpack.c.h.b16 %v769
          %v859 = vunpack.c.l.b16 %v770
          %v860 = vunpack.c.l.b16 %v771
          %v861 = vunpack.c.h.b16 %v771
          %v862 = vunpack.c.l.b16 %v772
          %v863 = vunpack.c.l.b16 %v773
          %v864 = vunpack.c.h.b16 %v773
          %v865 = vunpack.c.l.b16 %v774
          %v866 = vunpack.c.l.b16 %v775
          %v867 = vunpack.c.h.b16 %v775
          %v868 = vunpack.c.l.b16 %v776
          %v869 = vunpack.c.l.b16 %v777
          %v870 = vunpack.c.h.b16 %v777
          %v871 = vunpack.c.l.b16 %v778
          %v872 = vunpack.c.l.b16 %v779
          %v873 = vunpack.c.h.b16 %v779
          %v874 = vunpack.c.l.b16 %v780
          %v875 = vunpack.c.l.b16 %v781
          %v876 = vunpack.c.h.b16 %v781
          %v877 = vunpack.c.l.b16 %v782
          %v878 = vunpack.c.l.b16 %v783
          %v879 = vunpack.c.h.b16 %v783
          %v880 = vunpack.c.l.b16 %v784
          %v881 = vunpack.c.l.b16 %v785
          %v882 = vunpack.c.h.b16 %v785
          %v883 = vunpack.c.l.b16 %v786
          %v884 = vpack.c.b16 %v839, %v836
          %v885 = vpack.c.b16 %v840, %v837
          %v886 = vpack.c.b16 %v841, %v838
          %v887 = vpack.c.b16 %v845, %v842
          %v888 = vpack.c.b16 %v846, %v843
          %v889 = vpack.c.b16 %v847, %v844
          %v890 = vpack.c.b16 %v851, %v848
          %v891 = vpack.c.b16 %v852, %v849
          %v892 = vpack.c.b16 %v853, %v850
          %v893 = vpack.c.b16 %v857, %v854
          %v894 = vpack.c.b16 %v858, %v855
          %v895 = vpack.c.b16 %v859, %v856
          %v896 = vpack.c.b16 %v863, %v860
          %v897 = vpack.c.b16 %v864, %v861
          %v898 = vpack.c.b16 %v865, %v862
          %v899 = vpack.c.b16 %v869, %v866
          %v900 = vpack.c.b16 %v870, %v867
          %v901 = vpack.c.b16 %v871, %v868
          %v902 = vpack.c.b16 %v875, %v872
          %v903 = vpack.c.b16 %v876, %v873
          %v904 = vpack.c.b16 %v877, %v874
          %v905 = vpack.c.b16 %v881, %v878
          %v906 = vpack.c.b16 %v882, %v879
          %v907 = vpack.c.b16 %v883, %v880
          %932 = vmatprep.subr.bf16.mxu0 %v885
          %933 = vmatpush1.bf16.msra.mxu0 %v884
          %934 = vmatprep.subr.bf16.mxu0 %v888
          %935 = vmatpush1.bf16.msra.mxu0 %v887
          %936 = vmatprep.subr.bf16.mxu0 %v891
          %937 = vmatpush1.bf16.msra.mxu0 %v890
          %938 = vmatprep.subr.bf16.mxu0 %v894
          %939 = vmatpush1.bf16.msra.mxu0 %v893
          %940 = vmatprep.subr.bf16.mxu0 %v897
          %941 = vmatpush1.bf16.msra.mxu0 %v896
          %942 = vmatprep.subr.bf16.mxu0 %v900
          %943 = vmatpush1.bf16.msra.mxu0 %v899
          %944 = vmatprep.subr.bf16.mxu0 %v903
          %945 = vmatpush1.bf16.msra.mxu0 %v902
          %946 = vmatprep.subr.bf16.mxu0 %v906
          %947 = vmatpush1.bf16.msra.mxu0 %v905
          %948 = vmatprep.subr.bf16.mxu0 0
          %949 = vmatpush1.bf16.msra.mxu0 0
          %950 = vmatprep.subr.bf16.mxu0 0
          %951 = vmatpush1.bf16.msra.mxu0 0
          %952 = vmatprep.subr.bf16.mxu0 0
          %953 = vmatpush1.bf16.msra.mxu0 0
          %954 = vmatprep.subr.bf16.mxu0 0
          %955 = vmatpush1.bf16.msra.mxu0 0
          %956 = vmatprep.subr.bf16.mxu0 0
          %957 = vmatpush1.bf16.msra.mxu0 0
          %958 = vmatprep.subr.bf16.mxu0 0
          %959 = vmatpush1.bf16.msra.mxu0 0
          %960 = vmatprep.subr.bf16.mxu0 0
          %961 = vmatpush1.bf16.msra.mxu0 0
          %962 = vmatprep.subr.bf16.mxu0 0
          %963 = vmatpush1.bf16.msra.mxu0 0
          %964 = vmatprep.mubr.bf16.mxu0 0
          %965 = vmatmul.mubr.bf16.gmra.mrb[0].mxu0 %v747
          %v966 = vpop.f32.mrb[0].mxu0
          %v967 = vadd.f32 %v792, %v966
          %v968 = vpop.f32.mrb[0].mxu0
          %v969 = vadd.f32 %v796, %v968
          %v970 = vpop.f32.mrb[0].mxu0
          %v971 = vadd.f32 %v792, %v970
          %v972 = vpop.f32.mrb[0].mxu0
          %v973 = vadd.f32 %v796, %v972
          %974 = vmatprep.mubr.bf16.mxu0 0
          %975 = vmatmul.mubr.bf16.gmra.mrb[0].mxu0 %v748
          %v976 = vpop.f32.mrb[0].mxu0
          %v977 = vadd.f32 %v792, %v976
          %v978 = vpop.f32.mrb[0].mxu0
          %v979 = vadd.f32 %v796, %v978
          %v980 = vpop.f32.mrb[0].mxu0
          %v981 = vadd.f32 %v792, %v980
          %v982 = vpop.f32.mrb[0].mxu0
          %v983 = vadd.f32 %v796, %v982
          %984 = vmatprep.mubr.bf16.mxu0 0
          %985 = vmatmul.mubr.bf16.gmra.mrb[0].mxu0 %v749
          %v986 = vpop.f32.mrb[0].mxu0
          %v987 = vadd.f32 %v792, %v986
          %v988 = vpop.f32.mrb[0].mxu0
          %v989 = vadd.f32 %v796, %v988
          %v990 = vpop.f32.mrb[0].mxu0
          %v991 = vadd.f32 %v792, %v990
          %v992 = vpop.f32.mrb[0].mxu0
          %v993 = vadd.f32 %v796, %v992
          %994 = vmatprep.mubr.bf16.mxu0 0
          %995 = vmatmul.mubr.bf16.gmra.mrb[0].mxu0 %v750
          %v996 = vpop.f32.mrb[0].mxu0
          %v997 = vadd.f32 %v792, %v996
          %v998 = vpop.f32.mrb[0].mxu0
          %v999 = vadd.f32 %v796, %v998
          %v1000 = vpop.f32.mrb[0].mxu0
          %v1001 = vadd.f32 %v792, %v1000
          %v1002 = vpop.f32.mrb[0].mxu0
          %v1003 = vadd.f32 %v796, %v1002
          %1004 = vmatprep.mubr.bf16.mxu0 0
          %1005 = vmatmul.mubr.bf16.gmra.mrb[0].mxu0 %v751
          %v1006 = vpop.f32.mrb[0].mxu0
          %v1007 = vadd.f32 %v792, %v1006
          %v1008 = vpop.f32.mrb[0].mxu0
          %v1009 = vadd.f32 %v796, %v1008
          %v1010 = vpop.f32.mrb[0].mxu0
          %v1011 = vadd.f32 %v792, %v1010
          %v1012 = vpop.f32.mrb[0].mxu0
          %v1013 = vadd.f32 %v796, %v1012
          %1014 = vmatprep.mubr.bf16.mxu0 0
          %1015 = vmatmul.mubr.bf16.gmra.mrb[0].mxu0 %v752
          %v1016 = vpop.f32.mrb[0].mxu0
          %v1017 = vadd.f32 %v792, %v1016
          %v1018 = vpop.f32.mrb[0].mxu0
          %v1019 = vadd.f32 %v796, %v1018
          %v1020 = vpop.f32.mrb[0].mxu0
          %v1021 = vadd.f32 %v792, %v1020
          %v1022 = vpop.f32.mrb[0].mxu0
          %v1023 = vadd.f32 %v796, %v1022
          %1024 = vmatprep.mubr.bf16.mxu0 0
          %1025 = vmatmul.mubr.bf16.gmra.mrb[0].mxu0 %v753
          %v1026 = vpop.f32.mrb[0].mxu0
          %v1027 = vadd.f32 %v792, %v1026
          %v1028 = vpop.f32.mrb[0].mxu0
          %v1029 = vadd.f32 %v796, %v1028
          %v1030 = vpop.f32.mrb[0].mxu0
          %v1031 = vadd.f32 %v792, %v1030
          %v1032 = vpop.f32.mrb[0].mxu0
          %v1033 = vadd.f32 %v796, %v1032
          %1034 = vmatprep.mubr.bf16.mxu0 0
          %1035 = vmatmul.mubr.bf16.gmra.mrb[0].mxu0 %v754
          %v1036 = vpop.f32.mrb[0].mxu0
          %v1037 = vadd.f32 %v792, %v1036
          %v1038 = vpop.f32.mrb[0].mxu0
          %v1039 = vadd.f32 %v796, %v1038
          %v1040 = vpop.f32.mrb[0].mxu0
          %v1041 = vadd.f32 %v792, %v1040
          %v1042 = vpop.f32.mrb[0].mxu0
          %v1043 = vadd.f32 %v796, %v1042
          %1044 = vdwg.mxu0
          %1045 = vmatprep.subr.bf16.mxu0 0
          %1046 = vmatpush1.bf16.msra.mxu0 %v886
          %1047 = vmatprep.subr.bf16.mxu0 0
          %1048 = vmatpush1.bf16.msra.mxu0 %v889
          %1049 = vmatprep.subr.bf16.mxu0 0
          %1050 = vmatpush1.bf16.msra.mxu0 %v892
          %1051 = vmatprep.subr.bf16.mxu0 0
          %1052 = vmatpush1.bf16.msra.mxu0 %v895
          %1053 = vmatprep.subr.bf16.mxu0 0
          %1054 = vmatpush1.bf16.msra.mxu0 %v898
          %1055 = vmatprep.subr.bf16.mxu0 0
          %1056 = vmatpush1.bf16.msra.mxu0 %v901
          %1057 = vmatprep.subr.bf16.mxu0 0
          %1058 = vmatpush1.bf16.msra.mxu0 %v904
          %1059 = vmatprep.subr.bf16.mxu0 0
          %1060 = vmatpush1.bf16.msra.mxu0 %v907
          %1061 = vmatprep.subr.bf16.mxu0 0
          %1062 = vmatpush1.bf16.msra.mxu0 0
          %1063 = vmatprep.subr.bf16.mxu0 0
          %1064 = vmatpush1.bf16.msra.mxu0 0
          %1065 = vmatprep.subr.bf16.mxu0 0
          %1066 = vmatpush1.bf16.msra.mxu0 0
          %1067 = vmatprep.subr.bf16.mxu0 0
          %1068 = vmatpush1.bf16.msra.mxu0 0
          %1069 = vmatprep.subr.bf16.mxu0 0
          %1070 = vmatpush1.bf16.msra.mxu0 0
          %1071 = vmatprep.subr.bf16.mxu0 0
          %1072 = vmatpush1.bf16.msra.mxu0 0
          %1073 = vmatprep.subr.bf16.mxu0 0
          %1074 = vmatpush1.bf16.msra.mxu0 0
          %1075 = vmatprep.subr.bf16.mxu0 0
          %1076 = vmatpush1.bf16.msra.mxu0 0
          %1077 = vmatprep.mubr.bf16.mxu0 0
          %1078 = vmatmul.mubr.bf16.gmra.mrb[0].mxu0 %v747
          %v1079 = vpop.f32.mrb[0].mxu0
          %v1080 = vadd.f32 %v800, %v1079
          %v1081 = vpop.f32.mrb[0].mxu0
          %v1082 = vpop.f32.mrb[0].mxu0
          %v1083 = vadd.f32 %v800, %v1082
          %v1084 = vpop.f32.mrb[0].mxu0
          %1085 = vmatprep.mubr.bf16.mxu0 0
          %1086 = vmatmul.mubr.bf16.gmra.mrb[0].mxu0 %v748
          %v1087 = vpop.f32.mrb[0].mxu0
          %v1088 = vadd.f32 %v800, %v1087
          %v1089 = vpop.f32.mrb[0].mxu0
          %v1090 = vpop.f32.mrb[0].mxu0
          %v1091 = vadd.f32 %v800, %v1090
          %v1092 = vpop.f32.mrb[0].mxu0
          %1093 = vmatprep.mubr.bf16.mxu0 0
          %1094 = vmatmul.mubr.bf16.gmra.mrb[0].mxu0 %v749
          %v1095 = vpop.f32.mrb[0].mxu0
          %v1096 = vadd.f32 %v800, %v1095
          %v1097 = vpop.f32.mrb[0].mxu0
          %v1098 = vpop.f32.mrb[0].mxu0
          %v1099 = vadd.f32 %v800, %v1098
          %v1100 = vpop.f32.mrb[0].mxu0
          %1101 = vmatprep.mubr.bf16.mxu0 0
          %1102 = vmatmul.mubr.bf16.gmra.mrb[0].mxu0 %v750
          %v1103 = vpop.f32.mrb[0].mxu0
          %v1104 = vadd.f32 %v800, %v1103
          %v1105 = vpop.f32.mrb[0].mxu0
          %v1106 = vpop.f32.mrb[0].mxu0
          %v1107 = vadd.f32 %v800, %v1106
          %v1108 = vpop.f32.mrb[0].mxu0
          %1109 = vmatprep.mubr.bf16.mxu0 0
          %1110 = vmatmul.mubr.bf16.gmra.mrb[0].mxu0 %v751
          %v1111 = vpop.f32.mrb[0].mxu0
          %v1112 = vadd.f32 %v800, %v1111
          %v1113 = vpop.f32.mrb[0].mxu0
          %v1114 = vpop.f32.mrb[0].mxu0
          %v1115 = vadd.f32 %v800, %v1114
          %v1116 = vpop.f32.mrb[0].mxu0
          %1117 = vmatprep.mubr.bf16.mxu0 0
          %1118 = vmatmul.mubr.bf16.gmra.mrb[0].mxu0 %v752
          %v1119 = vpop.f32.mrb[0].mxu0
          %v1120 = vadd.f32 %v800, %v1119
          %v1121 = vpop.f32.mrb[0].mxu0
          %v1122 = vpop.f32.mrb[0].mxu0
          %v1123 = vadd.f32 %v800, %v1122
          %v1124 = vpop.f32.mrb[0].mxu0
          %1125 = vmatprep.mubr.bf16.mxu0 0
          %1126 = vmatmul.mubr.bf16.gmra.mrb[0].mxu0 %v753
          %v1127 = vpop.f32.mrb[0].mxu0
          %v1128 = vadd.f32 %v800, %v1127
          %v1129 = vpop.f32.mrb[0].mxu0
          %v1130 = vpop.f32.mrb[0].mxu0
          %v1131 = vadd.f32 %v800, %v1130
          %v1132 = vpop.f32.mrb[0].mxu0
          %1133 = vmatprep.mubr.bf16.mxu0 0
          %1134 = vmatmul.mubr.bf16.gmra.mrb[0].mxu0 %v754
          %v1135 = vpop.f32.mrb[0].mxu0
          %v1136 = vadd.f32 %v800, %v1135
          %v1137 = vpop.f32.mrb[0].mxu0
          %v1138 = vpop.f32.mrb[0].mxu0
          %v1139 = vadd.f32 %v800, %v1138
          %v1140 = vpop.f32.mrb[0].mxu0
          %1141 = vdwg.mxu0
          %v1142 = vxor.u32 %v967, 2147483648
          %v1143 = vxor.u32 %v969, 2147483648
          %v1144 = vxor.u32 %v1080, 2147483648
          %v1145 = vxor.u32 %v971, 2147483648
          %v1146 = vxor.u32 %v973, 2147483648
          %v1147 = vxor.u32 %v1083, 2147483648
          %v1148 = vxor.u32 %v977, 2147483648
          %v1149 = vxor.u32 %v979, 2147483648
          %v1150 = vxor.u32 %v1088, 2147483648
          %v1151 = vxor.u32 %v981, 2147483648
          %v1152 = vxor.u32 %v983, 2147483648
          %v1153 = vxor.u32 %v1091, 2147483648
          %v1154 = vxor.u32 %v987, 2147483648
          %v1155 = vxor.u32 %v989, 2147483648
          %v1156 = vxor.u32 %v1096, 2147483648
          %v1157 = vxor.u32 %v991, 2147483648
          %v1158 = vxor.u32 %v993, 2147483648
          %v1159 = vxor.u32 %v1099, 2147483648
          %v1160 = vxor.u32 %v997, 2147483648
          %v1161 = vxor.u32 %v999, 2147483648
          %v1162 = vxor.u32 %v1104, 2147483648
          %v1163 = vxor.u32 %v1001, 2147483648
          %v1164 = vxor.u32 %v1003, 2147483648
          %v1165 = vxor.u32 %v1107, 2147483648
          %v1166 = vxor.u32 %v1007, 2147483648
          %v1167 = vxor.u32 %v1009, 2147483648
          %v1168 = vxor.u32 %v1112, 2147483648
          %v1169 = vxor.u32 %v1011, 2147483648
          %v1170 = vxor.u32 %v1013, 2147483648
          %v1171 = vxor.u32 %v1115, 2147483648
          %v1172 = vxor.u32 %v1017, 2147483648
          %v1173 = vxor.u32 %v1019, 2147483648
          %v1174 = vxor.u32 %v1120, 2147483648
          %v1175 = vxor.u32 %v1021, 2147483648
          %v1176 = vxor.u32 %v1023, 2147483648
          %v1177 = vxor.u32 %v1123, 2147483648
          %v1178 = vxor.u32 %v1027, 2147483648
          %v1179 = vxor.u32 %v1029, 2147483648
          %v1180 = vxor.u32 %v1128, 2147483648
          %v1181 = vxor.u32 %v1031, 2147483648
          %v1182 = vxor.u32 %v1033, 2147483648
          %v1183 = vxor.u32 %v1131, 2147483648
          %v1184 = vxor.u32 %v1037, 2147483648
          %v1185 = vxor.u32 %v1039, 2147483648
          %v1186 = vxor.u32 %v1136, 2147483648
          %v1187 = vxor.u32 %v1041, 2147483648
          %v1188 = vxor.u32 %v1043, 2147483648
          %v1189 = vxor.u32 %v1139, 2147483648
          %v1190 = vmul.f32 %v1142, 1.442695
          %v1191 = vpow.pop %v1190
          %v1192 = vmul.f32 %v1143, 1.442695
          %v1193 = vpow.pop %v1192
          %v1194 = vmul.f32 %v1144, 1.442695
          %v1195 = vpow.pop %v1194
          %v1196 = vmul.f32 %v1145, 1.442695
          %v1197 = vpow.pop %v1196
          %v1198 = vmul.f32 %v1146, 1.442695
          %v1199 = vpow.pop %v1198
          %v1200 = vmul.f32 %v1147, 1.442695
          %v1201 = vpow.pop %v1200
          %v1202 = vmul.f32 %v1148, 1.442695
          %v1203 = vpow.pop %v1202
          %v1204 = vmul.f32 %v1149, 1.442695
          %v1205 = vpow.pop %v1204
          %v1206 = vmul.f32 %v1150, 1.442695
          %v1207 = vpow.pop %v1206
          %v1208 = vmul.f32 %v1151, 1.442695
          %v1209 = vpow.pop %v1208
          %v1210 = vmul.f32 %v1152, 1.442695
          %v1211 = vpow.pop %v1210
          %v1212 = vmul.f32 %v1153, 1.442695
          %v1213 = vpow.pop %v1212
          %v1214 = vmul.f32 %v1154, 1.442695
          %v1215 = vpow.pop %v1214
          %v1216 = vmul.f32 %v1155, 1.442695
          %v1217 = vpow.pop %v1216
          %v1218 = vmul.f32 %v1156, 1.442695
          %v1219 = vpow.pop %v1218
          %v1220 = vmul.f32 %v1157, 1.442695
          %v1221 = vpow.pop %v1220
          %v1222 = vmul.f32 %v1158, 1.442695
          %v1223 = vpow.pop %v1222
          %v1224 = vmul.f32 %v1159, 1.442695
          %v1225 = vpow.pop %v1224
          %v1226 = vmul.f32 %v1160, 1.442695
          %v1227 = vpow.pop %v1226
          %v1228 = vmul.f32 %v1161, 1.442695
          %v1229 = vpow.pop %v1228
          %v1230 = vmul.f32 %v1162, 1.442695
          %v1231 = vpow.pop %v1230
          %v1232 = vmul.f32 %v1163, 1.442695
          %v1233 = vpow.pop %v1232
          %v1234 = vmul.f32 %v1164, 1.442695
          %v1235 = vpow.pop %v1234
          %v1236 = vmul.f32 %v1165, 1.442695
          %v1237 = vpow.pop %v1236
          %v1238 = vmul.f32 %v1166, 1.442695
          %v1239 = vpow.pop %v1238
          %v1240 = vmul.f32 %v1167, 1.442695
          %v1241 = vpow.pop %v1240
          %v1242 = vmul.f32 %v1168, 1.442695
          %v1243 = vpow.pop %v1242
          %v1244 = vmul.f32 %v1169, 1.442695
          %v1245 = vpow.pop %v1244
          %v1246 = vmul.f32 %v1170, 1.442695
          %v1247 = vpow.pop %v1246
          %v1248 = vmul.f32 %v1171, 1.442695
          %v1249 = vpow.pop %v1248
          %v1250 = vmul.f32 %v1172, 1.442695
          %v1251 = vpow.pop %v1250
          %v1252 = vmul.f32 %v1173, 1.442695
          %v1253 = vpow.pop %v1252
          %v1254 = vmul.f32 %v1174, 1.442695
          %v1255 = vpow.pop %v1254
          %v1256 = vmul.f32 %v1175, 1.442695
          %v1257 = vpow.pop %v1256
          %v1258 = vmul.f32 %v1176, 1.442695
          %v1259 = vpow.pop %v1258
          %v1260 = vmul.f32 %v1177, 1.442695
          %v1261 = vpow.pop %v1260
          %v1262 = vmul.f32 %v1178, 1.442695
          %v1263 = vpow.pop %v1262
          %v1264 = vmul.f32 %v1179, 1.442695
          %v1265 = vpow.pop %v1264
          %v1266 = vmul.f32 %v1180, 1.442695
          %v1267 = vpow.pop %v1266
          %v1268 = vmul.f32 %v1181, 1.442695
          %v1269 = vpow.pop %v1268
          %v1270 = vmul.f32 %v1182, 1.442695
          %v1271 = vpow.pop %v1270
          %v1272 = vmul.f32 %v1183, 1.442695
          %v1273 = vpow.pop %v1272
          %v1274 = vmul.f32 %v1184, 1.442695
          %v1275 = vpow.pop %v1274
          %v1276 = vmul.f32 %v1185, 1.442695
          %v1277 = vpow.pop %v1276
          %v1278 = vmul.f32 %v1186, 1.442695
          %v1279 = vpow.pop %v1278
          %v1280 = vmul.f32 %v1187, 1.442695
          %v1281 = vpow.pop %v1280
          %v1282 = vmul.f32 %v1188, 1.442695
          %v1283 = vpow.pop %v1282
          %v1284 = vmul.f32 %v1189, 1.442695
          %v1285 = vpow.pop %v1284
          %v1286 = vadd.f32 %v1191, 1.0
          %v1287 = vadd.f32 %v1193, 1.0
          %v1288 = vadd.f32 %v1195, 1.0
          %v1289 = vadd.f32 %v1197, 1.0
          %v1290 = vadd.f32 %v1199, 1.0
          %v1291 = vadd.f32 %v1201, 1.0
          %v1292 = vadd.f32 %v1203, 1.0
          %v1293 = vadd.f32 %v1205, 1.0
          %v1294 = vadd.f32 %v1207, 1.0
          %v1295 = vadd.f32 %v1209, 1.0
          %v1296 = vadd.f32 %v1211, 1.0
          %v1297 = vadd.f32 %v1213, 1.0
          %v1298 = vadd.f32 %v1215, 1.0
          %v1299 = vadd.f32 %v1217, 1.0
          %v1300 = vadd.f32 %v1219, 1.0
          %v1301 = vadd.f32 %v1221, 1.0
          %v1302 = vadd.f32 %v1223, 1.0
          %v1303 = vadd.f32 %v1225, 1.0
          %v1304 = vadd.f32 %v1227, 1.0
          %v1305 = vadd.f32 %v1229, 1.0
          %v1306 = vadd.f32 %v1231, 1.0
          %v1307 = vadd.f32 %v1233, 1.0
          %v1308 = vadd.f32 %v1235, 1.0
          %v1309 = vadd.f32 %v1237, 1.0
          %v1310 = vadd.f32 %v1239, 1.0
          %v1311 = vadd.f32 %v1241, 1.0
          %v1312 = vadd.f32 %v1243, 1.0
          %v1313 = vadd.f32 %v1245, 1.0
          %v1314 = vadd.f32 %v1247, 1.0
          %v1315 = vadd.f32 %v1249, 1.0
          %v1316 = vadd.f32 %v1251, 1.0
          %v1317 = vadd.f32 %v1253, 1.0
          %v1318 = vadd.f32 %v1255, 1.0
          %v1319 = vadd.f32 %v1257, 1.0
          %v1320 = vadd.f32 %v1259, 1.0
          %v1321 = vadd.f32 %v1261, 1.0
          %v1322 = vadd.f32 %v1263, 1.0
          %v1323 = vadd.f32 %v1265, 1.0
          %v1324 = vadd.f32 %v1267, 1.0
          %v1325 = vadd.f32 %v1269, 1.0
          %v1326 = vadd.f32 %v1271, 1.0
          %v1327 = vadd.f32 %v1273, 1.0
          %v1328 = vadd.f32 %v1275, 1.0
          %v1329 = vadd.f32 %v1277, 1.0
          %v1330 = vadd.f32 %v1279, 1.0
          %v1331 = vadd.f32 %v1281, 1.0
          %v1332 = vadd.f32 %v1283, 1.0
          %v1333 = vadd.f32 %v1285, 1.0
          %v1334 = vrcp.pop %v1286
          %v1335 = vmul.f32 1.0, %v1334
          %v1336 = vrcp.pop %v1287
          %v1337 = vmul.f32 1.0, %v1336
          %v1338 = vrcp.pop %v1288
          %v1339 = vmul.f32 1.0, %v1338
          %v1340 = vrcp.pop %v1289
          %v1341 = vmul.f32 1.0, %v1340
          %v1342 = vrcp.pop %v1290
          %v1343 = vmul.f32 1.0, %v1342
          %v1344 = vrcp.pop %v1291
          %v1345 = vmul.f32 1.0, %v1344
          %v1346 = vrcp.pop %v1292
          %v1347 = vmul.f32 1.0, %v1346
          %v1348 = vrcp.pop %v1293
          %v1349 = vmul.f32 1.0, %v1348
          %v1350 = vrcp.pop %v1294
          %v1351 = vmul.f32 1.0, %v1350
          %v1352 = vrcp.pop %v1295
          %v1353 = vmul.f32 1.0, %v1352
          %v1354 = vrcp.pop %v1296
          %v1355 = vmul.f32 1.0, %v1354
          %v1356 = vrcp.pop %v1297
          %v1357 = vmul.f32 1.0, %v1356
          %v1358 = vrcp.pop %v1298
          %v1359 = vmul.f32 1.0, %v1358
          %v1360 = vrcp.pop %v1299
          %v1361 = vmul.f32 1.0, %v1360
          %v1362 = vrcp.pop %v1300
          %v1363 = vmul.f32 1.0, %v1362
          %v1364 = vrcp.pop %v1301
          %v1365 = vmul.f32 1.0, %v1364
          %v1366 = vrcp.pop %v1302
          %v1367 = vmul.f32 1.0, %v1366
          %v1368 = vrcp.pop %v1303
          %v1369 = vmul.f32 1.0, %v1368
          %v1370 = vrcp.pop %v1304
          %v1371 = vmul.f32 1.0, %v1370
          %v1372 = vrcp.pop %v1305
          %v1373 = vmul.f32 1.0, %v1372
          %v1374 = vrcp.pop %v1306
          %v1375 = vmul.f32 1.0, %v1374
          %v1376 = vrcp.pop %v1307
          %v1377 = vmul.f32 1.0, %v1376
          %v1378 = vrcp.pop %v1308
          %v1379 = vmul.f32 1.0, %v1378
          %v1380 = vrcp.pop %v1309
          %v1381 = vmul.f32 1.0, %v1380
          %v1382 = vrcp.pop %v1310
          %v1383 = vmul.f32 1.0, %v1382
          %v1384 = vrcp.pop %v1311
          %v1385 = vmul.f32 1.0, %v1384
          %v1386 = vrcp.pop %v1312
          %v1387 = vmul.f32 1.0, %v1386
          %v1388 = vrcp.pop %v1313
          %v1389 = vmul.f32 1.0, %v1388
          %v1390 = vrcp.pop %v1314
          %v1391 = vmul.f32 1.0, %v1390
          %v1392 = vrcp.pop %v1315
          %v1393 = vmul.f32 1.0, %v1392
          %v1394 = vrcp.pop %v1316
          %v1395 = vmul.f32 1.0, %v1394
          %v1396 = vrcp.pop %v1317
          %v1397 = vmul.f32 1.0, %v1396
          %v1398 = vrcp.pop %v1318
          %v1399 = vmul.f32 1.0, %v1398
          %v1400 = vrcp.pop %v1319
          %v1401 = vmul.f32 1.0, %v1400
          %v1402 = vrcp.pop %v1320
          %v1403 = vmul.f32 1.0, %v1402
          %v1404 = vrcp.pop %v1321
          %v1405 = vmul.f32 1.0, %v1404
          %v1406 = vrcp.pop %v1322
          %v1407 = vmul.f32 1.0, %v1406
          %v1408 = vrcp.pop %v1323
          %v1409 = vmul.f32 1.0, %v1408
          %v1410 = vrcp.pop %v1324
          %v1411 = vmul.f32 1.0, %v1410
          %v1412 = vrcp.pop %v1325
          %v1413 = vmul.f32 1.0, %v1412
          %v1414 = vrcp.pop %v1326
          %v1415 = vmul.f32 1.0, %v1414
          %v1416 = vrcp.pop %v1327
          %v1417 = vmul.f32 1.0, %v1416
          %v1418 = vrcp.pop %v1328
          %v1419 = vmul.f32 1.0, %v1418
          %v1420 = vrcp.pop %v1329
          %v1421 = vmul.f32 1.0, %v1420
          %v1422 = vrcp.pop %v1330
          %v1423 = vmul.f32 1.0, %v1422
          %v1424 = vrcp.pop %v1331
          %v1425 = vmul.f32 1.0, %v1424
          %v1426 = vrcp.pop %v1332
          %v1427 = vmul.f32 1.0, %v1426
          %v1428 = vrcp.pop %v1333
          %v1429 = vmul.f32 1.0, %v1428
          %v1430 = vmul.f32 %v967, %v1335
          %v1431 = vmul.f32 %v969, %v1337
          %v1432 = vmul.f32 %v1080, %v1339
          %v1433 = vmul.f32 %v971, %v1341
          %v1434 = vmul.f32 %v973, %v1343
          %v1435 = vmul.f32 %v1083, %v1345
          %v1436 = vmul.f32 %v977, %v1347
          %v1437 = vmul.f32 %v979, %v1349
          %v1438 = vmul.f32 %v1088, %v1351
          %v1439 = vmul.f32 %v981, %v1353
          %v1440 = vmul.f32 %v983, %v1355
          %v1441 = vmul.f32 %v1091, %v1357
          %v1442 = vmul.f32 %v987, %v1359
          %v1443 = vmul.f32 %v989, %v1361
          %v1444 = vmul.f32 %v1096, %v1363
          %v1445 = vmul.f32 %v991, %v1365
          %v1446 = vmul.f32 %v993, %v1367
          %v1447 = vmul.f32 %v1099, %v1369
          %v1448 = vmul.f32 %v997, %v1371
          %v1449 = vmul.f32 %v999, %v1373
          %v1450 = vmul.f32 %v1104, %v1375
          %v1451 = vmul.f32 %v1001, %v1377
          %v1452 = vmul.f32 %v1003, %v1379
          %v1453 = vmul.f32 %v1107, %v1381
          %v1454 = vmul.f32 %v1007, %v1383
          %v1455 = vmul.f32 %v1009, %v1385
          %v1456 = vmul.f32 %v1112, %v1387
          %v1457 = vmul.f32 %v1011, %v1389
          %v1458 = vmul.f32 %v1013, %v1391
          %v1459 = vmul.f32 %v1115, %v1393
          %v1460 = vmul.f32 %v1017, %v1395
          %v1461 = vmul.f32 %v1019, %v1397
          %v1462 = vmul.f32 %v1120, %v1399
          %v1463 = vmul.f32 %v1021, %v1401
          %v1464 = vmul.f32 %v1023, %v1403
          %v1465 = vmul.f32 %v1123, %v1405
          %v1466 = vmul.f32 %v1027, %v1407
          %v1467 = vmul.f32 %v1029, %v1409
          %v1468 = vmul.f32 %v1128, %v1411
          %v1469 = vmul.f32 %v1031, %v1413
          %v1470 = vmul.f32 %v1033, %v1415
          %v1471 = vmul.f32 %v1131, %v1417
          %v1472 = vmul.f32 %v1037, %v1419
          %v1473 = vmul.f32 %v1039, %v1421
          %v1474 = vmul.f32 %v1136, %v1423
          %v1475 = vmul.f32 %v1041, %v1425
          %v1476 = vmul.f32 %v1043, %v1427
          %v1477 = vmul.f32 %v1139, %v1429
          %1478 = vst [vmem:[#allocation2] sm:$0xff] %v1430
          %1479 = vst [vmem:[#allocation2 + $0x8] sm:$0xff] %v1431
          %1480 = vst [vmem:[#allocation2 + $0x10] sm:$0xff] %v1433
          %1481 = vst [vmem:[#allocation2 + $0x18] sm:$0xff] %v1434
          %1482 = vst [vmem:[#allocation2 + $0x20] sm:$0xff] %v1436
          %1483 = vst [vmem:[#allocation2 + $0x28] sm:$0xff] %v1437
          %1484 = vst [vmem:[#allocation2 + $0x30] sm:$0xff] %v1439
          %1485 = vst [vmem:[#allocation2 + $0x38] sm:$0xff] %v1440
          %1486 = vst [vmem:[#allocation2 + $0x40] sm:$0xff] %v1442
          %1487 = vst [vmem:[#allocation2 + $0x48] sm:$0xff] %v1443
          %1488 = vst [vmem:[#allocation2 + $0x50] sm:$0xff] %v1445
          %1489 = vst [vmem:[#allocation2 + $0x58] sm:$0xff] %v1446
          %1490 = vst [vmem:[#allocation2 + $0x60] sm:$0xff] %v1448
          %1491 = vst [vmem:[#allocation2 + $0x68] sm:$0xff] %v1449
          %1492 = vst [vmem:[#allocation2 + $0x70] sm:$0xff] %v1451
          %1493 = vst [vmem:[#allocation2 + $0x78] sm:$0xff] %v1452
          %1494 = vst [vmem:[#allocation2 + $0x80] sm:$0xff] %v1454
          %1495 = vst [vmem:[#allocation2 + $0x88] sm:$0xff] %v1455
          %1496 = vst [vmem:[#allocation2 + $0x90] sm:$0xff] %v1457
          %1497 = vst [vmem:[#allocation2 + $0x98] sm:$0xff] %v1458
          %1498 = vst [vmem:[#allocation2 + $0xa0] sm:$0xff] %v1460
          %1499 = vst [vmem:[#allocation2 + $0xa8] sm:$0xff] %v1461
          %1500 = vst [vmem:[#allocation2 + $0xb0] sm:$0xff] %v1463
          %1501 = vst [vmem:[#allocation2 + $0xb8] sm:$0xff] %v1464
          %1502 = vst [vmem:[#allocation2 + $0xc0] sm:$0xff] %v1466
          %1503 = vst [vmem:[#allocation2 + $0xc8] sm:$0xff] %v1467
          %1504 = vst [vmem:[#allocation2 + $0xd0] sm:$0xff] %v1469
          %1505 = vst [vmem:[#allocation2 + $0xd8] sm:$0xff] %v1470
          %1506 = vst [vmem:[#allocation2 + $0xe0] sm:$0xff] %v1472
          %1507 = vst [vmem:[#allocation2 + $0xe8] sm:$0xff] %v1473
          %1508 = vst [vmem:[#allocation2 + $0xf0] sm:$0xff] %v1475
          %1509 = vst [vmem:[#allocation2 + $0xf8] sm:$0xff] %v1476
          %v1510 = vld [vmem:[%s8] sm:$0x1]
          %v1511 = vlaneseq
          %v1512 = vshrl.u32 %v1511, 7
          %v1513 = vsub.s32 0, %v1512
          %v1514 = vrot.slane %v1510, %v1513
          %v1515 = vmul.f32 %v1432, %v1514
          %v1516 = vmul.f32 %v1435, %v1514
          %v1517 = vmul.f32 %v1438, %v1514
          %v1518 = vmul.f32 %v1441, %v1514
          %v1519 = vmul.f32 %v1444, %v1514
          %v1520 = vmul.f32 %v1447, %v1514
          %v1521 = vmul.f32 %v1450, %v1514
          %v1522 = vmul.f32 %v1453, %v1514
          %v1523 = vmul.f32 %v1456, %v1514
          %v1524 = vmul.f32 %v1459, %v1514
          %v1525 = vmul.f32 %v1462, %v1514
          %v1526 = vmul.f32 %v1465, %v1514
          %v1527 = vmul.f32 %v1468, %v1514
          %v1528 = vmul.f32 %v1471, %v1514
          %v1529 = vmul.f32 %v1474, %v1514
          %v1530 = vmul.f32 %v1477, %v1514
          %v1531 = vld [vmem:[%s8 + $0x2] sm:$0x1]
          %v1532 = vlaneseq
          %v1533 = vshrl.u32 %v1532, 7
          %v1534 = vsub.s32 0, %v1533
          %v1535 = vrot.slane %v1531, %v1534
          %v1536 = vadd.f32 %v1515, %v1535
          %v1537 = vadd.f32 %v1516, %v1535
          %v1538 = vadd.f32 %v1517, %v1535
          %v1539 = vadd.f32 %v1518, %v1535
          %v1540 = vadd.f32 %v1519, %v1535
          %v1541 = vadd.f32 %v1520, %v1535
          %v1542 = vadd.f32 %v1521, %v1535
          %v1543 = vadd.f32 %v1522, %v1535
          %v1544 = vadd.f32 %v1523, %v1535
          %v1545 = vadd.f32 %v1524, %v1535
          %v1546 = vadd.f32 %v1525, %v1535
          %v1547 = vadd.f32 %v1526, %v1535
          %v1548 = vadd.f32 %v1527, %v1535
          %v1549 = vadd.f32 %v1528, %v1535
          %v1550 = vadd.f32 %v1529, %v1535
          %v1551 = vadd.f32 %v1530, %v1535
          %v1552 = vpack.c.bf16 %v1537, %v1536
          %v1553 = vpack.c.bf16 %v1539, %v1538
          %v1554 = vpack.c.bf16 %v1541, %v1540
          %v1555 = vpack.c.bf16 %v1543, %v1542
          %v1556 = vpack.c.bf16 %v1545, %v1544
          %v1557 = vpack.c.bf16 %v1547, %v1546
          %v1558 = vpack.c.bf16 %v1549, %v1548
          %v1559 = vpack.c.bf16 %v1551, %v1550
          %1560 = vst [vmem:[#allocation3] sm:$0xff] %v1552
          %1561 = vst [vmem:[#allocation3 + $0x8] sm:$0xff] %v1553
          %1562 = vst [vmem:[#allocation3 + $0x10] sm:$0xff] %v1554
          %1563 = vst [vmem:[#allocation3 + $0x18] sm:$0xff] %v1555
          %1564 = vst [vmem:[#allocation3 + $0x20] sm:$0xff] %v1556
          %1565 = vst [vmem:[#allocation3 + $0x28] sm:$0xff] %v1557
          %1566 = vst [vmem:[#allocation3 + $0x30] sm:$0xff] %v1558
          %1567 = vst [vmem:[#allocation3 + $0x38] sm:$0xff] %v1559
          %1568 = vst [vmem:[#allocation4] sm:$0xff] 0.0
          %1569 = vst [vmem:[#allocation4 + $0x8] sm:$0xff] 0.0
          %1570 = vst [vmem:[#allocation4 + $0x10] sm:$0xff] 0.0
          %1571 = vst [vmem:[#allocation4 + $0x18] sm:$0xff] 0.0
          %1572 = vst [vmem:[#allocation4 + $0x20] sm:$0xff] 0.0
          %1573 = vst [vmem:[#allocation4 + $0x28] sm:$0xff] 0.0
          %1574 = vst [vmem:[#allocation4 + $0x30] sm:$0xff] 0.0
          %1575 = vst [vmem:[#allocation4 + $0x38] sm:$0xff] 0.0
          %1576 = vst [vmem:[#allocation4 + $0x40] sm:$0xff] 0.0
          %1577 = vst [vmem:[#allocation4 + $0x48] sm:$0xff] 0.0
          %1578 = vst [vmem:[#allocation4 + $0x50] sm:$0xff] 0.0
          %1579 = vst [vmem:[#allocation4 + $0x58] sm:$0xff] 0.0
          %1580 = vst [vmem:[#allocation4 + $0x60] sm:$0xff] 0.0
          %1581 = vst [vmem:[#allocation4 + $0x68] sm:$0xff] 0.0
          %1582 = vst [vmem:[#allocation4 + $0x70] sm:$0xff] 0.0
          %1583 = vst [vmem:[#allocation4 + $0x78] sm:$0xff] 0.0
          %1584 = vst [vmem:[#allocation4 + $0x80] sm:$0xff] 0.0
          %1585 = vst [vmem:[#allocation4 + $0x88] sm:$0xff] 0.0
          %1586 = vst [vmem:[#allocation4 + $0x90] sm:$0xff] 0.0
          %1587 = vst [vmem:[#allocation4 + $0x98] sm:$0xff] 0.0
          %1588 = vst [vmem:[#allocation4 + $0xa0] sm:$0xff] 0.0
          %1589 = vst [vmem:[#allocation4 + $0xa8] sm:$0xff] 0.0
          %1590 = vst [vmem:[#allocation4 + $0xb0] sm:$0xff] 0.0
          %1591 = vst [vmem:[#allocation4 + $0xb8] sm:$0xff] 0.0
          %1592 = vst [vmem:[#allocation4 + $0xc0] sm:$0xff] 0.0
          %1593 = vst [vmem:[#allocation4 + $0xc8] sm:$0xff] 0.0
          %1594 = vst [vmem:[#allocation4 + $0xd0] sm:$0xff] 0.0
          %1595 = vst [vmem:[#allocation4 + $0xd8] sm:$0xff] 0.0
          %1596 = vst [vmem:[#allocation4 + $0xe0] sm:$0xff] 0.0
          %1597 = vst [vmem:[#allocation4 + $0xe8] sm:$0xff] 0.0
          %1598 = vst [vmem:[#allocation4 + $0xf0] sm:$0xff] 0.0
          %1599 = vst [vmem:[#allocation4 + $0xf8] sm:$0xff] 0.0
        $region96: #{tpu_custom_call.1} parent=63 // pred_fallthru
          _
        %v1600 = vld [vmem:[%s500] sm:$0xf]
        %v1601 = vld [vmem:[%s500 + $0x4] sm:$0xf]
        %v1602 = vld [vmem:[%s500 + $0x8] sm:$0xf]
        %v1603 = vld [vmem:[%s500 + $0xc] sm:$0xf]
        %v1604 = vld [vmem:[%s500 + $0x10] sm:$0xf]
        %v1605 = vld [vmem:[%s500 + $0x14] sm:$0xf]
        %v1606 = vld [vmem:[%s500 + $0x18] sm:$0xf]
        %v1607 = vld [vmem:[%s500 + $0x1c] sm:$0xf]
        %v1608 = vld [vmem:[%s500 + $0x20] sm:$0xf]
        %v1609 = vld [vmem:[%s500 + $0x24] sm:$0xf]
        %v1610 = vld [vmem:[%s500 + $0x28] sm:$0xf]
        %v1611 = vld [vmem:[%s500 + $0x2c] sm:$0xf]
        %v1612 = vld [vmem:[%s500 + $0x30] sm:$0xf]
        %v1613 = vld [vmem:[%s500 + $0x34] sm:$0xf]
        %v1614 = vld [vmem:[%s500 + $0x38] sm:$0xf]
        %v1615 = vld [vmem:[%s500 + $0x3c] sm:$0xf]
        %v1616 = vunpack.c.l.bf16 %v1600
        %v1617 = vunpack.c.l.bf16 %v1601
        %v1618 = vunpack.c.l.bf16 %v1602
        %v1619 = vunpack.c.l.bf16 %v1603
        %v1620 = vunpack.c.l.bf16 %v1604
        %v1621 = vunpack.c.l.bf16 %v1605
        %v1622 = vunpack.c.l.bf16 %v1606
        %v1623 = vunpack.c.l.bf16 %v1607
        %v1624 = vunpack.c.l.bf16 %v1608
        %v1625 = vunpack.c.l.bf16 %v1609
        %v1626 = vunpack.c.l.bf16 %v1610
        %v1627 = vunpack.c.l.bf16 %v1611
        %v1628 = vunpack.c.l.bf16 %v1612
        %v1629 = vunpack.c.l.bf16 %v1613
        %v1630 = vunpack.c.l.bf16 %v1614
        %v1631 = vunpack.c.l.bf16 %v1615
        %s1632 = sld [smem:[#allocation17]]
        %v1633 = vmul.f32 %v1616, %v1616
        %v1634 = vmul.f32 %v1617, %v1617
        %v1635 = vmul.f32 %v1618, %v1618
        %v1636 = vmul.f32 %v1619, %v1619
        %v1637 = vmul.f32 %v1620, %v1620
        %v1638 = vmul.f32 %v1621, %v1621
        %v1639 = vmul.f32 %v1622, %v1622
        %v1640 = vmul.f32 %v1623, %v1623
        %v1641 = vmul.f32 %v1624, %v1624
        %v1642 = vmul.f32 %v1625, %v1625
        %v1643 = vmul.f32 %v1626, %v1626
        %v1644 = vmul.f32 %v1627, %v1627
        %v1645 = vmul.f32 %v1628, %v1628
        %v1646 = vmul.f32 %v1629, %v1629
        %v1647 = vmul.f32 %v1630, %v1630
        %v1648 = vmul.f32 %v1631, %v1631
        %1649 = vadd.xlane.f32.xlu0 %v1633
        %v1650 = vpop.xlane.xlu0 %1649
        %1651 = vadd.xlane.f32.xlu0 %v1634
        %v1652 = vpop.xlane.xlu0 %1651
        %1653 = vadd.xlane.f32.xlu0 %v1635
        %v1654 = vpop.xlane.xlu0 %1653
        %1655 = vadd.xlane.f32.xlu0 %v1636
        %v1656 = vpop.xlane.xlu0 %1655
        %1657 = vadd.xlane.f32.xlu0 %v1637
        %v1658 = vpop.xlane.xlu0 %1657
        %1659 = vadd.xlane.f32.xlu0 %v1638
        %v1660 = vpop.xlane.xlu0 %1659
        %1661 = vadd.xlane.f32.xlu0 %v1639
        %v1662 = vpop.xlane.xlu0 %1661
        %1663 = vadd.xlane.f32.xlu0 %v1640
        %v1664 = vpop.xlane.xlu0 %1663
        %1665 = vadd.xlane.f32.xlu0 %v1641
        %v1666 = vpop.xlane.xlu0 %1665
        %1667 = vadd.xlane.f32.xlu0 %v1642
        %v1668 = vpop.xlane.xlu0 %1667
        %1669 = vadd.xlane.f32.xlu0 %v1643
        %v1670 = vpop.xlane.xlu0 %1669
        %1671 = vadd.xlane.f32.xlu0 %v1644
        %v1672 = vpop.xlane.xlu0 %1671
        %1673 = vadd.xlane.f32.xlu0 %v1645
        %v1674 = vpop.xlane.xlu0 %1673
        %1675 = vadd.xlane.f32.xlu0 %v1646
        %v1676 = vpop.xlane.xlu0 %1675
        %1677 = vadd.xlane.f32.xlu0 %v1647
        %v1678 = vpop.xlane.xlu0 %1677
        %1679 = vadd.xlane.f32.xlu0 %v1648
        %v1680 = vpop.xlane.xlu0 %1679
        %v1681 = vrcp.pop 128.0
        %v1682 = vmul.f32 %v1650, %v1681
        %v1683 = vmul.f32 %v1652, %v1681
        %v1684 = vmul.f32 %v1654, %v1681
        %v1685 = vmul.f32 %v1656, %v1681
        %v1686 = vmul.f32 %v1658, %v1681
        %v1687 = vmul.f32 %v1660, %v1681
        %v1688 = vmul.f32 %v1662, %v1681
        %v1689 = vmul.f32 %v1664, %v1681
        %v1690 = vmul.f32 %v1666, %v1681
        %v1691 = vmul.f32 %v1668, %v1681
        %v1692 = vmul.f32 %v1670, %v1681
        %v1693 = vmul.f32 %v1672, %v1681
        %v1694 = vmul.f32 %v1674, %v1681
        %v1695 = vmul.f32 %v1676, %v1681
        %v1696 = vmul.f32 %v1678, %v1681
        %v1697 = vmul.f32 %v1680, %v1681
        %v1698 = vstv %s1632
        %v1699 = vmul.f32 %v1698, %v1616
        %v1700 = vmul.f32 %v1698, %v1617
        %v1701 = vmul.f32 %v1698, %v1618
        %v1702 = vmul.f32 %v1698, %v1619
        %v1703 = vmul.f32 %v1698, %v1620
        %v1704 = vmul.f32 %v1698, %v1621
        %v1705 = vmul.f32 %v1698, %v1622
        %v1706 = vmul.f32 %v1698, %v1623
        %v1707 = vmul.f32 %v1698, %v1624
        %v1708 = vmul.f32 %v1698, %v1625
        %v1709 = vmul.f32 %v1698, %v1626
        %v1710 = vmul.f32 %v1698, %v1627
        %v1711 = vmul.f32 %v1698, %v1628
        %v1712 = vmul.f32 %v1698, %v1629
        %v1713 = vmul.f32 %v1698, %v1630
        %v1714 = vmul.f32 %v1698, %v1631
        %v1715 = vadd.f32 %v1682, 1e-06
        %v1716 = vadd.f32 %v1683, 1e-06
        %v1717 = vadd.f32 %v1684, 1e-06
        %v1718 = vadd.f32 %v1685, 1e-06
        %v1719 = vadd.f32 %v1686, 1e-06
        %v1720 = vadd.f32 %v1687, 1e-06
        %v1721 = vadd.f32 %v1688, 1e-06
        %v1722 = vadd.f32 %v1689, 1e-06
        %v1723 = vadd.f32 %v1690, 1e-06
        %v1724 = vadd.f32 %v1691, 1e-06
        %v1725 = vadd.f32 %v1692, 1e-06
        %v1726 = vadd.f32 %v1693, 1e-06
        %v1727 = vadd.f32 %v1694, 1e-06
        %v1728 = vadd.f32 %v1695, 1e-06
        %v1729 = vadd.f32 %v1696, 1e-06
        %v1730 = vadd.f32 %v1697, 1e-06
        %v1731 = vrsqrt.pop %v1715
        %v1732 = vrsqrt.pop %v1716
        %v1733 = vrsqrt.pop %v1717
        %v1734 = vrsqrt.pop %v1718
        %v1735 = vrsqrt.pop %v1719
        %v1736 = vrsqrt.pop %v1720
        %v1737 = vrsqrt.pop %v1721
        %v1738 = vrsqrt.pop %v1722
        %v1739 = vrsqrt.pop %v1723
        %v1740 = vrsqrt.pop %v1724
        %v1741 = vrsqrt.pop %v1725
        %v1742 = vrsqrt.pop %v1726
        %v1743 = vrsqrt.pop %v1727
        %v1744 = vrsqrt.pop %v1728
        %v1745 = vrsqrt.pop %v1729
        %v1746 = vrsqrt.pop %v1730
        %v1747 = vmul.f32 %v1699, %v1731
        %v1748 = vmul.f32 %v1700, %v1732
        %v1749 = vmul.f32 %v1701, %v1733
        %v1750 = vmul.f32 %v1702, %v1734
        %v1751 = vmul.f32 %v1703, %v1735
        %v1752 = vmul.f32 %v1704, %v1736
        %v1753 = vmul.f32 %v1705, %v1737
        %v1754 = vmul.f32 %v1706, %v1738
        %v1755 = vmul.f32 %v1707, %v1739
        %v1756 = vmul.f32 %v1708, %v1740
        %v1757 = vmul.f32 %v1709, %v1741
        %v1758 = vmul.f32 %v1710, %v1742
        %v1759 = vmul.f32 %v1711, %v1743
        %v1760 = vmul.f32 %v1712, %v1744
        %v1761 = vmul.f32 %v1713, %v1745
        %v1762 = vmul.f32 %v1714, %v1746
        %v1763 = vpack.c.bf16 %v1748, %v1747
        %v1764 = vpack.c.bf16 %v1750, %v1749
        %v1765 = vpack.c.bf16 %v1752, %v1751
        %v1766 = vpack.c.bf16 %v1754, %v1753
        %v1767 = vpack.c.bf16 %v1756, %v1755
        %v1768 = vpack.c.bf16 %v1758, %v1757
        %v1769 = vpack.c.bf16 %v1760, %v1759
        %v1770 = vpack.c.bf16 %v1762, %v1761
        %v1771 = vld [vmem:[#allocation12] sm:$0xff]
        %v1772 = vld [vmem:[#allocation12 + $0x8] sm:$0xf]
        %v1773 = vld [vmem:[#allocation12 + $0xc] sm:$0xff]
        %v1774 = vld [vmem:[#allocation12 + $0x14] sm:$0xf]
        %v1775 = vld [vmem:[#allocation12 + $0x18] sm:$0xff]
        %v1776 = vld [vmem:[#allocation12 + $0x20] sm:$0xf]
        %v1777 = vld [vmem:[#allocation12 + $0x24] sm:$0xff]
        %v1778 = vld [vmem:[#allocation12 + $0x2c] sm:$0xf]
        %v1779 = vld [vmem:[#allocation12 + $0x30] sm:$0xff]
        %v1780 = vld [vmem:[#allocation12 + $0x38] sm:$0xf]
        %v1781 = vld [vmem:[#allocation12 + $0x3c] sm:$0xff]
        %v1782 = vld [vmem:[#allocation12 + $0x44] sm:$0xf]
        %v1783 = vld [vmem:[#allocation12 + $0x48] sm:$0xff]
        %v1784 = vld [vmem:[#allocation12 + $0x50] sm:$0xf]
        %v1785 = vld [vmem:[#allocation12 + $0x54] sm:$0xff]
        %v1786 = vld [vmem:[#allocation12 + $0x5c] sm:$0xf]
        %v1787 = vld [vmem:[#allocation12 + $0x60] sm:$0xff]
        %v1788 = vld [vmem:[#allocation12 + $0x68] sm:$0xf]
        %v1789 = vld [vmem:[#allocation12 + $0x6c] sm:$0xff]
        %v1790 = vld [vmem:[#allocation12 + $0x74] sm:$0xf]
        %v1791 = vld [vmem:[#allocation12 + $0x78] sm:$0xff]
        %v1792 = vld [vmem:[#allocation12 + $0x80] sm:$0xf]
        %v1793 = vld [vmem:[#allocation12 + $0x84] sm:$0xff]
        %v1794 = vld [vmem:[#allocation12 + $0x8c] sm:$0xf]
        %v1795 = vld [vmem:[#allocation12 + $0x90] sm:$0xff]
        %v1796 = vld [vmem:[#allocation12 + $0x98] sm:$0xf]
        %v1797 = vld [vmem:[#allocation12 + $0x9c] sm:$0xff]
        %v1798 = vld [vmem:[#allocation12 + $0xa4] sm:$0xf]
        %v1799 = vld [vmem:[#allocation12 + $0xa8] sm:$0xff]
        %v1800 = vld [vmem:[#allocation12 + $0xb0] sm:$0xf]
        %v1801 = vld [vmem:[#allocation12 + $0xb4] sm:$0xff]
        %v1802 = vld [vmem:[#allocation12 + $0xbc] sm:$0xf]
        %v1803 = vld [vmem:[%s5] sm:$0x7]
        %v1805 = vlaneseq
        %v1806 = vshrl.u32 %v1805, 7
        %v1807 = vsub.s32 0, %v1806
        %v1808 = vrot.slane %v1803, %v1807
        %v1809 = vlaneseq
        %v1810 = vshrl.u32 %v1809, 7
        %v1811 = vsub.s32 1, %v1810
        %v1812 = vrot.slane %v1803, %v1811
        %v1813 = vlaneseq
        %v1814 = vshrl.u32 %v1813, 7
        %v1815 = vsub.s32 2, %v1814
        %v1816 = vrot.slane %v1803, %v1815
        %v1852 = vunpack.c.l.b16 %v1771
        %v1853 = vunpack.c.h.b16 %v1771
        %v1854 = vunpack.c.l.b16 %v1772
        %v1855 = vunpack.c.l.b16 %v1773
        %v1856 = vunpack.c.h.b16 %v1773
        %v1857 = vunpack.c.l.b16 %v1774
        %v1858 = vunpack.c.l.b16 %v1775
        %v1859 = vunpack.c.h.b16 %v1775
        %v1860 = vunpack.c.l.b16 %v1776
        %v1861 = vunpack.c.l.b16 %v1777
        %v1862 = vunpack.c.h.b16 %v1777
        %v1863 = vunpack.c.l.b16 %v1778
        %v1864 = vunpack.c.l.b16 %v1779
        %v1865 = vunpack.c.h.b16 %v1779
        %v1866 = vunpack.c.l.b16 %v1780
        %v1867 = vunpack.c.l.b16 %v1781
        %v1868 = vunpack.c.h.b16 %v1781
        %v1869 = vunpack.c.l.b16 %v1782
        %v1870 = vunpack.c.l.b16 %v1783
        %v1871 = vunpack.c.h.b16 %v1783
        %v1872 = vunpack.c.l.b16 %v1784
        %v1873 = vunpack.c.l.b16 %v1785
        %v1874 = vunpack.c.h.b16 %v1785
        %v1875 = vunpack.c.l.b16 %v1786
        %v1876 = vunpack.c.l.b16 %v1787
        %v1877 = vunpack.c.h.b16 %v1787
        %v1878 = vunpack.c.l.b16 %v1788
        %v1879 = vunpack.c.l.b16 %v1789
        %v1880 = vunpack.c.h.b16 %v1789
        %v1881 = vunpack.c.l.b16 %v1790
        %v1882 = vunpack.c.l.b16 %v1791
        %v1883 = vunpack.c.h.b16 %v1791
        %v1884 = vunpack.c.l.b16 %v1792
        %v1885 = vunpack.c.l.b16 %v1793
        %v1886 = vunpack.c.h.b16 %v1793
        %v1887 = vunpack.c.l.b16 %v1794
        %v1888 = vunpack.c.l.b16 %v1795
        %v1889 = vunpack.c.h.b16 %v1795
        %v1890 = vunpack.c.l.b16 %v1796
        %v1891 = vunpack.c.l.b16 %v1797
        %v1892 = vunpack.c.h.b16 %v1797
        %v1893 = vunpack.c.l.b16 %v1798
        %v1894 = vunpack.c.l.b16 %v1799
        %v1895 = vunpack.c.h.b16 %v1799
        %v1896 = vunpack.c.l.b16 %v1800
        %v1897 = vunpack.c.l.b16 %v1801
        %v1898 = vunpack.c.h.b16 %v1801
        %v1899 = vunpack.c.l.b16 %v1802
        %v1900 = vpack.c.b16 %v1855, %v1852
        %v1901 = vpack.c.b16 %v1856, %v1853
        %v1902 = vpack.c.b16 %v1857, %v1854
        %v1903 = vpack.c.b16 %v1861, %v1858
        %v1904 = vpack.c.b16 %v1862, %v1859
        %v1905 = vpack.c.b16 %v1863, %v1860
        %v1906 = vpack.c.b16 %v1867, %v1864
        %v1907 = vpack.c.b16 %v1868, %v1865
        %v1908 = vpack.c.b16 %v1869, %v1866
        %v1909 = vpack.c.b16 %v1873, %v1870
        %v1910 = vpack.c.b16 %v1874, %v1871
        %v1911 = vpack.c.b16 %v1875, %v1872
        %v1912 = vpack.c.b16 %v1879, %v1876
        %v1913 = vpack.c.b16 %v1880, %v1877
        %v1914 = vpack.c.b16 %v1881, %v1878
        %v1915 = vpack.c.b16 %v1885, %v1882
        %v1916 = vpack.c.b16 %v1886, %v1883
        %v1917 = vpack.c.b16 %v1887, %v1884
        %v1918 = vpack.c.b16 %v1891, %v1888
        %v1919 = vpack.c.b16 %v1892, %v1889
        %v1920 = vpack.c.b16 %v1893, %v1890
        %v1921 = vpack.c.b16 %v1897, %v1894
        %v1922 = vpack.c.b16 %v1898, %v1895
        %v1923 = vpack.c.b16 %v1899, %v1896
        %1948 = vmatprep.subr.bf16.mxu0 %v1901
        %1949 = vmatpush1.bf16.msra.mxu0 %v1900
        %1950 = vmatprep.subr.bf16.mxu0 %v1904
        %1951 = vmatpush1.bf16.msra.mxu0 %v1903
        %1952 = vmatprep.subr.bf16.mxu0 %v1907
        %1953 = vmatpush1.bf16.msra.mxu0 %v1906
        %1954 = vmatprep.subr.bf16.mxu0 %v1910
        %1955 = vmatpush1.bf16.msra.mxu0 %v1909
        %1956 = vmatprep.subr.bf16.mxu0 %v1913
        %1957 = vmatpush1.bf16.msra.mxu0 %v1912
        %1958 = vmatprep.subr.bf16.mxu0 %v1916
        %1959 = vmatpush1.bf16.msra.mxu0 %v1915
        %1960 = vmatprep.subr.bf16.mxu0 %v1919
        %1961 = vmatpush1.bf16.msra.mxu0 %v1918
        %1962 = vmatprep.subr.bf16.mxu0 %v1922
        %1963 = vmatpush1.bf16.msra.mxu0 %v1921
        %1964 = vmatprep.subr.bf16.mxu0 0
        %1965 = vmatpush1.bf16.msra.mxu0 0
        %1966 = vmatprep.subr.bf16.mxu0 0
        %1967 = vmatpush1.bf16.msra.mxu0 0
        %1968 = vmatprep.subr.bf16.mxu0 0
        %1969 = vmatpush1.bf16.msra.mxu0 0
        %1970 = vmatprep.subr.bf16.mxu0 0
        %1971 = vmatpush1.bf16.msra.mxu0 0
        %1972 = vmatprep.subr.bf16.mxu0 0
        %1973 = vmatpush1.bf16.msra.mxu0 0
        %1974 = vmatprep.subr.bf16.mxu0 0
        %1975 = vmatpush1.bf16.msra.mxu0 0
        %1976 = vmatprep.subr.bf16.mxu0 0
        %1977 = vmatpush1.bf16.msra.mxu0 0
        %1978 = vmatprep.subr.bf16.mxu0 0
        %1979 = vmatpush1.bf16.msra.mxu0 0
        %1980 = vmatprep.mubr.bf16.mxu0 0
        %1981 = vmatmul.mubr.bf16.gmra.mrb[0].mxu0 %v1763
        %v1982 = vpop.f32.mrb[0].mxu0
        %v1983 = vadd.f32 %v1808, %v1982
        %v1984 = vpop.f32.mrb[0].mxu0
        %v1985 = vadd.f32 %v1812, %v1984
        %v1986 = vpop.f32.mrb[0].mxu0
        %v1987 = vadd.f32 %v1808, %v1986
        %v1988 = vpop.f32.mrb[0].mxu0
        %v1989 = vadd.f32 %v1812, %v1988
        %1990 = vmatprep.mubr.bf16.mxu0 0
        %1991 = vmatmul.mubr.bf16.gmra.mrb[0].mxu0 %v1764
        %v1992 = vpop.f32.mrb[0].mxu0
        %v1993 = vadd.f32 %v1808, %v1992
        %v1994 = vpop.f32.mrb[0].mxu0
        %v1995 = vadd.f32 %v1812, %v1994
        %v1996 = vpop.f32.mrb[0].mxu0
        %v1997 = vadd.f32 %v1808, %v1996
        %v1998 = vpop.f32.mrb[0].mxu0
        %v1999 = vadd.f32 %v1812, %v1998
        %2000 = vmatprep.mubr.bf16.mxu0 0
        %2001 = vmatmul.mubr.bf16.gmra.mrb[0].mxu0 %v1765
        %v2002 = vpop.f32.mrb[0].mxu0
        %v2003 = vadd.f32 %v1808, %v2002
        %v2004 = vpop.f32.mrb[0].mxu0
        %v2005 = vadd.f32 %v1812, %v2004
        %v2006 = vpop.f32.mrb[0].mxu0
        %v2007 = vadd.f32 %v1808, %v2006
        %v2008 = vpop.f32.mrb[0].mxu0
        %v2009 = vadd.f32 %v1812, %v2008
        %2010 = vmatprep.mubr.bf16.mxu0 0
        %2011 = vmatmul.mubr.bf16.gmra.mrb[0].mxu0 %v1766
        %v2012 = vpop.f32.mrb[0].mxu0
        %v2013 = vadd.f32 %v1808, %v2012
        %v2014 = vpop.f32.mrb[0].mxu0
        %v2015 = vadd.f32 %v1812, %v2014
        %v2016 = vpop.f32.mrb[0].mxu0
        %v2017 = vadd.f32 %v1808, %v2016
        %v2018 = vpop.f32.mrb[0].mxu0
        %v2019 = vadd.f32 %v1812, %v2018
        %2020 = vmatprep.mubr.bf16.mxu0 0
        %2021 = vmatmul.mubr.bf16.gmra.mrb[0].mxu0 %v1767
        %v2022 = vpop.f32.mrb[0].mxu0
        %v2023 = vadd.f32 %v1808, %v2022
        %v2024 = vpop.f32.mrb[0].mxu0
        %v2025 = vadd.f32 %v1812, %v2024
        %v2026 = vpop.f32.mrb[0].mxu0
        %v2027 = vadd.f32 %v1808, %v2026
        %v2028 = vpop.f32.mrb[0].mxu0
        %v2029 = vadd.f32 %v1812, %v2028
        %2030 = vmatprep.mubr.bf16.mxu0 0
        %2031 = vmatmul.mubr.bf16.gmra.mrb[0].mxu0 %v1768
        %v2032 = vpop.f32.mrb[0].mxu0
        %v2033 = vadd.f32 %v1808, %v2032
        %v2034 = vpop.f32.mrb[0].mxu0
        %v2035 = vadd.f32 %v1812, %v2034
        %v2036 = vpop.f32.mrb[0].mxu0
        %v2037 = vadd.f32 %v1808, %v2036
        %v2038 = vpop.f32.mrb[0].mxu0
        %v2039 = vadd.f32 %v1812, %v2038
        %2040 = vmatprep.mubr.bf16.mxu0 0
        %2041 = vmatmul.mubr.bf16.gmra.mrb[0].mxu0 %v1769
        %v2042 = vpop.f32.mrb[0].mxu0
        %v2043 = vadd.f32 %v1808, %v2042
        %v2044 = vpop.f32.mrb[0].mxu0
        %v2045 = vadd.f32 %v1812, %v2044
        %v2046 = vpop.f32.mrb[0].mxu0
        %v2047 = vadd.f32 %v1808, %v2046
        %v2048 = vpop.f32.mrb[0].mxu0
        %v2049 = vadd.f32 %v1812, %v2048
        %2050 = vmatprep.mubr.bf16.mxu0 0
        %2051 = vmatmul.mubr.bf16.gmra.mrb[0].mxu0 %v1770
        %v2052 = vpop.f32.mrb[0].mxu0
        %v2053 = vadd.f32 %v1808, %v2052
        %v2054 = vpop.f32.mrb[0].mxu0
        %v2055 = vadd.f32 %v1812, %v2054
        %v2056 = vpop.f32.mrb[0].mxu0
        %v2057 = vadd.f32 %v1808, %v2056
        %v2058 = vpop.f32.mrb[0].mxu0
        %v2059 = vadd.f32 %v1812, %v2058
        %2060 = vdwg.mxu0
        %2061 = vmatprep.subr.bf16.mxu0 0
        %2062 = vmatpush1.bf16.msra.mxu0 %v1902
        %2063 = vmatprep.subr.bf16.mxu0 0
        %2064 = vmatpush1.bf16.msra.mxu0 %v1905
        %2065 = vmatprep.subr.bf16.mxu0 0
        %2066 = vmatpush1.bf16.msra.mxu0 %v1908
        %2067 = vmatprep.subr.bf16.mxu0 0
        %2068 = vmatpush1.bf16.msra.mxu0 %v1911
        %2069 = vmatprep.subr.bf16.mxu0 0
        %2070 = vmatpush1.bf16.msra.mxu0 %v1914
        %2071 = vmatprep.subr.bf16.mxu0 0
        %2072 = vmatpush1.bf16.msra.mxu0 %v1917
        %2073 = vmatprep.subr.bf16.mxu0 0
        %2074 = vmatpush1.bf16.msra.mxu0 %v1920
        %2075 = vmatprep.subr.bf16.mxu0 0
        %2076 = vmatpush1.bf16.msra.mxu0 %v1923
        %2077 = vmatprep.subr.bf16.mxu0 0
        %2078 = vmatpush1.bf16.msra.mxu0 0
        %2079 = vmatprep.subr.bf16.mxu0 0
        %2080 = vmatpush1.bf16.msra.mxu0 0
        %2081 = vmatprep.subr.bf16.mxu0 0
        %2082 = vmatpush1.bf16.msra.mxu0 0
        %2083 = vmatprep.subr.bf16.mxu0 0
        %2084 = vmatpush1.bf16.msra.mxu0 0
        %2085 = vmatprep.subr.bf16.mxu0 0
        %2086 = vmatpush1.bf16.msra.mxu0 0
        %2087 = vmatprep.subr.bf16.mxu0 0
        %2088 = vmatpush1.bf16.msra.mxu0 0
        %2089 = vmatprep.subr.bf16.mxu0 0
        %2090 = vmatpush1.bf16.msra.mxu0 0
        %2091 = vmatprep.subr.bf16.mxu0 0
        %2092 = vmatpush1.bf16.msra.mxu0 0
        %2093 = vmatprep.mubr.bf16.mxu0 0
        %2094 = vmatmul.mubr.bf16.gmra.mrb[0].mxu0 %v1763
        %v2095 = vpop.f32.mrb[0].mxu0
        %v2096 = vadd.f32 %v1816, %v2095
        %v2097 = vpop.f32.mrb[0].mxu0
        %v2098 = vpop.f32.mrb[0].mxu0
        %v2099 = vadd.f32 %v1816, %v2098
        %v2100 = vpop.f32.mrb[0].mxu0
        %2101 = vmatprep.mubr.bf16.mxu0 0
        %2102 = vmatmul.mubr.bf16.gmra.mrb[0].mxu0 %v1764
        %v2103 = vpop.f32.mrb[0].mxu0
        %v2104 = vadd.f32 %v1816, %v2103
        %v2105 = vpop.f32.mrb[0].mxu0
        %v2106 = vpop.f32.mrb[0].mxu0
        %v2107 = vadd.f32 %v1816, %v2106
        %v2108 = vpop.f32.mrb[0].mxu0
        %2109 = vmatprep.mubr.bf16.mxu0 0
        %2110 = vmatmul.mubr.bf16.gmra.mrb[0].mxu0 %v1765
        %v2111 = vpop.f32.mrb[0].mxu0
        %v2112 = vadd.f32 %v1816, %v2111
        %v2113 = vpop.f32.mrb[0].mxu0
        %v2114 = vpop.f32.mrb[0].mxu0
        %v2115 = vadd.f32 %v1816, %v2114
        %v2116 = vpop.f32.mrb[0].mxu0
        %2117 = vmatprep.mubr.bf16.mxu0 0
        %2118 = vmatmul.mubr.bf16.gmra.mrb[0].mxu0 %v1766
        %v2119 = vpop.f32.mrb[0].mxu0
        %v2120 = vadd.f32 %v1816, %v2119
        %v2121 = vpop.f32.mrb[0].mxu0
        %v2122 = vpop.f32.mrb[0].mxu0
        %v2123 = vadd.f32 %v1816, %v2122
        %v2124 = vpop.f32.mrb[0].mxu0
        %2125 = vmatprep.mubr.bf16.mxu0 0
        %2126 = vmatmul.mubr.bf16.gmra.mrb[0].mxu0 %v1767
        %v2127 = vpop.f32.mrb[0].mxu0
        %v2128 = vadd.f32 %v1816, %v2127
        %v2129 = vpop.f32.mrb[0].mxu0
        %v2130 = vpop.f32.mrb[0].mxu0
        %v2131 = vadd.f32 %v1816, %v2130
        %v2132 = vpop.f32.mrb[0].mxu0
        %2133 = vmatprep.mubr.bf16.mxu0 0
        %2134 = vmatmul.mubr.bf16.gmra.mrb[0].mxu0 %v1768
        %v2135 = vpop.f32.mrb[0].mxu0
        %v2136 = vadd.f32 %v1816, %v2135
        %v2137 = vpop.f32.mrb[0].mxu0
        %v2138 = vpop.f32.mrb[0].mxu0
        %v2139 = vadd.f32 %v1816, %v2138
        %v2140 = vpop.f32.mrb[0].mxu0
        %2141 = vmatprep.mubr.bf16.mxu0 0
        %2142 = vmatmul.mubr.bf16.gmra.mrb[0].mxu0 %v1769
        %v2143 = vpop.f32.mrb[0].mxu0
        %v2144 = vadd.f32 %v1816, %v2143
        %v2145 = vpop.f32.mrb[0].mxu0
        %v2146 = vpop.f32.mrb[0].mxu0
        %v2147 = vadd.f32 %v1816, %v2146
        %v2148 = vpop.f32.mrb[0].mxu0
        %2149 = vmatprep.mubr.bf16.mxu0 0
        %2150 = vmatmul.mubr.bf16.gmra.mrb[0].mxu0 %v1770
        %v2151 = vpop.f32.mrb[0].mxu0
        %v2152 = vadd.f32 %v1816, %v2151
        %v2153 = vpop.f32.mrb[0].mxu0
        %v2154 = vpop.f32.mrb[0].mxu0
        %v2155 = vadd.f32 %v1816, %v2154
        %v2156 = vpop.f32.mrb[0].mxu0
        %2157 = vdwg.mxu0
        %v2158 = vxor.u32 %v1983, 2147483648
        %v2159 = vxor.u32 %v1985, 2147483648
        %v2160 = vxor.u32 %v2096, 2147483648
        %v2161 = vxor.u32 %v1987, 2147483648
        %v2162 = vxor.u32 %v1989, 2147483648
        %v2163 = vxor.u32 %v2099, 2147483648
        %v2164 = vxor.u32 %v1993, 2147483648
        %v2165 = vxor.u32 %v1995, 2147483648
        %v2166 = vxor.u32 %v2104, 2147483648
        %v2167 = vxor.u32 %v1997, 2147483648
        %v2168 = vxor.u32 %v1999, 2147483648
        %v2169 = vxor.u32 %v2107, 2147483648
        %v2170 = vxor.u32 %v2003, 2147483648
        %v2171 = vxor.u32 %v2005, 2147483648
        %v2172 = vxor.u32 %v2112, 2147483648
        %v2173 = vxor.u32 %v2007, 2147483648
        %v2174 = vxor.u32 %v2009, 2147483648
        %v2175 = vxor.u32 %v2115, 2147483648
        %v2176 = vxor.u32 %v2013, 2147483648
        %v2177 = vxor.u32 %v2015, 2147483648
        %v2178 = vxor.u32 %v2120, 2147483648
        %v2179 = vxor.u32 %v2017, 2147483648
        %v2180 = vxor.u32 %v2019, 2147483648
        %v2181 = vxor.u32 %v2123, 2147483648
        %v2182 = vxor.u32 %v2023, 2147483648
        %v2183 = vxor.u32 %v2025, 2147483648
        %v2184 = vxor.u32 %v2128, 2147483648
        %v2185 = vxor.u32 %v2027, 2147483648
        %v2186 = vxor.u32 %v2029, 2147483648
        %v2187 = vxor.u32 %v2131, 2147483648
        %v2188 = vxor.u32 %v2033, 2147483648
        %v2189 = vxor.u32 %v2035, 2147483648
        %v2190 = vxor.u32 %v2136, 2147483648
        %v2191 = vxor.u32 %v2037, 2147483648
        %v2192 = vxor.u32 %v2039, 2147483648
        %v2193 = vxor.u32 %v2139, 2147483648
        %v2194 = vxor.u32 %v2043, 2147483648
        %v2195 = vxor.u32 %v2045, 2147483648
        %v2196 = vxor.u32 %v2144, 2147483648
        %v2197 = vxor.u32 %v2047, 2147483648
        %v2198 = vxor.u32 %v2049, 2147483648
        %v2199 = vxor.u32 %v2147, 2147483648
        %v2200 = vxor.u32 %v2053, 2147483648
        %v2201 = vxor.u32 %v2055, 2147483648
        %v2202 = vxor.u32 %v2152, 2147483648
        %v2203 = vxor.u32 %v2057, 2147483648
        %v2204 = vxor.u32 %v2059, 2147483648
        %v2205 = vxor.u32 %v2155, 2147483648
        %v2206 = vmul.f32 %v2158, 1.442695
        %v2207 = vpow.pop %v2206
        %v2208 = vmul.f32 %v2159, 1.442695
        %v2209 = vpow.pop %v2208
        %v2210 = vmul.f32 %v2160, 1.442695
        %v2211 = vpow.pop %v2210
        %v2212 = vmul.f32 %v2161, 1.442695
        %v2213 = vpow.pop %v2212
        %v2214 = vmul.f32 %v2162, 1.442695
        %v2215 = vpow.pop %v2214
        %v2216 = vmul.f32 %v2163, 1.442695
        %v2217 = vpow.pop %v2216
        %v2218 = vmul.f32 %v2164, 1.442695
        %v2219 = vpow.pop %v2218
        %v2220 = vmul.f32 %v2165, 1.442695
        %v2221 = vpow.pop %v2220
        %v2222 = vmul.f32 %v2166, 1.442695
        %v2223 = vpow.pop %v2222
        %v2224 = vmul.f32 %v2167, 1.442695
        %v2225 = vpow.pop %v2224
        %v2226 = vmul.f32 %v2168, 1.442695
        %v2227 = vpow.pop %v2226
        %v2228 = vmul.f32 %v2169, 1.442695
        %v2229 = vpow.pop %v2228
        %v2230 = vmul.f32 %v2170, 1.442695
        %v2231 = vpow.pop %v2230
        %v2232 = vmul.f32 %v2171, 1.442695
        %v2233 = vpow.pop %v2232
        %v2234 = vmul.f32 %v2172, 1.442695
        %v2235 = vpow.pop %v2234
        %v2236 = vmul.f32 %v2173, 1.442695
        %v2237 = vpow.pop %v2236
        %v2238 = vmul.f32 %v2174, 1.442695
        %v2239 = vpow.pop %v2238
        %v2240 = vmul.f32 %v2175, 1.442695
        %v2241 = vpow.pop %v2240
        %v2242 = vmul.f32 %v2176, 1.442695
        %v2243 = vpow.pop %v2242
        %v2244 = vmul.f32 %v2177, 1.442695
        %v2245 = vpow.pop %v2244
        %v2246 = vmul.f32 %v2178, 1.442695
        %v2247 = vpow.pop %v2246
        %v2248 = vmul.f32 %v2179, 1.442695
        %v2249 = vpow.pop %v2248
        %v2250 = vmul.f32 %v2180, 1.442695
        %v2251 = vpow.pop %v2250
        %v2252 = vmul.f32 %v2181, 1.442695
        %v2253 = vpow.pop %v2252
        %v2254 = vmul.f32 %v2182, 1.442695
        %v2255 = vpow.pop %v2254
        %v2256 = vmul.f32 %v2183, 1.442695
        %v2257 = vpow.pop %v2256
        %v2258 = vmul.f32 %v2184, 1.442695
        %v2259 = vpow.pop %v2258
        %v2260 = vmul.f32 %v2185, 1.442695
        %v2261 = vpow.pop %v2260
        %v2262 = vmul.f32 %v2186, 1.442695
        %v2263 = vpow.pop %v2262
        %v2264 = vmul.f32 %v2187, 1.442695
        %v2265 = vpow.pop %v2264
        %v2266 = vmul.f32 %v2188, 1.442695
        %v2267 = vpow.pop %v2266
        %v2268 = vmul.f32 %v2189, 1.442695
        %v2269 = vpow.pop %v2268
        %v2270 = vmul.f32 %v2190, 1.442695
        %v2271 = vpow.pop %v2270
        %v2272 = vmul.f32 %v2191, 1.442695
        %v2273 = vpow.pop %v2272
        %v2274 = vmul.f32 %v2192, 1.442695
        %v2275 = vpow.pop %v2274
        %v2276 = vmul.f32 %v2193, 1.442695
        %v2277 = vpow.pop %v2276
        %v2278 = vmul.f32 %v2194, 1.442695
        %v2279 = vpow.pop %v2278
        %v2280 = vmul.f32 %v2195, 1.442695
        %v2281 = vpow.pop %v2280
        %v2282 = vmul.f32 %v2196, 1.442695
        %v2283 = vpow.pop %v2282
        %v2284 = vmul.f32 %v2197, 1.442695
        %v2285 = vpow.pop %v2284
        %v2286 = vmul.f32 %v2198, 1.442695
        %v2287 = vpow.pop %v2286
        %v2288 = vmul.f32 %v2199, 1.442695
        %v2289 = vpow.pop %v2288
        %v2290 = vmul.f32 %v2200, 1.442695
        %v2291 = vpow.pop %v2290
        %v2292 = vmul.f32 %v2201, 1.442695
        %v2293 = vpow.pop %v2292
        %v2294 = vmul.f32 %v2202, 1.442695
        %v2295 = vpow.pop %v2294
        %v2296 = vmul.f32 %v2203, 1.442695
        %v2297 = vpow.pop %v2296
        %v2298 = vmul.f32 %v2204, 1.442695
        %v2299 = vpow.pop %v2298
        %v2300 = vmul.f32 %v2205, 1.442695
        %v2301 = vpow.pop %v2300
        %v2302 = vadd.f32 %v2207, 1.0
        %v2303 = vadd.f32 %v2209, 1.0
        %v2304 = vadd.f32 %v2211, 1.0
        %v2305 = vadd.f32 %v2213, 1.0
        %v2306 = vadd.f32 %v2215, 1.0
        %v2307 = vadd.f32 %v2217, 1.0
        %v2308 = vadd.f32 %v2219, 1.0
        %v2309 = vadd.f32 %v2221, 1.0
        %v2310 = vadd.f32 %v2223, 1.0
        %v2311 = vadd.f32 %v2225, 1.0
        %v2312 = vadd.f32 %v2227, 1.0
        %v2313 = vadd.f32 %v2229, 1.0
        %v2314 = vadd.f32 %v2231, 1.0
        %v2315 = vadd.f32 %v2233, 1.0
        %v2316 = vadd.f32 %v2235, 1.0
        %v2317 = vadd.f32 %v2237, 1.0
        %v2318 = vadd.f32 %v2239, 1.0
        %v2319 = vadd.f32 %v2241, 1.0
        %v2320 = vadd.f32 %v2243, 1.0
        %v2321 = vadd.f32 %v2245, 1.0
        %v2322 = vadd.f32 %v2247, 1.0
        %v2323 = vadd.f32 %v2249, 1.0
        %v2324 = vadd.f32 %v2251, 1.0
        %v2325 = vadd.f32 %v2253, 1.0
        %v2326 = vadd.f32 %v2255, 1.0
        %v2327 = vadd.f32 %v2257, 1.0
        %v2328 = vadd.f32 %v2259, 1.0
        %v2329 = vadd.f32 %v2261, 1.0
        %v2330 = vadd.f32 %v2263, 1.0
        %v2331 = vadd.f32 %v2265, 1.0
        %v2332 = vadd.f32 %v2267, 1.0
        %v2333 = vadd.f32 %v2269, 1.0
        %v2334 = vadd.f32 %v2271, 1.0
        %v2335 = vadd.f32 %v2273, 1.0
        %v2336 = vadd.f32 %v2275, 1.0
        %v2337 = vadd.f32 %v2277, 1.0
        %v2338 = vadd.f32 %v2279, 1.0
        %v2339 = vadd.f32 %v2281, 1.0
        %v2340 = vadd.f32 %v2283, 1.0
        %v2341 = vadd.f32 %v2285, 1.0
        %v2342 = vadd.f32 %v2287, 1.0
        %v2343 = vadd.f32 %v2289, 1.0
        %v2344 = vadd.f32 %v2291, 1.0
        %v2345 = vadd.f32 %v2293, 1.0
        %v2346 = vadd.f32 %v2295, 1.0
        %v2347 = vadd.f32 %v2297, 1.0
        %v2348 = vadd.f32 %v2299, 1.0
        %v2349 = vadd.f32 %v2301, 1.0
        %v2350 = vrcp.pop %v2302
        %v2351 = vmul.f32 1.0, %v2350
        %v2352 = vrcp.pop %v2303
        %v2353 = vmul.f32 1.0, %v2352
        %v2354 = vrcp.pop %v2304
        %v2355 = vmul.f32 1.0, %v2354
        %v2356 = vrcp.pop %v2305
        %v2357 = vmul.f32 1.0, %v2356
        %v2358 = vrcp.pop %v2306
        %v2359 = vmul.f32 1.0, %v2358
        %v2360 = vrcp.pop %v2307
        %v2361 = vmul.f32 1.0, %v2360
        %v2362 = vrcp.pop %v2308
        %v2363 = vmul.f32 1.0, %v2362
        %v2364 = vrcp.pop %v2309
        %v2365 = vmul.f32 1.0, %v2364
        %v2366 = vrcp.pop %v2310
        %v2367 = vmul.f32 1.0, %v2366
        %v2368 = vrcp.pop %v2311
        %v2369 = vmul.f32 1.0, %v2368
        %v2370 = vrcp.pop %v2312
        %v2371 = vmul.f32 1.0, %v2370
        %v2372 = vrcp.pop %v2313
        %v2373 = vmul.f32 1.0, %v2372
        %v2374 = vrcp.pop %v2314
        %v2375 = vmul.f32 1.0, %v2374
        %v2376 = vrcp.pop %v2315
        %v2377 = vmul.f32 1.0, %v2376
        %v2378 = vrcp.pop %v2316
        %v2379 = vmul.f32 1.0, %v2378
        %v2380 = vrcp.pop %v2317
        %v2381 = vmul.f32 1.0, %v2380
        %v2382 = vrcp.pop %v2318
        %v2383 = vmul.f32 1.0, %v2382
        %v2384 = vrcp.pop %v2319
        %v2385 = vmul.f32 1.0, %v2384
        %v2386 = vrcp.pop %v2320
        %v2387 = vmul.f32 1.0, %v2386
        %v2388 = vrcp.pop %v2321
        %v2389 = vmul.f32 1.0, %v2388
        %v2390 = vrcp.pop %v2322
        %v2391 = vmul.f32 1.0, %v2390
        %v2392 = vrcp.pop %v2323
        %v2393 = vmul.f32 1.0, %v2392
        %v2394 = vrcp.pop %v2324
        %v2395 = vmul.f32 1.0, %v2394
        %v2396 = vrcp.pop %v2325
        %v2397 = vmul.f32 1.0, %v2396
        %v2398 = vrcp.pop %v2326
        %v2399 = vmul.f32 1.0, %v2398
        %v2400 = vrcp.pop %v2327
        %v2401 = vmul.f32 1.0, %v2400
        %v2402 = vrcp.pop %v2328
        %v2403 = vmul.f32 1.0, %v2402
        %v2404 = vrcp.pop %v2329
        %v2405 = vmul.f32 1.0, %v2404
        %v2406 = vrcp.pop %v2330
        %v2407 = vmul.f32 1.0, %v2406
        %v2408 = vrcp.pop %v2331
        %v2409 = vmul.f32 1.0, %v2408
        %v2410 = vrcp.pop %v2332
        %v2411 = vmul.f32 1.0, %v2410
        %v2412 = vrcp.pop %v2333
        %v2413 = vmul.f32 1.0, %v2412
        %v2414 = vrcp.pop %v2334
        %v2415 = vmul.f32 1.0, %v2414
        %v2416 = vrcp.pop %v2335
        %v2417 = vmul.f32 1.0, %v2416
        %v2418 = vrcp.pop %v2336
        %v2419 = vmul.f32 1.0, %v2418
        %v2420 = vrcp.pop %v2337
        %v2421 = vmul.f32 1.0, %v2420
        %v2422 = vrcp.pop %v2338
        %v2423 = vmul.f32 1.0, %v2422
        %v2424 = vrcp.pop %v2339
        %v2425 = vmul.f32 1.0, %v2424
        %v2426 = vrcp.pop %v2340
        %v2427 = vmul.f32 1.0, %v2426
        %v2428 = vrcp.pop %v2341
        %v2429 = vmul.f32 1.0, %v2428
        %v2430 = vrcp.pop %v2342
        %v2431 = vmul.f32 1.0, %v2430
        %v2432 = vrcp.pop %v2343
        %v2433 = vmul.f32 1.0, %v2432
        %v2434 = vrcp.pop %v2344
        %v2435 = vmul.f32 1.0, %v2434
        %v2436 = vrcp.pop %v2345
        %v2437 = vmul.f32 1.0, %v2436
        %v2438 = vrcp.pop %v2346
        %v2439 = vmul.f32 1.0, %v2438
        %v2440 = vrcp.pop %v2347
        %v2441 = vmul.f32 1.0, %v2440
        %v2442 = vrcp.pop %v2348
        %v2443 = vmul.f32 1.0, %v2442
        %v2444 = vrcp.pop %v2349
        %v2445 = vmul.f32 1.0, %v2444
        %v2446 = vmul.f32 %v1983, %v2351
        %v2447 = vmul.f32 %v1985, %v2353
        %v2448 = vmul.f32 %v2096, %v2355
        %v2449 = vmul.f32 %v1987, %v2357
        %v2450 = vmul.f32 %v1989, %v2359
        %v2451 = vmul.f32 %v2099, %v2361
        %v2452 = vmul.f32 %v1993, %v2363
        %v2453 = vmul.f32 %v1995, %v2365
        %v2454 = vmul.f32 %v2104, %v2367
        %v2455 = vmul.f32 %v1997, %v2369
        %v2456 = vmul.f32 %v1999, %v2371
        %v2457 = vmul.f32 %v2107, %v2373
        %v2458 = vmul.f32 %v2003, %v2375
        %v2459 = vmul.f32 %v2005, %v2377
        %v2460 = vmul.f32 %v2112, %v2379
        %v2461 = vmul.f32 %v2007, %v2381
        %v2462 = vmul.f32 %v2009, %v2383
        %v2463 = vmul.f32 %v2115, %v2385
        %v2464 = vmul.f32 %v2013, %v2387
        %v2465 = vmul.f32 %v2015, %v2389
        %v2466 = vmul.f32 %v2120, %v2391
        %v2467 = vmul.f32 %v2017, %v2393
        %v2468 = vmul.f32 %v2019, %v2395
        %v2469 = vmul.f32 %v2123, %v2397
        %v2470 = vmul.f32 %v2023, %v2399
        %v2471 = vmul.f32 %v2025, %v2401
        %v2472 = vmul.f32 %v2128, %v2403
        %v2473 = vmul.f32 %v2027, %v2405
        %v2474 = vmul.f32 %v2029, %v2407
        %v2475 = vmul.f32 %v2131, %v2409
        %v2476 = vmul.f32 %v2033, %v2411
        %v2477 = vmul.f32 %v2035, %v2413
        %v2478 = vmul.f32 %v2136, %v2415
        %v2479 = vmul.f32 %v2037, %v2417
        %v2480 = vmul.f32 %v2039, %v2419
        %v2481 = vmul.f32 %v2139, %v2421
        %v2482 = vmul.f32 %v2043, %v2423
        %v2483 = vmul.f32 %v2045, %v2425
        %v2484 = vmul.f32 %v2144, %v2427
        %v2485 = vmul.f32 %v2047, %v2429
        %v2486 = vmul.f32 %v2049, %v2431
        %v2487 = vmul.f32 %v2147, %v2433
        %v2488 = vmul.f32 %v2053, %v2435
        %v2489 = vmul.f32 %v2055, %v2437
        %v2490 = vmul.f32 %v2152, %v2439
        %v2491 = vmul.f32 %v2057, %v2441
        %v2492 = vmul.f32 %v2059, %v2443
        %v2493 = vmul.f32 %v2155, %v2445
        %v2494 = vpack.c.bf16 %v2449, %v2446
        %v2495 = vpack.c.bf16 %v2450, %v2447
        %v2496 = vpack.c.bf16 %v2455, %v2452
        %v2497 = vpack.c.bf16 %v2456, %v2453
        %v2498 = vpack.c.bf16 %v2461, %v2458
        %v2499 = vpack.c.bf16 %v2462, %v2459
        %v2500 = vpack.c.bf16 %v2467, %v2464
        %v2501 = vpack.c.bf16 %v2468, %v2465
        %v2502 = vpack.c.bf16 %v2473, %v2470
        %v2503 = vpack.c.bf16 %v2474, %v2471
        %v2504 = vpack.c.bf16 %v2479, %v2476
        %v2505 = vpack.c.bf16 %v2480, %v2477
        %v2506 = vpack.c.bf16 %v2485, %v2482
        %v2507 = vpack.c.bf16 %v2486, %v2483
        %v2508 = vpack.c.bf16 %v2491, %v2488
        %v2509 = vpack.c.bf16 %v2492, %v2489
        %v2510 = vld [vmem:[%s8 + $0x1] sm:$0x1]
        %v2511 = vlaneseq
        %v2512 = vshrl.u32 %v2511, 7
        %v2513 = vsub.s32 0, %v2512
        %v2514 = vrot.slane %v2510, %v2513
        %v2515 = vmul.f32 %v2448, %v2514
        %v2516 = vmul.f32 %v2451, %v2514
        %v2517 = vmul.f32 %v2454, %v2514
        %v2518 = vmul.f32 %v2457, %v2514
        %v2519 = vmul.f32 %v2460, %v2514
        %v2520 = vmul.f32 %v2463, %v2514
        %v2521 = vmul.f32 %v2466, %v2514
        %v2522 = vmul.f32 %v2469, %v2514
        %v2523 = vmul.f32 %v2472, %v2514
        %v2524 = vmul.f32 %v2475, %v2514
        %v2525 = vmul.f32 %v2478, %v2514
        %v2526 = vmul.f32 %v2481, %v2514
        %v2527 = vmul.f32 %v2484, %v2514
        %v2528 = vmul.f32 %v2487, %v2514
        %v2529 = vmul.f32 %v2490, %v2514
        %v2530 = vmul.f32 %v2493, %v2514
        %v2531 = vld [vmem:[%s8 + $0x3] sm:$0x1]
        %v2532 = vlaneseq
        %v2533 = vshrl.u32 %v2532, 7
        %v2534 = vsub.s32 0, %v2533
        %v2535 = vrot.slane %v2531, %v2534
        %v2536 = vadd.f32 %v2515, %v2535
        %v2537 = vadd.f32 %v2516, %v2535
        %v2538 = vadd.f32 %v2517, %v2535
        %v2539 = vadd.f32 %v2518, %v2535
        %v2540 = vadd.f32 %v2519, %v2535
        %v2541 = vadd.f32 %v2520, %v2535
        %v2542 = vadd.f32 %v2521, %v2535
        %v2543 = vadd.f32 %v2522, %v2535
        %v2544 = vadd.f32 %v2523, %v2535
        %v2545 = vadd.f32 %v2524, %v2535
        %v2546 = vadd.f32 %v2525, %v2535
        %v2547 = vadd.f32 %v2526, %v2535
        %v2548 = vadd.f32 %v2527, %v2535
        %v2549 = vadd.f32 %v2528, %v2535
        %v2550 = vadd.f32 %v2529, %v2535
        %v2551 = vadd.f32 %v2530, %v2535
        %v2552 = vpack.c.bf16 %v2537, %v2536
        %v2553 = vpack.c.bf16 %v2539, %v2538
        %v2554 = vpack.c.bf16 %v2541, %v2540
        %v2555 = vpack.c.bf16 %v2543, %v2542
        %v2556 = vpack.c.bf16 %v2545, %v2544
        %v2557 = vpack.c.bf16 %v2547, %v2546
        %v2558 = vpack.c.bf16 %v2549, %v2548
        %v2559 = vpack.c.bf16 %v2551, %v2550
        %v2560 = vld [vmem:[#allocation3] sm:$0xff]
        %v2561 = vld [vmem:[#allocation3 + $0x8] sm:$0xff]
        %v2562 = vld [vmem:[#allocation3 + $0x10] sm:$0xff]
        %v2563 = vld [vmem:[#allocation3 + $0x18] sm:$0xff]
        %v2564 = vld [vmem:[#allocation3 + $0x20] sm:$0xff]
        %v2565 = vld [vmem:[#allocation3 + $0x28] sm:$0xff]
        %v2566 = vld [vmem:[#allocation3 + $0x30] sm:$0xff]
        %v2567 = vld [vmem:[#allocation3 + $0x38] sm:$0xff]
        %2568 = vmatprep.subr.bf16.mxu0 0
        %2569 = vmatpush1.bf16.xpose.msra.mxu0 %v2552
        %2570 = vmatprep.subr.bf16.mxu0 0
        %2571 = vmatpush1.bf16.xpose.msra.mxu0 %v2553
        %2572 = vmatprep.subr.bf16.mxu0 0
        %2573 = vmatpush1.bf16.xpose.msra.mxu0 %v2554
        %2574 = vmatprep.subr.bf16.mxu0 0
        %2575 = vmatpush1.bf16.xpose.msra.mxu0 %v2555
        %2576 = vmatprep.subr.bf16.mxu0 0
        %2577 = vmatpush1.bf16.xpose.msra.mxu0 %v2556
        %2578 = vmatprep.subr.bf16.mxu0 0
        %2579 = vmatpush1.bf16.xpose.msra.mxu0 %v2557
        %2580 = vmatprep.subr.bf16.mxu0 0
        %2581 = vmatpush1.bf16.xpose.msra.mxu0 %v2558
        %2582 = vmatprep.subr.bf16.mxu0 0
        %2583 = vmatpush1.bf16.xpose.msra.mxu0 %v2559
        %2584 = vmatprep.subr.bf16.mxu0 0
        %2585 = vmatpush1.bf16.xpose.msra.mxu0 0
        %2586 = vmatprep.subr.bf16.mxu0 0
        %2587 = vmatpush1.bf16.xpose.msra.mxu0 0
        %2588 = vmatprep.subr.bf16.mxu0 0
        %2589 = vmatpush1.bf16.xpose.msra.mxu0 0
        %2590 = vmatprep.subr.bf16.mxu0 0
        %2591 = vmatpush1.bf16.xpose.msra.mxu0 0
        %2592 = vmatprep.subr.bf16.mxu0 0
        %2593 = vmatpush1.bf16.xpose.msra.mxu0 0
        %2594 = vmatprep.subr.bf16.mxu0 0
        %2595 = vmatpush1.bf16.xpose.msra.mxu0 0
        %2596 = vmatprep.subr.bf16.mxu0 0
        %2597 = vmatpush1.bf16.xpose.msra.mxu0 0
        %2598 = vmatprep.subr.bf16.mxu0 0
        %2599 = vmatpush1.bf16.xpose.msra.mxu0 0
        %2600 = vmatprep.mubr.bf16.mxu0 0
        %2601 = vmatmul.mubr.bf16.gmra.mrb[0].mxu0 %v2560
        %v2602 = vpop.f32.mrb[0].mxu0
        %v2603 = vadd.f32 0.0, %v2602
        %v2604 = vpop.f32.mrb[0].mxu0
        %v2605 = vpop.f32.mrb[0].mxu0
        %v2606 = vadd.f32 0.0, %v2605
        %v2607 = vpop.f32.mrb[0].mxu0
        %2608 = vmatprep.mubr.bf16.mxu0 0
        %2609 = vmatmul.mubr.bf16.gmra.mrb[0].mxu0 %v2561
        %v2610 = vpop.f32.mrb[0].mxu0
        %v2611 = vadd.f32 0.0, %v2610
        %v2612 = vpop.f32.mrb[0].mxu0
        %v2613 = vpop.f32.mrb[0].mxu0
        %v2614 = vadd.f32 0.0, %v2613
        %v2615 = vpop.f32.mrb[0].mxu0
        %2616 = vmatprep.mubr.bf16.mxu0 0
        %2617 = vmatmul.mubr.bf16.gmra.mrb[0].mxu0 %v2562
        %v2618 = vpop.f32.mrb[0].mxu0
        %v2619 = vadd.f32 0.0, %v2618
        %v2620 = vpop.f32.mrb[0].mxu0
        %v2621 = vpop.f32.mrb[0].mxu0
        %v2622 = vadd.f32 0.0, %v2621
        %v2623 = vpop.f32.mrb[0].mxu0
        %2624 = vmatprep.mubr.bf16.mxu0 0
        %2625 = vmatmul.mubr.bf16.gmra.mrb[0].mxu0 %v2563
        %v2626 = vpop.f32.mrb[0].mxu0
        %v2627 = vadd.f32 0.0, %v2626
        %v2628 = vpop.f32.mrb[0].mxu0
        %v2629 = vpop.f32.mrb[0].mxu0
        %v2630 = vadd.f32 0.0, %v2629
        %v2631 = vpop.f32.mrb[0].mxu0
        %2632 = vmatprep.mubr.bf16.mxu0 0
        %2633 = vmatmul.mubr.bf16.gmra.mrb[0].mxu0 %v2564
        %v2634 = vpop.f32.mrb[0].mxu0
        %v2635 = vadd.f32 0.0, %v2634
        %v2636 = vpop.f32.mrb[0].mxu0
        %v2637 = vpop.f32.mrb[0].mxu0
        %v2638 = vadd.f32 0.0, %v2637
        %v2639 = vpop.f32.mrb[0].mxu0
        %2640 = vmatprep.mubr.bf16.mxu0 0
        %2641 = vmatmul.mubr.bf16.gmra.mrb[0].mxu0 %v2565
        %v2642 = vpop.f32.mrb[0].mxu0
        %v2643 = vadd.f32 0.0, %v2642
        %v2644 = vpop.f32.mrb[0].mxu0
        %v2645 = vpop.f32.mrb[0].mxu0
        %v2646 = vadd.f32 0.0, %v2645
        %v2647 = vpop.f32.mrb[0].mxu0
        %2648 = vmatprep.mubr.bf16.mxu0 0
        %2649 = vmatmul.mubr.bf16.gmra.mrb[0].mxu0 %v2566
        %v2650 = vpop.f32.mrb[0].mxu0
        %v2651 = vadd.f32 0.0, %v2650
        %v2652 = vpop.f32.mrb[0].mxu0
        %v2653 = vpop.f32.mrb[0].mxu0
        %v2654 = vadd.f32 0.0, %v2653
        %v2655 = vpop.f32.mrb[0].mxu0
        %2656 = vmatprep.mubr.bf16.mxu0 0
        %2657 = vmatmul.mubr.bf16.gmra.mrb[0].mxu0 %v2567
        %v2658 = vpop.f32.mrb[0].mxu0
        %v2659 = vadd.f32 0.0, %v2658
        %v2660 = vpop.f32.mrb[0].mxu0
        %v2661 = vpop.f32.mrb[0].mxu0
        %v2662 = vadd.f32 0.0, %v2661
        %v2663 = vpop.f32.mrb[0].mxu0
        %2664 = vdwg.mxu0
        %v2665 = vmul.f32 %v2603, 0.00390625
        %v2666 = vmul.f32 %v2606, 0.00390625
        %v2667 = vmul.f32 %v2611, 0.00390625
        %v2668 = vmul.f32 %v2614, 0.00390625
        %v2669 = vmul.f32 %v2619, 0.00390625
        %v2670 = vmul.f32 %v2622, 0.00390625
        %v2671 = vmul.f32 %v2627, 0.00390625
        %v2672 = vmul.f32 %v2630, 0.00390625
        %v2673 = vmul.f32 %v2635, 0.00390625
        %v2674 = vmul.f32 %v2638, 0.00390625
        %v2675 = vmul.f32 %v2643, 0.00390625
        %v2676 = vmul.f32 %v2646, 0.00390625
        %v2677 = vmul.f32 %v2651, 0.00390625
        %v2678 = vmul.f32 %v2654, 0.00390625
        %v2679 = vmul.f32 %v2659, 0.00390625
        %v2680 = vmul.f32 %v2662, 0.00390625
        %v2681 = vld [vmem:[%s521] sm:$0xff]
        %v2682 = vld [vmem:[%s521 + $0x8] sm:$0xff]
        %v2683 = vld [vmem:[%s521 + $0x10] sm:$0xff]
        %v2684 = vld [vmem:[%s521 + $0x18] sm:$0xff]
        %v2685 = vld [vmem:[%s521 + $0x20] sm:$0xff]
        %v2686 = vld [vmem:[%s521 + $0x28] sm:$0xff]
        %v2687 = vld [vmem:[%s521 + $0x30] sm:$0xff]
        %v2688 = vld [vmem:[%s521 + $0x38] sm:$0xff]
        %v2689 = vld [vmem:[%s521 + $0x40] sm:$0xff]
        %v2690 = vld [vmem:[%s521 + $0x48] sm:$0xff]
        %v2691 = vld [vmem:[%s521 + $0x50] sm:$0xff]
        %v2692 = vld [vmem:[%s521 + $0x58] sm:$0xff]
        %v2693 = vld [vmem:[%s521 + $0x60] sm:$0xff]
        %v2694 = vld [vmem:[%s521 + $0x68] sm:$0xff]
        %v2695 = vld [vmem:[%s521 + $0x70] sm:$0xff]
        %v2696 = vld [vmem:[%s521 + $0x78] sm:$0xff]
        %v2697 = vadd.f32 %v2665, %v2681
        %v2698 = vadd.f32 %v2666, %v2682
        %v2699 = vadd.f32 %v2667, %v2683
        %v2700 = vadd.f32 %v2668, %v2684
        %v2701 = vadd.f32 %v2669, %v2685
        %v2702 = vadd.f32 %v2670, %v2686
        %v2703 = vadd.f32 %v2671, %v2687
        %v2704 = vadd.f32 %v2672, %v2688
        %v2705 = vadd.f32 %v2673, %v2689
        %v2706 = vadd.f32 %v2674, %v2690
        %v2707 = vadd.f32 %v2675, %v2691
        %v2708 = vadd.f32 %v2676, %v2692
        %v2709 = vadd.f32 %v2677, %v2693
        %v2710 = vadd.f32 %v2678, %v2694
        %v2711 = vadd.f32 %v2679, %v2695
        %v2712 = vadd.f32 %v2680, %v2696
        %v2713 = vmax.f32 %v2697, 0.0
        %v2714 = vmax.f32 %v2698, 0.0
        %v2715 = vmax.f32 %v2699, 0.0
        %v2716 = vmax.f32 %v2700, 0.0
        %v2717 = vmax.f32 %v2701, 0.0
        %v2718 = vmax.f32 %v2702, 0.0
        %v2719 = vmax.f32 %v2703, 0.0
        %v2720 = vmax.f32 %v2704, 0.0
        %v2721 = vmax.f32 %v2705, 0.0
        %v2722 = vmax.f32 %v2706, 0.0
        %v2723 = vmax.f32 %v2707, 0.0
        %v2724 = vmax.f32 %v2708, 0.0
        %v2725 = vmax.f32 %v2709, 0.0
        %v2726 = vmax.f32 %v2710, 0.0
        %v2727 = vmax.f32 %v2711, 0.0
        %v2728 = vmax.f32 %v2712, 0.0
        %v2729 = vmul.f32 %v2713, %v2713
        %v2730 = vmul.f32 %v2714, %v2714
        %v2731 = vmul.f32 %v2715, %v2715
        %v2732 = vmul.f32 %v2716, %v2716
        %v2733 = vmul.f32 %v2717, %v2717
        %v2734 = vmul.f32 %v2718, %v2718
        %v2735 = vmul.f32 %v2719, %v2719
        %v2736 = vmul.f32 %v2720, %v2720
        %v2737 = vmul.f32 %v2721, %v2721
        %v2738 = vmul.f32 %v2722, %v2722
        %v2739 = vmul.f32 %v2723, %v2723
        %v2740 = vmul.f32 %v2724, %v2724
        %v2741 = vmul.f32 %v2725, %v2725
        %v2742 = vmul.f32 %v2726, %v2726
        %v2743 = vmul.f32 %v2727, %v2727
        %v2744 = vmul.f32 %v2728, %v2728
        %v2745 = vpack.c.bf16 %v2730, %v2729
        %v2746 = vpack.c.bf16 %v2732, %v2731
        %v2747 = vpack.c.bf16 %v2734, %v2733
        %v2748 = vpack.c.bf16 %v2736, %v2735
        %v2749 = vpack.c.bf16 %v2738, %v2737
        %v2750 = vpack.c.bf16 %v2740, %v2739
        %v2751 = vpack.c.bf16 %v2742, %v2741
        %v2752 = vpack.c.bf16 %v2744, %v2743
        %v2753 = vld [vmem:[#allocation4] sm:$0xff]
        %v2754 = vld [vmem:[#allocation4 + $0x8] sm:$0xff]
        %v2755 = vld [vmem:[#allocation4 + $0x10] sm:$0xff]
        %v2756 = vld [vmem:[#allocation4 + $0x18] sm:$0xff]
        %v2757 = vld [vmem:[#allocation4 + $0x20] sm:$0xff]
        %v2758 = vld [vmem:[#allocation4 + $0x28] sm:$0xff]
        %v2759 = vld [vmem:[#allocation4 + $0x30] sm:$0xff]
        %v2760 = vld [vmem:[#allocation4 + $0x38] sm:$0xff]
        %v2761 = vld [vmem:[#allocation4 + $0x40] sm:$0xff]
        %v2762 = vld [vmem:[#allocation4 + $0x48] sm:$0xff]
        %v2763 = vld [vmem:[#allocation4 + $0x50] sm:$0xff]
        %v2764 = vld [vmem:[#allocation4 + $0x58] sm:$0xff]
        %v2765 = vld [vmem:[#allocation4 + $0x60] sm:$0xff]
        %v2766 = vld [vmem:[#allocation4 + $0x68] sm:$0xff]
        %v2767 = vld [vmem:[#allocation4 + $0x70] sm:$0xff]
        %v2768 = vld [vmem:[#allocation4 + $0x78] sm:$0xff]
        %v2769 = vld [vmem:[#allocation4 + $0x80] sm:$0xff]
        %v2770 = vld [vmem:[#allocation4 + $0x88] sm:$0xff]
        %v2771 = vld [vmem:[#allocation4 + $0x90] sm:$0xff]
        %v2772 = vld [vmem:[#allocation4 + $0x98] sm:$0xff]
        %v2773 = vld [vmem:[#allocation4 + $0xa0] sm:$0xff]
        %v2774 = vld [vmem:[#allocation4 + $0xa8] sm:$0xff]
        %v2775 = vld [vmem:[#allocation4 + $0xb0] sm:$0xff]
        %v2776 = vld [vmem:[#allocation4 + $0xb8] sm:$0xff]
        %v2777 = vld [vmem:[#allocation4 + $0xc0] sm:$0xff]
        %v2778 = vld [vmem:[#allocation4 + $0xc8] sm:$0xff]
        %v2779 = vld [vmem:[#allocation4 + $0xd0] sm:$0xff]
        %v2780 = vld [vmem:[#allocation4 + $0xd8] sm:$0xff]
        %v2781 = vld [vmem:[#allocation4 + $0xe0] sm:$0xff]
        %v2782 = vld [vmem:[#allocation4 + $0xe8] sm:$0xff]
        %v2783 = vld [vmem:[#allocation4 + $0xf0] sm:$0xff]
        %v2784 = vld [vmem:[#allocation4 + $0xf8] sm:$0xff]
        %2785 = vmatprep.subr.bf16.mxu0 %v2495
        %2786 = vmatpush1.bf16.msra.mxu0 %v2494
        %2787 = vmatprep.subr.bf16.mxu0 %v2497
        %2788 = vmatpush1.bf16.msra.mxu0 %v2496
        %2789 = vmatprep.subr.bf16.mxu0 %v2499
        %2790 = vmatpush1.bf16.msra.mxu0 %v2498
        %2791 = vmatprep.subr.bf16.mxu0 %v2501
        %2792 = vmatpush1.bf16.msra.mxu0 %v2500
        %2793 = vmatprep.subr.bf16.mxu0 %v2503
        %2794 = vmatpush1.bf16.msra.mxu0 %v2502
        %2795 = vmatprep.subr.bf16.mxu0 %v2505
        %2796 = vmatpush1.bf16.msra.mxu0 %v2504
        %2797 = vmatprep.subr.bf16.mxu0 %v2507
        %2798 = vmatpush1.bf16.msra.mxu0 %v2506
        %2799 = vmatprep.subr.bf16.mxu0 %v2509
        %2800 = vmatpush1.bf16.msra.mxu0 %v2508
        %2801 = vmatprep.subr.bf16.mxu0 0
        %2802 = vmatpush1.bf16.msra.mxu0 0
        %2803 = vmatprep.subr.bf16.mxu0 0
        %2804 = vmatpush1.bf16.msra.mxu0 0
        %2805 = vmatprep.subr.bf16.mxu0 0
        %2806 = vmatpush1.bf16.msra.mxu0 0
        %2807 = vmatprep.subr.bf16.mxu0 0
        %2808 = vmatpush1.bf16.msra.mxu0 0
        %2809 = vmatprep.subr.bf16.mxu0 0
        %2810 = vmatpush1.bf16.msra.mxu0 0
        %2811 = vmatprep.subr.bf16.mxu0 0
        %2812 = vmatpush1.bf16.msra.mxu0 0
        %2813 = vmatprep.subr.bf16.mxu0 0
        %2814 = vmatpush1.bf16.msra.mxu0 0
        %2815 = vmatprep.subr.bf16.mxu0 0
        %2816 = vmatpush1.bf16.msra.mxu0 0
        %2817 = vmatprep.mubr.bf16.mxu0 0
        %2818 = vmatmul.mubr.bf16.gmra.mrb[0].mxu0 %v2745
        %v2819 = vpop.f32.mrb[0].mxu0
        %v2820 = vadd.f32 0.0, %v2819
        %v2821 = vpop.f32.mrb[0].mxu0
        %v2822 = vadd.f32 0.0, %v2821
        %v2823 = vpop.f32.mrb[0].mxu0
        %v2824 = vadd.f32 0.0, %v2823
        %v2825 = vpop.f32.mrb[0].mxu0
        %v2826 = vadd.f32 0.0, %v2825
        %2827 = vmatprep.mubr.bf16.mxu0 0
        %2828 = vmatmul.mubr.bf16.gmra.mrb[0].mxu0 %v2746
        %v2829 = vpop.f32.mrb[0].mxu0
        %v2830 = vadd.f32 0.0, %v2829
        %v2831 = vpop.f32.mrb[0].mxu0
        %v2832 = vadd.f32 0.0, %v2831
        %v2833 = vpop.f32.mrb[0].mxu0
        %v2834 = vadd.f32 0.0, %v2833
        %v2835 = vpop.f32.mrb[0].mxu0
        %v2836 = vadd.f32 0.0, %v2835
        %2837 = vmatprep.mubr.bf16.mxu0 0
        %2838 = vmatmul.mubr.bf16.gmra.mrb[0].mxu0 %v2747
        %v2839 = vpop.f32.mrb[0].mxu0
        %v2840 = vadd.f32 0.0, %v2839
        %v2841 = vpop.f32.mrb[0].mxu0
        %v2842 = vadd.f32 0.0, %v2841
        %v2843 = vpop.f32.mrb[0].mxu0
        %v2844 = vadd.f32 0.0, %v2843
        %v2845 = vpop.f32.mrb[0].mxu0
        %v2846 = vadd.f32 0.0, %v2845
        %2847 = vmatprep.mubr.bf16.mxu0 0
        %2848 = vmatmul.mubr.bf16.gmra.mrb[0].mxu0 %v2748
        %v2849 = vpop.f32.mrb[0].mxu0
        %v2850 = vadd.f32 0.0, %v2849
        %v2851 = vpop.f32.mrb[0].mxu0
        %v2852 = vadd.f32 0.0, %v2851
        %v2853 = vpop.f32.mrb[0].mxu0
        %v2854 = vadd.f32 0.0, %v2853
        %v2855 = vpop.f32.mrb[0].mxu0
        %v2856 = vadd.f32 0.0, %v2855
        %2857 = vmatprep.mubr.bf16.mxu0 0
        %2858 = vmatmul.mubr.bf16.gmra.mrb[0].mxu0 %v2749
        %v2859 = vpop.f32.mrb[0].mxu0
        %v2860 = vadd.f32 0.0, %v2859
        %v2861 = vpop.f32.mrb[0].mxu0
        %v2862 = vadd.f32 0.0, %v2861
        %v2863 = vpop.f32.mrb[0].mxu0
        %v2864 = vadd.f32 0.0, %v2863
        %v2865 = vpop.f32.mrb[0].mxu0
        %v2866 = vadd.f32 0.0, %v2865
        %2867 = vmatprep.mubr.bf16.mxu0 0
        %2868 = vmatmul.mubr.bf16.gmra.mrb[0].mxu0 %v2750
        %v2869 = vpop.f32.mrb[0].mxu0
        %v2870 = vadd.f32 0.0, %v2869
        %v2871 = vpop.f32.mrb[0].mxu0
        %v2872 = vadd.f32 0.0, %v2871
        %v2873 = vpop.f32.mrb[0].mxu0
        %v2874 = vadd.f32 0.0, %v2873
        %v2875 = vpop.f32.mrb[0].mxu0
        %v2876 = vadd.f32 0.0, %v2875
        %2877 = vmatprep.mubr.bf16.mxu0 0
        %2878 = vmatmul.mubr.bf16.gmra.mrb[0].mxu0 %v2751
        %v2879 = vpop.f32.mrb[0].mxu0
        %v2880 = vadd.f32 0.0, %v2879
        %v2881 = vpop.f32.mrb[0].mxu0
        %v2882 = vadd.f32 0.0, %v2881
        %v2883 = vpop.f32.mrb[0].mxu0
        %v2884 = vadd.f32 0.0, %v2883
        %v2885 = vpop.f32.mrb[0].mxu0
        %v2886 = vadd.f32 0.0, %v2885
        %2887 = vmatprep.mubr.bf16.mxu0 0
        %2888 = vmatmul.mubr.bf16.gmra.mrb[0].mxu0 %v2752
        %v2889 = vpop.f32.mrb[0].mxu0
        %v2890 = vadd.f32 0.0, %v2889
        %v2891 = vpop.f32.mrb[0].mxu0
        %v2892 = vadd.f32 0.0, %v2891
        %v2893 = vpop.f32.mrb[0].mxu0
        %v2894 = vadd.f32 0.0, %v2893
        %v2895 = vpop.f32.mrb[0].mxu0
        %v2896 = vadd.f32 0.0, %v2895
        %2897 = vdwg.mxu0
        %v2898 = vadd.f32 %v2753, %v2820
        %v2899 = vadd.f32 %v2754, %v2822
        %v2900 = vadd.f32 %v2755, %v2824
        %v2901 = vadd.f32 %v2756, %v2826
        %v2902 = vadd.f32 %v2757, %v2830
        %v2903 = vadd.f32 %v2758, %v2832
        %v2904 = vadd.f32 %v2759, %v2834
        %v2905 = vadd.f32 %v2760, %v2836
        %v2906 = vadd.f32 %v2761, %v2840
        %v2907 = vadd.f32 %v2762, %v2842
        %v2908 = vadd.f32 %v2763, %v2844
        %v2909 = vadd.f32 %v2764, %v2846
        %v2910 = vadd.f32 %v2765, %v2850
        %v2911 = vadd.f32 %v2766, %v2852
        %v2912 = vadd.f32 %v2767, %v2854
        %v2913 = vadd.f32 %v2768, %v2856
        %v2914 = vadd.f32 %v2769, %v2860
        %v2915 = vadd.f32 %v2770, %v2862
        %v2916 = vadd.f32 %v2771, %v2864
        %v2917 = vadd.f32 %v2772, %v2866
        %v2918 = vadd.f32 %v2773, %v2870
        %v2919 = vadd.f32 %v2774, %v2872
        %v2920 = vadd.f32 %v2775, %v2874
        %v2921 = vadd.f32 %v2776, %v2876
        %v2922 = vadd.f32 %v2777, %v2880
        %v2923 = vadd.f32 %v2778, %v2882
        %v2924 = vadd.f32 %v2779, %v2884
        %v2925 = vadd.f32 %v2780, %v2886
        %v2926 = vadd.f32 %v2781, %v2890
        %v2927 = vadd.f32 %v2782, %v2892
        %v2928 = vadd.f32 %v2783, %v2894
        %v2929 = vadd.f32 %v2784, %v2896
        %2930 = vst [vmem:[#allocation4] sm:$0xff] %v2898
        %2931 = vst [vmem:[#allocation4 + $0x8] sm:$0xff] %v2899
        %2932 = vst [vmem:[#allocation4 + $0x10] sm:$0xff] %v2900
        %2933 = vst [vmem:[#allocation4 + $0x18] sm:$0xff] %v2901
        %2934 = vst [vmem:[#allocation4 + $0x20] sm:$0xff] %v2902
        %2935 = vst [vmem:[#allocation4 + $0x28] sm:$0xff] %v2903
        %2936 = vst [vmem:[#allocation4 + $0x30] sm:$0xff] %v2904
        %2937 = vst [vmem:[#allocation4 + $0x38] sm:$0xff] %v2905
        %2938 = vst [vmem:[#allocation4 + $0x40] sm:$0xff] %v2906
        %2939 = vst [vmem:[#allocation4 + $0x48] sm:$0xff] %v2907
        %2940 = vst [vmem:[#allocation4 + $0x50] sm:$0xff] %v2908
        %2941 = vst [vmem:[#allocation4 + $0x58] sm:$0xff] %v2909
        %2942 = vst [vmem:[#allocation4 + $0x60] sm:$0xff] %v2910
        %2943 = vst [vmem:[#allocation4 + $0x68] sm:$0xff] %v2911
        %2944 = vst [vmem:[#allocation4 + $0x70] sm:$0xff] %v2912
        %2945 = vst [vmem:[#allocation4 + $0x78] sm:$0xff] %v2913
        %2946 = vst [vmem:[#allocation4 + $0x80] sm:$0xff] %v2914
        %2947 = vst [vmem:[#allocation4 + $0x88] sm:$0xff] %v2915
        %2948 = vst [vmem:[#allocation4 + $0x90] sm:$0xff] %v2916
        %2949 = vst [vmem:[#allocation4 + $0x98] sm:$0xff] %v2917
        %2950 = vst [vmem:[#allocation4 + $0xa0] sm:$0xff] %v2918
        %2951 = vst [vmem:[#allocation4 + $0xa8] sm:$0xff] %v2919
        %2952 = vst [vmem:[#allocation4 + $0xb0] sm:$0xff] %v2920
        %2953 = vst [vmem:[#allocation4 + $0xb8] sm:$0xff] %v2921
        %2954 = vst [vmem:[#allocation4 + $0xc0] sm:$0xff] %v2922
        %2955 = vst [vmem:[#allocation4 + $0xc8] sm:$0xff] %v2923
        %2956 = vst [vmem:[#allocation4 + $0xd0] sm:$0xff] %v2924
        %2957 = vst [vmem:[#allocation4 + $0xd8] sm:$0xff] %v2925
        %2958 = vst [vmem:[#allocation4 + $0xe0] sm:$0xff] %v2926
        %2959 = vst [vmem:[#allocation4 + $0xe8] sm:$0xff] %v2927
        %2960 = vst [vmem:[#allocation4 + $0xf0] sm:$0xff] %v2928
        %2961 = vst [vmem:[#allocation4 + $0xf8] sm:$0xff] %v2929
        %p2962 = scmp.eq.s32.totalorder %s43, 1
        // Predicated region
        $region97: #{tpu_custom_call.1} parent=63 // pred_check
          %p2963 = pneg %p2962
        $region98: #{tpu_custom_call.1} parent=63 // pred_check_branch
          %2965 = sbr.rel (%p2963) target = $region100
        $region99: #{tpu_custom_call.1} parent=63 // pred_region
          %v2966 = vld [vmem:[#allocation4] sm:$0xff]
          %v2967 = vld [vmem:[#allocation4 + $0x8] sm:$0xff]
          %v2968 = vld [vmem:[#allocation4 + $0x10] sm:$0xff]
          %v2969 = vld [vmem:[#allocation4 + $0x18] sm:$0xff]
          %v2970 = vld [vmem:[#allocation4 + $0x20] sm:$0xff]
          %v2971 = vld [vmem:[#allocation4 + $0x28] sm:$0xff]
          %v2972 = vld [vmem:[#allocation4 + $0x30] sm:$0xff]
          %v2973 = vld [vmem:[#allocation4 + $0x38] sm:$0xff]
          %v2974 = vld [vmem:[#allocation4 + $0x40] sm:$0xff]
          %v2975 = vld [vmem:[#allocation4 + $0x48] sm:$0xff]
          %v2976 = vld [vmem:[#allocation4 + $0x50] sm:$0xff]
          %v2977 = vld [vmem:[#allocation4 + $0x58] sm:$0xff]
          %v2978 = vld [vmem:[#allocation4 + $0x60] sm:$0xff]
          %v2979 = vld [vmem:[#allocation4 + $0x68] sm:$0xff]
          %v2980 = vld [vmem:[#allocation4 + $0x70] sm:$0xff]
          %v2981 = vld [vmem:[#allocation4 + $0x78] sm:$0xff]
          %v2982 = vld [vmem:[#allocation4 + $0x80] sm:$0xff]
          %v2983 = vld [vmem:[#allocation4 + $0x88] sm:$0xff]
          %v2984 = vld [vmem:[#allocation4 + $0x90] sm:$0xff]
          %v2985 = vld [vmem:[#allocation4 + $0x98] sm:$0xff]
          %v2986 = vld [vmem:[#allocation4 + $0xa0] sm:$0xff]
          %v2987 = vld [vmem:[#allocation4 + $0xa8] sm:$0xff]
          %v2988 = vld [vmem:[#allocation4 + $0xb0] sm:$0xff]
          %v2989 = vld [vmem:[#allocation4 + $0xb8] sm:$0xff]
          %v2990 = vld [vmem:[#allocation4 + $0xc0] sm:$0xff]
          %v2991 = vld [vmem:[#allocation4 + $0xc8] sm:$0xff]
          %v2992 = vld [vmem:[#allocation4 + $0xd0] sm:$0xff]
          %v2993 = vld [vmem:[#allocation4 + $0xd8] sm:$0xff]
          %v2994 = vld [vmem:[#allocation4 + $0xe0] sm:$0xff]
          %v2995 = vld [vmem:[#allocation4 + $0xe8] sm:$0xff]
          %v2996 = vld [vmem:[#allocation4 + $0xf0] sm:$0xff]
          %v2997 = vld [vmem:[#allocation4 + $0xf8] sm:$0xff]
          %v2998 = vld [vmem:[#allocation2] sm:$0xff]
          %v2999 = vld [vmem:[#allocation2 + $0x8] sm:$0xff]
          %v3000 = vld [vmem:[#allocation2 + $0x10] sm:$0xff]
          %v3001 = vld [vmem:[#allocation2 + $0x18] sm:$0xff]
          %v3002 = vld [vmem:[#allocation2 + $0x20] sm:$0xff]
          %v3003 = vld [vmem:[#allocation2 + $0x28] sm:$0xff]
          %v3004 = vld [vmem:[#allocation2 + $0x30] sm:$0xff]
          %v3005 = vld [vmem:[#allocation2 + $0x38] sm:$0xff]
          %v3006 = vld [vmem:[#allocation2 + $0x40] sm:$0xff]
          %v3007 = vld [vmem:[#allocation2 + $0x48] sm:$0xff]
          %v3008 = vld [vmem:[#allocation2 + $0x50] sm:$0xff]
          %v3009 = vld [vmem:[#allocation2 + $0x58] sm:$0xff]
          %v3010 = vld [vmem:[#allocation2 + $0x60] sm:$0xff]
          %v3011 = vld [vmem:[#allocation2 + $0x68] sm:$0xff]
          %v3012 = vld [vmem:[#allocation2 + $0x70] sm:$0xff]
          %v3013 = vld [vmem:[#allocation2 + $0x78] sm:$0xff]
          %v3014 = vld [vmem:[#allocation2 + $0x80] sm:$0xff]
          %v3015 = vld [vmem:[#allocation2 + $0x88] sm:$0xff]
          %v3016 = vld [vmem:[#allocation2 + $0x90] sm:$0xff]
          %v3017 = vld [vmem:[#allocation2 + $0x98] sm:$0xff]
          %v3018 = vld [vmem:[#allocation2 + $0xa0] sm:$0xff]
          %v3019 = vld [vmem:[#allocation2 + $0xa8] sm:$0xff]
          %v3020 = vld [vmem:[#allocation2 + $0xb0] sm:$0xff]
          %v3021 = vld [vmem:[#allocation2 + $0xb8] sm:$0xff]
          %v3022 = vld [vmem:[#allocation2 + $0xc0] sm:$0xff]
          %v3023 = vld [vmem:[#allocation2 + $0xc8] sm:$0xff]
          %v3024 = vld [vmem:[#allocation2 + $0xd0] sm:$0xff]
          %v3025 = vld [vmem:[#allocation2 + $0xd8] sm:$0xff]
          %v3026 = vld [vmem:[#allocation2 + $0xe0] sm:$0xff]
          %v3027 = vld [vmem:[#allocation2 + $0xe8] sm:$0xff]
          %v3028 = vld [vmem:[#allocation2 + $0xf0] sm:$0xff]
          %v3029 = vld [vmem:[#allocation2 + $0xf8] sm:$0xff]
          %v3030 = vmul.f32 %v2966, %v2998
          %v3031 = vmul.f32 %v2967, %v2999
          %v3032 = vmul.f32 %v2968, %v3000
          %v3033 = vmul.f32 %v2969, %v3001
          %v3034 = vmul.f32 %v2970, %v3002
          %v3035 = vmul.f32 %v2971, %v3003
          %v3036 = vmul.f32 %v2972, %v3004
          %v3037 = vmul.f32 %v2973, %v3005
          %v3038 = vmul.f32 %v2974, %v3006
          %v3039 = vmul.f32 %v2975, %v3007
          %v3040 = vmul.f32 %v2976, %v3008
          %v3041 = vmul.f32 %v2977, %v3009
          %v3042 = vmul.f32 %v2978, %v3010
          %v3043 = vmul.f32 %v2979, %v3011
          %v3044 = vmul.f32 %v2980, %v3012
          %v3045 = vmul.f32 %v2981, %v3013
          %v3046 = vmul.f32 %v2982, %v3014
          %v3047 = vmul.f32 %v2983, %v3015
          %v3048 = vmul.f32 %v2984, %v3016
          %v3049 = vmul.f32 %v2985, %v3017
          %v3050 = vmul.f32 %v2986, %v3018
          %v3051 = vmul.f32 %v2987, %v3019
          %v3052 = vmul.f32 %v2988, %v3020
          %v3053 = vmul.f32 %v2989, %v3021
          %v3054 = vmul.f32 %v2990, %v3022
          %v3055 = vmul.f32 %v2991, %v3023
          %v3056 = vmul.f32 %v2992, %v3024
          %v3057 = vmul.f32 %v2993, %v3025
          %v3058 = vmul.f32 %v2994, %v3026
          %v3059 = vmul.f32 %v2995, %v3027
          %v3060 = vmul.f32 %v2996, %v3028
          %v3061 = vmul.f32 %v2997, %v3029
          %v3062 = vpack.c.bf16 %v3032, %v3030
          %v3063 = vpack.c.bf16 %v3033, %v3031
          %v3064 = vpack.c.bf16 %v3036, %v3034
          %v3065 = vpack.c.bf16 %v3037, %v3035
          %v3066 = vpack.c.bf16 %v3040, %v3038
          %v3067 = vpack.c.bf16 %v3041, %v3039
          %v3068 = vpack.c.bf16 %v3044, %v3042
          %v3069 = vpack.c.bf16 %v3045, %v3043
          %v3070 = vpack.c.bf16 %v3048, %v3046
          %v3071 = vpack.c.bf16 %v3049, %v3047
          %v3072 = vpack.c.bf16 %v3052, %v3050
          %v3073 = vpack.c.bf16 %v3053, %v3051
          %v3074 = vpack.c.bf16 %v3056, %v3054
          %v3075 = vpack.c.bf16 %v3057, %v3055
          %v3076 = vpack.c.bf16 %v3060, %v3058
          %v3077 = vpack.c.bf16 %v3061, %v3059
          %v3078 = vld [vmem:[#allocation14] sm:$0xf]
          %v3079 = vld [vmem:[#allocation14 + $0x4] sm:$0xf]
          %v3080 = vld [vmem:[#allocation14 + $0x8] sm:$0xf]
          %v3081 = vld [vmem:[#allocation14 + $0xc] sm:$0xf]
          %v3082 = vld [vmem:[#allocation14 + $0x10] sm:$0xf]
          %v3083 = vld [vmem:[#allocation14 + $0x14] sm:$0xf]
          %v3084 = vld [vmem:[#allocation14 + $0x18] sm:$0xf]
          %v3085 = vld [vmem:[#allocation14 + $0x1c] sm:$0xf]
          %v3086 = vld [vmem:[#allocation14 + $0x20] sm:$0xf]
          %v3087 = vld [vmem:[#allocation14 + $0x24] sm:$0xf]
          %v3088 = vld [vmem:[#allocation14 + $0x28] sm:$0xf]
          %v3089 = vld [vmem:[#allocation14 + $0x2c] sm:$0xf]
          %v3090 = vld [vmem:[#allocation14 + $0x30] sm:$0xf]
          %v3091 = vld [vmem:[#allocation14 + $0x34] sm:$0xf]
          %v3092 = vld [vmem:[#allocation14 + $0x38] sm:$0xf]
          %v3093 = vld [vmem:[#allocation14 + $0x3c] sm:$0xf]
          %v3094 = vld [vmem:[#allocation14 + $0x40] sm:$0xf]
          %v3095 = vld [vmem:[#allocation14 + $0x44] sm:$0xf]
          %v3096 = vld [vmem:[#allocation14 + $0x48] sm:$0xf]
          %v3097 = vld [vmem:[#allocation14 + $0x4c] sm:$0xf]
          %v3098 = vld [vmem:[#allocation14 + $0x50] sm:$0xf]
          %v3099 = vld [vmem:[#allocation14 + $0x54] sm:$0xf]
          %v3100 = vld [vmem:[#allocation14 + $0x58] sm:$0xf]
          %v3101 = vld [vmem:[#allocation14 + $0x5c] sm:$0xf]
          %v3102 = vld [vmem:[#allocation14 + $0x60] sm:$0xf]
          %v3103 = vld [vmem:[#allocation14 + $0x64] sm:$0xf]
          %v3104 = vld [vmem:[#allocation14 + $0x68] sm:$0xf]
          %v3105 = vld [vmem:[#allocation14 + $0x6c] sm:$0xf]
          %v3106 = vld [vmem:[#allocation14 + $0x70] sm:$0xf]
          %v3107 = vld [vmem:[#allocation14 + $0x74] sm:$0xf]
          %v3108 = vld [vmem:[#allocation14 + $0x78] sm:$0xf]
          %v3109 = vld [vmem:[#allocation14 + $0x7c] sm:$0xf]
          %v3110 = vld [vmem:[%s7] sm:$0x1]
          %v3112 = vlaneseq
          %v3113 = vshrl.u32 %v3112, 7
          %v3114 = vsub.s32 0, %v3113
          %v3115 = vrot.slane %v3110, %v3114
          %v3149 = vunpack.c.l.b16 %v3078
          %v3150 = vunpack.c.l.b16 %v3079
          %v3151 = vunpack.c.l.b16 %v3080
          %v3152 = vunpack.c.l.b16 %v3081
          %v3153 = vunpack.c.l.b16 %v3082
          %v3154 = vunpack.c.l.b16 %v3083
          %v3155 = vunpack.c.l.b16 %v3084
          %v3156 = vunpack.c.l.b16 %v3085
          %v3157 = vunpack.c.l.b16 %v3086
          %v3158 = vunpack.c.l.b16 %v3087
          %v3159 = vunpack.c.l.b16 %v3088
          %v3160 = vunpack.c.l.b16 %v3089
          %v3161 = vunpack.c.l.b16 %v3090
          %v3162 = vunpack.c.l.b16 %v3091
          %v3163 = vunpack.c.l.b16 %v3092
          %v3164 = vunpack.c.l.b16 %v3093
          %v3165 = vunpack.c.l.b16 %v3094
          %v3166 = vunpack.c.l.b16 %v3095
          %v3167 = vunpack.c.l.b16 %v3096
          %v3168 = vunpack.c.l.b16 %v3097
          %v3169 = vunpack.c.l.b16 %v3098
          %v3170 = vunpack.c.l.b16 %v3099
          %v3171 = vunpack.c.l.b16 %v3100
          %v3172 = vunpack.c.l.b16 %v3101
          %v3173 = vunpack.c.l.b16 %v3102
          %v3174 = vunpack.c.l.b16 %v3103
          %v3175 = vunpack.c.l.b16 %v3104
          %v3176 = vunpack.c.l.b16 %v3105
          %v3177 = vunpack.c.l.b16 %v3106
          %v3178 = vunpack.c.l.b16 %v3107
          %v3179 = vunpack.c.l.b16 %v3108
          %v3180 = vunpack.c.l.b16 %v3109
          %v3181 = vpack.c.b16 %v3150, %v3149
          %v3182 = vpack.c.b16 %v3152, %v3151
          %v3183 = vpack.c.b16 %v3154, %v3153
          %v3184 = vpack.c.b16 %v3156, %v3155
          %v3185 = vpack.c.b16 %v3158, %v3157
          %v3186 = vpack.c.b16 %v3160, %v3159
          %v3187 = vpack.c.b16 %v3162, %v3161
          %v3188 = vpack.c.b16 %v3164, %v3163
          %v3189 = vpack.c.b16 %v3166, %v3165
          %v3190 = vpack.c.b16 %v3168, %v3167
          %v3191 = vpack.c.b16 %v3170, %v3169
          %v3192 = vpack.c.b16 %v3172, %v3171
          %v3193 = vpack.c.b16 %v3174, %v3173
          %v3194 = vpack.c.b16 %v3176, %v3175
          %v3195 = vpack.c.b16 %v3178, %v3177
          %v3196 = vpack.c.b16 %v3180, %v3179
          %3213 = vmatprep.subr.bf16.mxu0 0
          %3214 = vmatpush1.bf16.msra.mxu0 %v3181
          %3215 = vmatprep.subr.bf16.mxu0 0
          %3216 = vmatpush1.bf16.msra.mxu0 %v3182
          %3217 = vmatprep.subr.bf16.mxu0 0
          %3218 = vmatpush1.bf16.msra.mxu0 %v3183
          %3219 = vmatprep.subr.bf16.mxu0 0
          %3220 = vmatpush1.bf16.msra.mxu0 %v3184
          %3221 = vmatprep.subr.bf16.mxu0 0
          %3222 = vmatpush1.bf16.msra.mxu0 %v3185
          %3223 = vmatprep.subr.bf16.mxu0 0
          %3224 = vmatpush1.bf16.msra.mxu0 %v3186
          %3225 = vmatprep.subr.bf16.mxu0 0
          %3226 = vmatpush1.bf16.msra.mxu0 %v3187
          %3227 = vmatprep.subr.bf16.mxu0 0
          %3228 = vmatpush1.bf16.msra.mxu0 %v3188
          %3229 = vmatprep.subr.bf16.mxu0 0
          %3230 = vmatpush1.bf16.msra.mxu0 %v3189
          %3231 = vmatprep.subr.bf16.mxu0 0
          %3232 = vmatpush1.bf16.msra.mxu0 %v3190
          %3233 = vmatprep.subr.bf16.mxu0 0
          %3234 = vmatpush1.bf16.msra.mxu0 %v3191
          %3235 = vmatprep.subr.bf16.mxu0 0
          %3236 = vmatpush1.bf16.msra.mxu0 %v3192
          %3237 = vmatprep.subr.bf16.mxu0 0
          %3238 = vmatpush1.bf16.msra.mxu0 %v3193
          %3239 = vmatprep.subr.bf16.mxu0 0
          %3240 = vmatpush1.bf16.msra.mxu0 %v3194
          %3241 = vmatprep.subr.bf16.mxu0 0
          %3242 = vmatpush1.bf16.msra.mxu0 %v3195
          %3243 = vmatprep.subr.bf16.mxu0 0
          %3244 = vmatpush1.bf16.msra.mxu0 %v3196
          %3245 = vmatprep.mubr.bf16.mxu0 %v3063
          %3246 = vmatmul.mubr.bf16.gmra.mrb[0].mxu0 %v3062
          %v3247 = vpop.f32.mrb[0].mxu0
          %v3248 = vadd.f32 %v3115, %v3247
          %v3249 = vpop.f32.mrb[0].mxu0
          %v3250 = vpop.f32.mrb[0].mxu0
          %v3251 = vadd.f32 %v3115, %v3250
          %v3252 = vpop.f32.mrb[0].mxu0
          %3253 = vmatprep.mubr.bf16.mxu0 %v3065
          %3254 = vmatmul.mubr.bf16.gmra.mrb[0].mxu0 %v3064
          %v3255 = vpop.f32.mrb[0].mxu0
          %v3256 = vadd.f32 %v3115, %v3255
          %v3257 = vpop.f32.mrb[0].mxu0
          %v3258 = vpop.f32.mrb[0].mxu0
          %v3259 = vadd.f32 %v3115, %v3258
          %v3260 = vpop.f32.mrb[0].mxu0
          %3261 = vmatprep.mubr.bf16.mxu0 %v3067
          %3262 = vmatmul.mubr.bf16.gmra.mrb[0].mxu0 %v3066
          %v3263 = vpop.f32.mrb[0].mxu0
          %v3264 = vadd.f32 %v3115, %v3263
          %v3265 = vpop.f32.mrb[0].mxu0
          %v3266 = vpop.f32.mrb[0].mxu0
          %v3267 = vadd.f32 %v3115, %v3266
          %v3268 = vpop.f32.mrb[0].mxu0
          %3269 = vmatprep.mubr.bf16.mxu0 %v3069
          %3270 = vmatmul.mubr.bf16.gmra.mrb[0].mxu0 %v3068
          %v3271 = vpop.f32.mrb[0].mxu0
          %v3272 = vadd.f32 %v3115, %v3271
          %v3273 = vpop.f32.mrb[0].mxu0
          %v3274 = vpop.f32.mrb[0].mxu0
          %v3275 = vadd.f32 %v3115, %v3274
          %v3276 = vpop.f32.mrb[0].mxu0
          %3277 = vmatprep.mubr.bf16.mxu0 %v3071
          %3278 = vmatmul.mubr.bf16.gmra.mrb[0].mxu0 %v3070
          %v3279 = vpop.f32.mrb[0].mxu0
          %v3280 = vadd.f32 %v3115, %v3279
          %v3281 = vpop.f32.mrb[0].mxu0
          %v3282 = vpop.f32.mrb[0].mxu0
          %v3283 = vadd.f32 %v3115, %v3282
          %v3284 = vpop.f32.mrb[0].mxu0
          %3285 = vmatprep.mubr.bf16.mxu0 %v3073
          %3286 = vmatmul.mubr.bf16.gmra.mrb[0].mxu0 %v3072
          %v3287 = vpop.f32.mrb[0].mxu0
          %v3288 = vadd.f32 %v3115, %v3287
          %v3289 = vpop.f32.mrb[0].mxu0
          %v3290 = vpop.f32.mrb[0].mxu0
          %v3291 = vadd.f32 %v3115, %v3290
          %v3292 = vpop.f32.mrb[0].mxu0
          %3293 = vmatprep.mubr.bf16.mxu0 %v3075
          %3294 = vmatmul.mubr.bf16.gmra.mrb[0].mxu0 %v3074
          %v3295 = vpop.f32.mrb[0].mxu0
          %v3296 = vadd.f32 %v3115, %v3295
          %v3297 = vpop.f32.mrb[0].mxu0
          %v3298 = vpop.f32.mrb[0].mxu0
          %v3299 = vadd.f32 %v3115, %v3298
          %v3300 = vpop.f32.mrb[0].mxu0
          %3301 = vmatprep.mubr.bf16.mxu0 %v3077
          %3302 = vmatmul.mubr.bf16.gmra.mrb[0].mxu0 %v3076
          %v3303 = vpop.f32.mrb[0].mxu0
          %v3304 = vadd.f32 %v3115, %v3303
          %v3305 = vpop.f32.mrb[0].mxu0
          %v3306 = vpop.f32.mrb[0].mxu0
          %v3307 = vadd.f32 %v3115, %v3306
          %v3308 = vpop.f32.mrb[0].mxu0
          %3309 = vdwg.mxu0
          %v3310 = vld [vmem:[%s491] sm:$0xf]
          %v3311 = vld [vmem:[%s491 + $0x4] sm:$0xf]
          %v3312 = vld [vmem:[%s491 + $0x8] sm:$0xf]
          %v3313 = vld [vmem:[%s491 + $0xc] sm:$0xf]
          %v3314 = vld [vmem:[%s491 + $0x10] sm:$0xf]
          %v3315 = vld [vmem:[%s491 + $0x14] sm:$0xf]
          %v3316 = vld [vmem:[%s491 + $0x18] sm:$0xf]
          %v3317 = vld [vmem:[%s491 + $0x1c] sm:$0xf]
          %v3318 = vld [vmem:[%s491 + $0x20] sm:$0xf]
          %v3319 = vld [vmem:[%s491 + $0x24] sm:$0xf]
          %v3320 = vld [vmem:[%s491 + $0x28] sm:$0xf]
          %v3321 = vld [vmem:[%s491 + $0x2c] sm:$0xf]
          %v3322 = vld [vmem:[%s491 + $0x30] sm:$0xf]
          %v3323 = vld [vmem:[%s491 + $0x34] sm:$0xf]
          %v3324 = vld [vmem:[%s491 + $0x38] sm:$0xf]
          %v3325 = vld [vmem:[%s491 + $0x3c] sm:$0xf]
          %v3326 = vunpack.c.l.bf16 %v3310
          %v3327 = vunpack.c.l.bf16 %v3311
          %v3328 = vunpack.c.l.bf16 %v3312
          %v3329 = vunpack.c.l.bf16 %v3313
          %v3330 = vunpack.c.l.bf16 %v3314
          %v3331 = vunpack.c.l.bf16 %v3315
          %v3332 = vunpack.c.l.bf16 %v3316
          %v3333 = vunpack.c.l.bf16 %v3317
          %v3334 = vunpack.c.l.bf16 %v3318
          %v3335 = vunpack.c.l.bf16 %v3319
          %v3336 = vunpack.c.l.bf16 %v3320
          %v3337 = vunpack.c.l.bf16 %v3321
          %v3338 = vunpack.c.l.bf16 %v3322
          %v3339 = vunpack.c.l.bf16 %v3323
          %v3340 = vunpack.c.l.bf16 %v3324
          %v3341 = vunpack.c.l.bf16 %v3325
          %v3342 = vadd.f32 %v3248, %v3326
          %v3343 = vadd.f32 %v3251, %v3327
          %v3344 = vadd.f32 %v3256, %v3328
          %v3345 = vadd.f32 %v3259, %v3329
          %v3346 = vadd.f32 %v3264, %v3330
          %v3347 = vadd.f32 %v3267, %v3331
          %v3348 = vadd.f32 %v3272, %v3332
          %v3349 = vadd.f32 %v3275, %v3333
          %v3350 = vadd.f32 %v3280, %v3334
          %v3351 = vadd.f32 %v3283, %v3335
          %v3352 = vadd.f32 %v3288, %v3336
          %v3353 = vadd.f32 %v3291, %v3337
          %v3354 = vadd.f32 %v3296, %v3338
          %v3355 = vadd.f32 %v3299, %v3339
          %v3356 = vadd.f32 %v3304, %v3340
          %v3357 = vadd.f32 %v3307, %v3341
          %v3358 = vpack.c.bf16 %v3343, %v3342
          %v3359 = vpack.c.bf16 %v3345, %v3344
          %v3360 = vpack.c.bf16 %v3347, %v3346
          %v3361 = vpack.c.bf16 %v3349, %v3348
          %v3362 = vpack.c.bf16 %v3351, %v3350
          %v3363 = vpack.c.bf16 %v3353, %v3352
          %v3364 = vpack.c.bf16 %v3355, %v3354
          %v3365 = vpack.c.bf16 %v3357, %v3356
          %v3374 = vunpack.c.l.b16 %v3358
          %v3375 = vunpack.c.h.b16 %v3358
          %v3376 = vunpack.c.l.b16 %v3359
          %v3377 = vunpack.c.h.b16 %v3359
          %v3378 = vunpack.c.l.b16 %v3360
          %v3379 = vunpack.c.h.b16 %v3360
          %v3380 = vunpack.c.l.b16 %v3361
          %v3381 = vunpack.c.h.b16 %v3361
          %v3382 = vunpack.c.l.b16 %v3362
          %v3383 = vunpack.c.h.b16 %v3362
          %v3384 = vunpack.c.l.b16 %v3363
          %v3385 = vunpack.c.h.b16 %v3363
          %v3386 = vunpack.c.l.b16 %v3364
          %v3387 = vunpack.c.h.b16 %v3364
          %v3388 = vunpack.c.l.b16 %v3365
          %v3389 = vunpack.c.h.b16 %v3365
          %v3390 = vpack.c.b16 %v3374, %v3374
          %v3391 = vpack.c.b16 %v3375, %v3375
          %v3392 = vpack.c.b16 %v3376, %v3376
          %v3393 = vpack.c.b16 %v3377, %v3377
          %v3394 = vpack.c.b16 %v3378, %v3378
          %v3395 = vpack.c.b16 %v3379, %v3379
          %v3396 = vpack.c.b16 %v3380, %v3380
          %v3397 = vpack.c.b16 %v3381, %v3381
          %v3398 = vpack.c.b16 %v3382, %v3382
          %v3399 = vpack.c.b16 %v3383, %v3383
          %v3400 = vpack.c.b16 %v3384, %v3384
          %v3401 = vpack.c.b16 %v3385, %v3385
          %v3402 = vpack.c.b16 %v3386, %v3386
          %v3403 = vpack.c.b16 %v3387, %v3387
          %v3404 = vpack.c.b16 %v3388, %v3388
          %v3405 = vpack.c.b16 %v3389, %v3389
          %3422 = vst [vmem:[%s574] sm:$0xf] %v3390
          %3423 = vst [vmem:[%s574 + $0x4] sm:$0xf] %v3391
          %3424 = vst [vmem:[%s574 + $0x8] sm:$0xf] %v3392
          %3425 = vst [vmem:[%s574 + $0xc] sm:$0xf] %v3393
          %3426 = vst [vmem:[%s574 + $0x10] sm:$0xf] %v3394
          %3427 = vst [vmem:[%s574 + $0x14] sm:$0xf] %v3395
          %3428 = vst [vmem:[%s574 + $0x18] sm:$0xf] %v3396
          %3429 = vst [vmem:[%s574 + $0x1c] sm:$0xf] %v3397
          %3430 = vst [vmem:[%s574 + $0x20] sm:$0xf] %v3398
          %3431 = vst [vmem:[%s574 + $0x24] sm:$0xf] %v3399
          %3432 = vst [vmem:[%s574 + $0x28] sm:$0xf] %v3400
          %3433 = vst [vmem:[%s574 + $0x2c] sm:$0xf] %v3401
          %3434 = vst [vmem:[%s574 + $0x30] sm:$0xf] %v3402
          %3435 = vst [vmem:[%s574 + $0x34] sm:$0xf] %v3403
          %3436 = vst [vmem:[%s574 + $0x38] sm:$0xf] %v3404
          %3437 = vst [vmem:[%s574 + $0x3c] sm:$0xf] %v3405
        $region100: #{tpu_custom_call.1} parent=63 // pred_fallthru
          _
        %s3438 = sand.u32 %s317, 1
        %s3439 = scalar_lea.sflag [#allocation7], %s3438
        %s3440 = sand.u32 %s317, 1
        %s3441 = smul.addr %s3440, 64
        %s3442 = scalar_lea.vmem [#allocation18], %s3441
        // Predicated region
        $region101: #{tpu_custom_call.1} parent=63 // pred_check
          %p3443 = pneg %p327
        $region102: #{tpu_custom_call.1} parent=63 // pred_check_branch
          %3445 = sbr.rel (%p3443) target = $region104
        $region103: #{tpu_custom_call.1} parent=63 // pred_region
          %s3446 = smul.u32 16, %s42
          %s3448 = ssub.s32 1024, 1024
          %3449 = vsyncadd %s3439, %s3448
          %s3450 = smul.addr %s41, 32
          %s3451 = sadd.s32 %s3446, %s3450
          %s3452 = smul.addr %s3451, 64
          %s3453 = scalar_lea.hbm %s11, %s3452
          %s3454 = sshll.u32 %s3442, 4
          %s3455 = int_to_ptr.vmem [resolvable:$true] %s3454
          %3460 = dma.vmem_to_hbm [thread:$0]  %s3455, 1024, %s3453, %s3439, 64, 64, 4
        $region104: #{tpu_custom_call.1} parent=63 // pred_fallthru
          _
      $region64: #{tpu_custom_call.1} parent=5 // pred_fallthru
        _
      %p3461 = scmp.le.s32.totalorder 2, %s31
      // Predicated region
      $region105: #{tpu_custom_call.1} parent=5 // pred_check
        %p3462 = pneg %p3461
      $region106: #{tpu_custom_call.1} parent=5 // pred_check_branch
        %3464 = sbr.rel (%p3462) target = $region108
      $region107: #{tpu_custom_call.1} parent=5 // pred_region
        %s3465 = ssub.s32 %s31, 2
        // Predicated region
        $region109: #{tpu_custom_call.1} parent=107 // pred_check
          %p3466 = pneg %p333
        $region110: #{tpu_custom_call.1} parent=107 // pred_check_branch
          %3468 = sbr.rel (%p3466) target = $region112
        $region111: #{tpu_custom_call.1} parent=107 // pred_region
          %s3469 = sand.u32 %s318, 1
          %s3470 = scalar_lea.sflag [#allocation7], %s3469
          %s3471 = sand.u32 %s318, 1
          %s3472 = smul.addr %s3471, 64
          %s3473 = scalar_lea.vmem [#allocation18], %s3472
          %3474 = dma.done %s3470, 1024
        $region112: #{tpu_custom_call.1} parent=107 // pred_fallthru
          _
      $region108: #{tpu_custom_call.1} parent=5 // pred_fallthru
        _
    $region6: #{tpu_custom_call.1} parent=1 // loop_footer
      %s35 = sadd.s32 1, %s31
    $region7: #{tpu_custom_call.1} parent=1 // loop_footer_branch
      %30 = sbr.rel target = $region3
    $region8: #{tpu_custom_call.1} parent=1 // loop_exit
      _
    %3475 = vsyncpa [#allocation6], 1
    %s3476 = scalar_lea.sflag [#allocation6], 1
    %3477 = vsyncpa %s3476, 1
    %3478 = vsyncpa [#allocation10], 1
    %s3479 = scalar_lea.sflag [#allocation10], 1
    %3480 = vsyncpa %s3479, 1
    %3481 = vsyncpa [#allocation13], 1
    %3482 = vsyncpa [#allocation16], 1
    %s3483 = scalar_lea.sflag [#allocation16], 1
    %3484 = vsyncpa %s3483, 1
    %3485 = vsyncpa [#allocation7], 1
    %s3486 = scalar_lea.sflag [#allocation7], 1
    %3487 = vsyncpa %s3486, 1
    %3488 = vsyncpa [#allocation8], 1
    %s3489 = scalar_lea.sflag [#allocation8], 1
    %3490 = vsyncpa %s3489, 1

</llo_original>
